<compile_context>
chip_gen: v7x
topology: tpu7x:2x2x1
jax: 0.10.0
libtpu: 0.0.40
codegen_flags: <defaults>
</compile_context>

<pallas_src>
import jax
import jax.numpy as jnp
from jax.experimental import pallas as pl
from jax.experimental.pallas import tpu as pltpu

NUM_LAYERS = 2       # num_layers
HIDDEN     = 32      # fiber_hidden / l0 features
L1_OUT     = 2       # l1_out_features
NTYPES     = 15      # ntypes
NC10       = 10      # Cblock out

QKVS_W   = 4 * HIDDEN                 # 128 : fused [q | k | v | self]
HEAD_NL  = L1_OUT + NTYPES + NC10     # 27  : nonlinear head cols [wo|wb|c]
G_OFF    = HEAD_NL                    # g (l1 projection) cols 27:29 in head
V_W      = 3 * L1_OUT                 # 6   : v columns in the output slab
OUT_W    = 128                        # lane-dense output slab width


def _se3_wrapper_kernel(h_ref, ebias_ref, coords_ref,
                        wattn_ref, whead_ref, bhead_ref, out_ref):
    Bb, N, _ = h_ref.shape
    rows = Bb * N

    # node features flattened to (Bb*N, 32): fattens the MXU M dimension for
    # every node-wise matmul in the kernel.
    h = h_ref[...].astype(jnp.float32).reshape(rows, HIDDEN)
    x = coords_ref[...].astype(jnp.float32)                  # (Bb, N, 3)
    ebias = ebias_ref[...].astype(jnp.float32)               # (Bb, N, N)

    scale = jnp.float32(1.0 / (HIDDEN ** 0.5))
    a = None
    # --- simplified SE3 backbone: graph-attention layers (static unroll) ----
    for l in range(NUM_LAYERS):
        w_l = wattn_ref[l].astype(jnp.bfloat16)              # (32, 128)
        qkvs = jnp.dot(h.astype(jnp.bfloat16), w_l,
                       preferred_element_type=jnp.float32)   # (rows, 128)
        q  = qkvs[:, 0 * HIDDEN:1 * HIDDEN].reshape(Bb, N, HIDDEN)
        k  = qkvs[:, 1 * HIDDEN:2 * HIDDEN].reshape(Bb, N, HIDDEN)
        vv = qkvs[:, 2 * HIDDEN:3 * HIDDEN].reshape(Bb, N, HIDDEN)
        hs = qkvs[:, 3 * HIDDEN:4 * HIDDEN]                  # (rows, 32)

        # q @ k^T per graph, bf16 operands, f32 accumulation
        s = jnp.einsum('bqd,bkd->bqk',
                       q.astype(jnp.bfloat16), k.astype(jnp.bfloat16),
                       preferred_element_type=jnp.float32)   # (Bb, N, N)
        s = s * scale + ebias
        s = s - jnp.max(s, axis=-1, keepdims=True)
        p = jnp.exp(s)
        a = p * pl.reciprocal(jnp.sum(p, axis=-1, keepdims=True), approx=True)

        av = jnp.einsum('bqk,bkd->bqd',
                        a.astype(jnp.bfloat16), vv.astype(jnp.bfloat16),
                        preferred_element_type=jnp.float32)  # (Bb, N, 32)
        h = jnp.maximum(av.reshape(rows, HIDDEN) + hs, 0.0)

    # --- fused head: one (rows,32)@(32,128) matmul, cols = [wo|wb|c|g|0..] --
    head = (jnp.dot(h.astype(jnp.bfloat16), whead_ref[...].astype(jnp.bfloat16),
                    preferred_element_type=jnp.float32)
            + bhead_ref[...])                                # (rows, 128)

    head_nl = head[:, :HEAD_NL]
    col = jax.lax.broadcasted_iota(jnp.int32, head_nl.shape, 1)
    # cols 0:2 -> Tanh (WOblock), 2:27 -> ReLU (WBblock / Cblock)
    act = jnp.where(col < L1_OUT,
                    jnp.tanh(head_nl),
                    jnp.maximum(head_nl, 0.0)).reshape(Bb, N, HEAD_NL)

    g = head[:, G_OFF:G_OFF + L1_OUT].reshape(Bb, N, L1_OUT)  # raw l1 proj

    # --- degree-1 output, single fused MXU push over [g | g*x0 | g*x1 | g*x2]
    #     v[:, :, d] = A @ (g * x_d) - x_d * (A @ g)
    rhs = jnp.concatenate(
        [g, g * x[..., 0:1], g * x[..., 1:2], g * x[..., 2:3]],
        axis=-1)                                              # (Bb, N, 8)
    agx = jnp.einsum('bqk,bkf->bqf',
                     a.astype(jnp.bfloat16), rhs.astype(jnp.bfloat16),
                     preferred_element_type=jnp.float32)      # (Bb, N, 8)
    ag = agx[..., :L1_OUT]                                    # A @ g
    v_cols = jnp.concatenate(
        [agx[..., L1_OUT * (d + 1):L1_OUT * (d + 2)] - x[..., d:d + 1] * ag
         for d in range(3)],
        axis=-1)                                              # (Bb, N, 6)

    # --- one unmasked lane-dense store of the whole (Bb, N, 128) slab -------
    tail = jnp.zeros((Bb, N, OUT_W - HEAD_NL - V_W), jnp.float32)
    out_ref[...] = jnp.concatenate([act, v_cols, tail], axis=-1)


def _shared_spec(arr):
    nd = arr.ndim
    return pl.BlockSpec(arr.shape, lambda b, nd=nd: (0,) * nd)


def _pick_block_batch(B, N):
    """Largest block-batch that (a) keeps Bb*N modest, (b) leaves >=2 grid
    steps when possible (v7x has 2 TensorCores), (c) reaches >=128 MXU rows."""
    divs = [d for d in range(1, B + 1) if B % d == 0 and d * N <= 1024] or [1]
    multi = [d for d in divs if B // d >= 2] or divs
    for d in multi:
        if d * N >= 128:
            return d
    return multi[-1]


def se3_transformer_wrapper(params, coords, node_feat0, edge_feat):
    """Mirrors SE3TransformerWrapper.forward for a batch of dense graphs.

    coords:      (B, N, 3)      node coordinates (graph geometry)
    node_feat0:  (B, N, 32, 1)  degree-0 node features (l1_in_features == 0)
    edge_feat:   (B, N, N, 32)  dense degree-0 edge features
    returns (wo, wb, c, v, Rblock) like the PyTorch module.
    """
    B, N = node_feat0.shape[0], node_feat0.shape[1]
    h0 = node_feat0[..., 0].astype(jnp.float32)               # (B, N, 32)

    # Edge-feature bias precomputed by XLA (fused reduce over HBM); the kernel
    # only needs this 1-channel contraction, so we avoid streaming the full
    # (B,N,N,32) tensor (and its 4x lane padding) through VMEM.  Shipped bf16.
    ebias = jnp.einsum('bijc,c->bij',
                       edge_feat, params['we'],
                       preferred_element_type=jnp.float32).astype(jnp.bfloat16)

    Bb = _pick_block_batch(B, N)
    grid = (B // Bb,)

    flops = int(B * (NUM_LAYERS * (2 * N * HIDDEN * QKVS_W + 4 * N * N * HIDDEN)
                     + 2 * N * HIDDEN * OUT_W + 2 * N * N * 4 * L1_OUT))
    transcendentals = int(B * (NUM_LAYERS * N * N + N * HEAD_NL))
    bytes_accessed = int(B * (4 * N * HIDDEN + 2 * N * N + 4 * N * 3
                              + 4 * N * OUT_W)
                         + 4 * (NUM_LAYERS * HIDDEN * QKVS_W
                                + HIDDEN * OUT_W + OUT_W))

    inputs = (h0, ebias, coords.astype(jnp.float32),
              params['wattn'], params['whead'], params['bhead'])

    in_specs = [
        pl.BlockSpec((Bb, N, HIDDEN), lambda b: (b, 0, 0)),
        pl.BlockSpec((Bb, N, N),      lambda b: (b, 0, 0)),
        pl.BlockSpec((Bb, N, 3),      lambda b: (b, 0, 0)),
        _shared_spec(params['wattn']),
        _shared_spec(params['whead']),
        _shared_spec(params['bhead']),
    ]

    slab = pl.pallas_call(
        _se3_wrapper_kernel,
        out_shape=jax.ShapeDtypeStruct((B, N, OUT_W), jnp.float32),
        grid=grid,
        in_specs=in_specs,
        out_specs=pl.BlockSpec((Bb, N, OUT_W), lambda b: (b, 0, 0)),
        compiler_params=pltpu.CompilerParams(
            dimension_semantics=("parallel",),
            vmem_limit_bytes=32 * 1024 * 1024),
        cost_estimate=pl.CostEstimate(
            flops=flops, transcendentals=transcendentals,
            bytes_accessed=bytes_accessed),
    )(*inputs)

    wo = slab[:, :, 0:L1_OUT]
    wb = slab[:, :, L1_OUT:L1_OUT + NTYPES]
    c  = slab[:, :, L1_OUT + NTYPES:HEAD_NL]
    v  = slab[:, :, HEAD_NL:HEAD_NL + V_W].reshape(B, N, 3, L1_OUT)
    v  = jnp.transpose(v, (0, 1, 3, 2))            # (B, N, l1_out, 3) == hs['1']
    return wo, wb, c, v, params['rblock']          # Rblock: list of (1,2) weights


def init_params(key):
    ks = jax.random.split(key, 12)

    def nrm(k, shape, scale=0.1):
        return scale * jax.random.normal(k, shape, jnp.float32)

    wq    = nrm(ks[0], (NUM_LAYERS, HIDDEN, HIDDEN))
    wk    = nrm(ks[1], (NUM_LAYERS, HIDDEN, HIDDEN))
    wv    = nrm(ks[2], (NUM_LAYERS, HIDDEN, HIDDEN))
    wself = nrm(ks[3], (NUM_LAYERS, HIDDEN, HIDDEN))
    wl1   = nrm(ks[4], (HIDDEN, L1_OUT))
    we    = nrm(ks[5], (HIDDEN,))
    wo_w  = nrm(ks[6], (HIDDEN, L1_OUT))           # (in, out) == W.T of nn.Linear
    wo_b  = nrm(ks[7], (1, L1_OUT))
    wb_w  = nrm(ks[8], (HIDDEN, NTYPES))
    c_w   = nrm(ks[9], (HIDDEN, NC10))

    # fused, lane-dense weights (done once at init, not per forward call)
    wattn = jnp.concatenate([wq, wk, wv, wself], axis=-1)            # (L,32,128)
    whead = jnp.concatenate(
        [wo_w, wb_w, c_w, wl1,
         jnp.zeros((HIDDEN, OUT_W - HEAD_NL - L1_OUT), jnp.float32)],
        axis=-1)                                                     # (32, 128)
    bhead = jnp.concatenate(
        [wo_b, jnp.zeros((1, OUT_W - L1_OUT), jnp.float32)], axis=-1)  # (1, 128)

    return {
        'wattn': wattn,
        'whead': whead,
        'bhead': bhead,
        'we': we,
        # Rblock: 15 x Linear(l1_out_features, 1, bias=False) -> weights (1, 2)
        'rblock': [nrm(k, (1, L1_OUT))
                   for k in jax.random.split(ks[10], NTYPES)],
    }


if __name__ == "__main__":
    key = jax.random.PRNGKey(0)
    kp, kn, ke, kc = jax.random.split(key, 4)
    B, N = 8, 32
    params = init_params(kp)
    node_feat0 = jax.random.normal(kn, (B, N, HIDDEN, 1), jnp.float32)
    edge_feat  = jax.random.normal(ke, (B, N, N, HIDDEN), jnp.float32)
    coords     = jax.random.normal(kc, (B, N, 3), jnp.float32)

    fwd = jax.jit(se3_transformer_wrapper)
    wo, wb, c, v, rblock = fwd(params, coords, node_feat0, edge_feat)
    jax.block_until_ready((wo, wb, c, v))

    assert wo.shape == (B, N, L1_OUT)
    assert wb.shape == (B, N, NTYPES)
    assert c.shape == (B, N, NC10)
    assert v.shape == (B, N, L1_OUT, 3)
    assert len(rblock) == NTYPES and rblock[0].shape == (1, L1_OUT)
    assert bool(jnp.all(jnp.isfinite(wo))) and bool(jnp.all(jnp.isfinite(v)))
    print("KERNEL_OK")
</pallas_src>

<mosaic_0001>
module attributes {stable_mosaic.version = 11 : i64} {
  func.func @_se3_wrapper_kernel(%arg0: i32, %arg1: memref<4x32x32xf32, #tpu.memory_space<vmem>>, %arg2: memref<4x32x32xbf16, #tpu.memory_space<vmem>>, %arg3: memref<4x32x3xf32, #tpu.memory_space<vmem>>, %arg4: memref<2x32x128xf32, #tpu.memory_space<vmem>>, %arg5: memref<32x128xf32, #tpu.memory_space<vmem>>, %arg6: memref<1x128xf32, #tpu.memory_space<vmem>>, %arg7: memref<4x32x128xf32, #tpu.memory_space<vmem>>) attributes {dimension_semantics = [#tpu.dimension_semantics<parallel>], iteration_bounds = array<i64: 2>, scalar_prefetch = 0 : i64, scratch_operands = 0 : i64, tpu.core_type = #tpu.core_type<tc>, window_params = [{transform_indices = @transform_0, window_bounds = array<i64: 4, 32, 32>}, {transform_indices = @transform_1, window_bounds = array<i64: 4, 32, 32>}, {transform_indices = @transform_2, window_bounds = array<i64: 4, 32, 3>}, {pipeline_mode = #tpu.pipeline_mode<synchronous>, transform_indices = @transform_3, window_bounds = array<i64: 2, 32, 128>}, {pipeline_mode = #tpu.pipeline_mode<synchronous>, transform_indices = @transform_4, window_bounds = array<i64: 32, 128>}, {pipeline_mode = #tpu.pipeline_mode<synchronous>, transform_indices = @transform_5, window_bounds = array<i64: 1, 128>}, {transform_indices = @transform_6, window_bounds = array<i64: 4, 32, 128>}]} {
    %c0 = arith.constant 0 : index
    %c0_0 = arith.constant 0 : index
    %c0_1 = arith.constant 0 : index
    %0 = vector.load %arg1[%c0, %c0_0, %c0_1] : memref<4x32x32xf32, #tpu.memory_space<vmem>>, vector<4x32x32xf32>
    %1 = vector.shape_cast %0 : vector<4x32x32xf32> to vector<128x32xf32>
    %c0_2 = arith.constant 0 : index
    %c0_3 = arith.constant 0 : index
    %c0_4 = arith.constant 0 : index
    %2 = vector.load %arg3[%c0_2, %c0_3, %c0_4] : memref<4x32x3xf32, #tpu.memory_space<vmem>>, vector<4x32x3xf32>
    %c0_5 = arith.constant 0 : index
    %c0_6 = arith.constant 0 : index
    %c0_7 = arith.constant 0 : index
    %3 = vector.load %arg2[%c0_5, %c0_6, %c0_7] : memref<4x32x32xbf16, #tpu.memory_space<vmem>>, vector<4x32x32xbf16>
    %4 = arith.extf %3 : vector<4x32x32xbf16> to vector<4x32x32xf32>
    %c0_8 = arith.constant 0 : index
    %c0_9 = arith.constant 0 : index
    %c0_10 = arith.constant 0 : index
    %5 = vector.load %arg4[%c0_8, %c0_9, %c0_10] : memref<2x32x128xf32, #tpu.memory_space<vmem>>, vector<1x32x128xf32>
    %6 = vector.shape_cast %5 : vector<1x32x128xf32> to vector<32x128xf32>
    %7 = arith.truncf %6 : vector<32x128xf32> to vector<32x128xbf16>
    %8 = arith.truncf %1 : vector<128x32xf32> to vector<128x32xbf16>
    %cst = arith.constant dense<0.000000e+00> : vector<128x128xf32>
    %9 = tpu.matmul %8, %7, %cst {dimension_numbers = #tpu.dot_dimension_numbers<[1], [0], [0], [1], [0, 0, 1, 1], [], []>} : vector<128x32xbf16>, vector<32x128xbf16>, vector<128x128xf32> -> vector<128x128xf32>
    %10 = vector.extract_strided_slice %9 {offsets = [0, 0], sizes = [128, 32], strides = [1, 1]} : vector<128x128xf32> to vector<128x32xf32>
    %11 = vector.shape_cast %10 : vector<128x32xf32> to vector<4x32x32xf32>
    %12 = vector.extract_strided_slice %9 {offsets = [0, 32], sizes = [128, 32], strides = [1, 1]} : vector<128x128xf32> to vector<128x32xf32>
    %13 = vector.shape_cast %12 : vector<128x32xf32> to vector<4x32x32xf32>
    %14 = vector.extract_strided_slice %9 {offsets = [0, 64], sizes = [128, 32], strides = [1, 1]} : vector<128x128xf32> to vector<128x32xf32>
    %15 = vector.shape_cast %14 : vector<128x32xf32> to vector<4x32x32xf32>
    %16 = vector.extract_strided_slice %9 {offsets = [0, 96], sizes = [128, 32], strides = [1, 1]} : vector<128x128xf32> to vector<128x32xf32>
    %17 = arith.truncf %11 : vector<4x32x32xf32> to vector<4x32x32xbf16>
    %18 = arith.truncf %13 : vector<4x32x32xf32> to vector<4x32x32xbf16>
    "tpu.trace_start"() <{level = 10 : i32, message = "bqd,bkd->bqk"}> : () -> ()
    %cst_11 = arith.constant dense<0.000000e+00> : vector<4x32x32xf32>
    %19 = tpu.matmul %17, %18, %cst_11 {dimension_numbers = #tpu.dot_dimension_numbers<[2], [2], [1], [1], [0, 0, 0, 1, 1, 1], [0], [0]>} : vector<4x32x32xbf16>, vector<4x32x32xbf16>, vector<4x32x32xf32> -> vector<4x32x32xf32>
    "tpu.trace_stop"() : () -> ()
    %cst_12 = arith.constant 0.176776692 : f32
    %20 = vector.broadcast %cst_12 : f32 to vector<4x32x32xf32>
    %21 = arith.mulf %19, %20 : vector<4x32x32xf32>
    %22 = arith.addf %21, %4 : vector<4x32x32xf32>
    %cst_13 = arith.constant dense<0xFF800000> : vector<4x32xf32>
    %23 = vector.multi_reduction <maximumf>, %22, %cst_13 [2] : vector<4x32x32xf32> to vector<4x32xf32>
    %24 = vector.shape_cast %23 : vector<4x32xf32> to vector<4x32x1xf32>
    %25 = vector.broadcast %24 : vector<4x32x1xf32> to vector<4x32x32xf32>
    %26 = arith.subf %22, %25 : vector<4x32x32xf32>
    %27 = math.exp %26 : vector<4x32x32xf32>
    %cst_14 = arith.constant dense<0.000000e+00> : vector<4x32xf32>
    %28 = vector.multi_reduction <add>, %27, %cst_14 [2] : vector<4x32x32xf32> to vector<4x32xf32>
    %29 = vector.shape_cast %28 : vector<4x32xf32> to vector<4x32x1xf32>
    %30 = tpu.reciprocal %29 {approx = true} : vector<4x32x1xf32> -> vector<4x32x1xf32>
    %31 = vector.broadcast %30 : vector<4x32x1xf32> to vector<4x32x32xf32>
    %32 = arith.mulf %27, %31 : vector<4x32x32xf32>
    %33 = arith.truncf %32 : vector<4x32x32xf32> to vector<4x32x32xbf16>
    %34 = arith.truncf %15 : vector<4x32x32xf32> to vector<4x32x32xbf16>
    "tpu.trace_start"() <{level = 10 : i32, message = "bqk,bkd->bqd"}> : () -> ()
    %cst_15 = arith.constant dense<0.000000e+00> : vector<4x32x32xf32>
    %35 = tpu.matmul %33, %34, %cst_15 {dimension_numbers = #tpu.dot_dimension_numbers<[2], [1], [1], [2], [0, 0, 0, 1, 1, 2], [0], [0]>} : vector<4x32x32xbf16>, vector<4x32x32xbf16>, vector<4x32x32xf32> -> vector<4x32x32xf32>
    "tpu.trace_stop"() : () -> ()
    %36 = vector.shape_cast %35 : vector<4x32x32xf32> to vector<128x32xf32>
    %37 = arith.addf %36, %16 : vector<128x32xf32>
    %cst_16 = arith.constant 0.000000e+00 : f32
    %38 = vector.broadcast %cst_16 : f32 to vector<128x32xf32>
    %39 = arith.maximumf %37, %38 : vector<128x32xf32>
    %c1 = arith.constant 1 : index
    %c0_17 = arith.constant 0 : index
    %c0_18 = arith.constant 0 : index
    %40 = vector.load %arg4[%c1, %c0_17, %c0_18] : memref<2x32x128xf32, #tpu.memory_space<vmem>>, vector<1x32x128xf32>
    %41 = vector.shape_cast %40 : vector<1x32x128xf32> to vector<32x128xf32>
    %42 = arith.truncf %41 : vector<32x128xf32> to vector<32x128xbf16>
    %43 = arith.truncf %39 : vector<128x32xf32> to vector<128x32xbf16>
    %cst_19 = arith.constant dense<0.000000e+00> : vector<128x128xf32>
    %44 = tpu.matmul %43, %42, %cst_19 {dimension_numbers = #tpu.dot_dimension_numbers<[1], [0], [0], [1], [0, 0, 1, 1], [], []>} : vector<128x32xbf16>, vector<32x128xbf16>, vector<128x128xf32> -> vector<128x128xf32>
    %45 = vector.extract_strided_slice %44 {offsets = [0, 0], sizes = [128, 32], strides = [1, 1]} : vector<128x128xf32> to vector<128x32xf32>
    %46 = vector.shape_cast %45 : vector<128x32xf32> to vector<4x32x32xf32>
    %47 = vector.extract_strided_slice %44 {offsets = [0, 32], sizes = [128, 32], strides = [1, 1]} : vector<128x128xf32> to vector<128x32xf32>
    %48 = vector.shape_cast %47 : vector<128x32xf32> to vector<4x32x32xf32>
    %49 = vector.extract_strided_slice %44 {offsets = [0, 64], sizes = [128, 32], strides = [1, 1]} : vector<128x128xf32> to vector<128x32xf32>
    %50 = vector.shape_cast %49 : vector<128x32xf32> to vector<4x32x32xf32>
    %51 = vector.extract_strided_slice %44 {offsets = [0, 96], sizes = [128, 32], strides = [1, 1]} : vector<128x128xf32> to vector<128x32xf32>
    %52 = arith.truncf %46 : vector<4x32x32xf32> to vector<4x32x32xbf16>
    %53 = arith.truncf %48 : vector<4x32x32xf32> to vector<4x32x32xbf16>
    "tpu.trace_start"() <{level = 10 : i32, message = "bqd,bkd->bqk"}> : () -> ()
    %cst_20 = arith.constant dense<0.000000e+00> : vector<4x32x32xf32>
    %54 = tpu.matmul %52, %53, %cst_20 {dimension_numbers = #tpu.dot_dimension_numbers<[2], [2], [1], [1], [0, 0, 0, 1, 1, 1], [0], [0]>} : vector<4x32x32xbf16>, vector<4x32x32xbf16>, vector<4x32x32xf32> -> vector<4x32x32xf32>
    "tpu.trace_stop"() : () -> ()
    %cst_21 = arith.constant 0.176776692 : f32
    %55 = vector.broadcast %cst_21 : f32 to vector<4x32x32xf32>
    %56 = arith.mulf %54, %55 : vector<4x32x32xf32>
    %57 = arith.addf %56, %4 : vector<4x32x32xf32>
    %cst_22 = arith.constant dense<0xFF800000> : vector<4x32xf32>
    %58 = vector.multi_reduction <maximumf>, %57, %cst_22 [2] : vector<4x32x32xf32> to vector<4x32xf32>
    %59 = vector.shape_cast %58 : vector<4x32xf32> to vector<4x32x1xf32>
    %60 = vector.broadcast %59 : vector<4x32x1xf32> to vector<4x32x32xf32>
    %61 = arith.subf %57, %60 : vector<4x32x32xf32>
    %62 = math.exp %61 : vector<4x32x32xf32>
    %cst_23 = arith.constant dense<0.000000e+00> : vector<4x32xf32>
    %63 = vector.multi_reduction <add>, %62, %cst_23 [2] : vector<4x32x32xf32> to vector<4x32xf32>
    %64 = vector.shape_cast %63 : vector<4x32xf32> to vector<4x32x1xf32>
    %65 = tpu.reciprocal %64 {approx = true} : vector<4x32x1xf32> -> vector<4x32x1xf32>
    %66 = vector.broadcast %65 : vector<4x32x1xf32> to vector<4x32x32xf32>
    %67 = arith.mulf %62, %66 : vector<4x32x32xf32>
    %68 = arith.truncf %67 : vector<4x32x32xf32> to vector<4x32x32xbf16>
    %69 = arith.truncf %50 : vector<4x32x32xf32> to vector<4x32x32xbf16>
    "tpu.trace_start"() <{level = 10 : i32, message = "bqk,bkd->bqd"}> : () -> ()
    %cst_24 = arith.constant dense<0.000000e+00> : vector<4x32x32xf32>
    %70 = tpu.matmul %68, %69, %cst_24 {dimension_numbers = #tpu.dot_dimension_numbers<[2], [1], [1], [2], [0, 0, 0, 1, 1, 2], [0], [0]>} : vector<4x32x32xbf16>, vector<4x32x32xbf16>, vector<4x32x32xf32> -> vector<4x32x32xf32>
    "tpu.trace_stop"() : () -> ()
    %71 = vector.shape_cast %70 : vector<4x32x32xf32> to vector<128x32xf32>
    %72 = arith.addf %71, %51 : vector<128x32xf32>
    %cst_25 = arith.constant 0.000000e+00 : f32
    %73 = vector.broadcast %cst_25 : f32 to vector<128x32xf32>
    %74 = arith.maximumf %72, %73 : vector<128x32xf32>
    %75 = arith.truncf %74 : vector<128x32xf32> to vector<128x32xbf16>
    %c0_26 = arith.constant 0 : index
    %c0_27 = arith.constant 0 : index
    %76 = vector.load %arg5[%c0_26, %c0_27] : memref<32x128xf32, #tpu.memory_space<vmem>>, vector<32x128xf32>
    %77 = arith.truncf %76 : vector<32x128xf32> to vector<32x128xbf16>
    %cst_28 = arith.constant dense<0.000000e+00> : vector<128x128xf32>
    %78 = tpu.matmul %75, %77, %cst_28 {dimension_numbers = #tpu.dot_dimension_numbers<[1], [0], [0], [1], [0, 0, 1, 1], [], []>} : vector<128x32xbf16>, vector<32x128xbf16>, vector<128x128xf32> -> vector<128x128xf32>
    %c0_29 = arith.constant 0 : index
    %c0_30 = arith.constant 0 : index
    %79 = vector.load %arg6[%c0_29, %c0_30] : memref<1x128xf32, #tpu.memory_space<vmem>>, vector<1x128xf32>
    %80 = vector.broadcast %79 : vector<1x128xf32> to vector<128x128xf32>
    %81 = arith.addf %78, %80 : vector<128x128xf32>
    %82 = vector.extract_strided_slice %81 {offsets = [0, 0], sizes = [128, 27], strides = [1, 1]} : vector<128x128xf32> to vector<128x27xf32>
    %83 = tpu.iota {dimensions = array<i32: 1>} : vector<128x27xi32>
    %c2_i32 = arith.constant 2 : i32
    %84 = vector.broadcast %c2_i32 : i32 to vector<128x27xi32>
    %85 = arith.cmpi slt, %83, %84 : vector<128x27xi32>
    %86 = math.tanh %82 : vector<128x27xf32>
    %cst_31 = arith.constant 0.000000e+00 : f32
    %87 = vector.broadcast %cst_31 : f32 to vector<128x27xf32>
    %88 = arith.maximumf %82, %87 : vector<128x27xf32>
    %89 = arith.select %85, %86, %88 : vector<128x27xi1>, vector<128x27xf32>
    %90 = vector.shape_cast %89 : vector<128x27xf32> to vector<4x32x27xf32>
    %91 = vector.extract_strided_slice %81 {offsets = [0, 27], sizes = [128, 2], strides = [1, 1]} : vector<128x128xf32> to vector<128x2xf32>
    %92 = vector.shape_cast %91 : vector<128x2xf32> to vector<4x32x2xf32>
    %93 = vector.extract_strided_slice %2 {offsets = [0, 0, 0], sizes = [4, 32, 1], strides = [1, 1, 1]} : vector<4x32x3xf32> to vector<4x32x1xf32>
    %94 = vector.broadcast %93 : vector<4x32x1xf32> to vector<4x32x2xf32>
    %95 = arith.mulf %92, %94 : vector<4x32x2xf32>
    %96 = vector.extract_strided_slice %2 {offsets = [0, 0, 1], sizes = [4, 32, 1], strides = [1, 1, 1]} : vector<4x32x3xf32> to vector<4x32x1xf32>
    %97 = vector.broadcast %96 : vector<4x32x1xf32> to vector<4x32x2xf32>
    %98 = arith.mulf %92, %97 : vector<4x32x2xf32>
    %99 = vector.extract_strided_slice %2 {offsets = [0, 0, 2], sizes = [4, 32, 1], strides = [1, 1, 1]} : vector<4x32x3xf32> to vector<4x32x1xf32>
    %100 = vector.broadcast %99 : vector<4x32x1xf32> to vector<4x32x2xf32>
    %101 = arith.mulf %92, %100 : vector<4x32x2xf32>
    %102 = tpu.concatenate %92, %95, %98, %101 in 2 : vector<4x32x2xf32>, vector<4x32x2xf32>, vector<4x32x2xf32>, vector<4x32x2xf32> -> vector<4x32x8xf32>
    %103 = arith.truncf %67 : vector<4x32x32xf32> to vector<4x32x32xbf16>
    %104 = arith.truncf %102 : vector<4x32x8xf32> to vector<4x32x8xbf16>
    "tpu.trace_start"() <{level = 10 : i32, message = "bqk,bkf->bqf"}> : () -> ()
    %cst_32 = arith.constant dense<0.000000e+00> : vector<4x32x8xf32>
    %105 = tpu.matmul %103, %104, %cst_32 {dimension_numbers = #tpu.dot_dimension_numbers<[2], [1], [1], [2], [0, 0, 0, 1, 1, 2], [0], [0]>} : vector<4x32x32xbf16>, vector<4x32x8xbf16>, vector<4x32x8xf32> -> vector<4x32x8xf32>
    "tpu.trace_stop"() : () -> ()
    %106 = vector.extract_strided_slice %105 {offsets = [0, 0, 0], sizes = [4, 32, 2], strides = [1, 1, 1]} : vector<4x32x8xf32> to vector<4x32x2xf32>
    %107 = vector.extract_strided_slice %105 {offsets = [0, 0, 2], sizes = [4, 32, 2], strides = [1, 1, 1]} : vector<4x32x8xf32> to vector<4x32x2xf32>
    %108 = vector.extract_strided_slice %2 {offsets = [0, 0, 0], sizes = [4, 32, 1], strides = [1, 1, 1]} : vector<4x32x3xf32> to vector<4x32x1xf32>
    %109 = vector.broadcast %108 : vector<4x32x1xf32> to vector<4x32x2xf32>
    %110 = arith.mulf %109, %106 : vector<4x32x2xf32>
    %111 = arith.subf %107, %110 : vector<4x32x2xf32>
    %112 = vector.extract_strided_slice %105 {offsets = [0, 0, 4], sizes = [4, 32, 2], strides = [1, 1, 1]} : vector<4x32x8xf32> to vector<4x32x2xf32>
    %113 = vector.extract_strided_slice %2 {offsets = [0, 0, 1], sizes = [4, 32, 1], strides = [1, 1, 1]} : vector<4x32x3xf32> to vector<4x32x1xf32>
    %114 = vector.broadcast %113 : vector<4x32x1xf32> to vector<4x32x2xf32>
    %115 = arith.mulf %114, %106 : vector<4x32x2xf32>
    %116 = arith.subf %112, %115 : vector<4x32x2xf32>
    %117 = vector.extract_strided_slice %105 {offsets = [0, 0, 6], sizes = [4, 32, 2], strides = [1, 1, 1]} : vector<4x32x8xf32> to vector<4x32x2xf32>
    %118 = vector.extract_strided_slice %2 {offsets = [0, 0, 2], sizes = [4, 32, 1], strides = [1, 1, 1]} : vector<4x32x3xf32> to vector<4x32x1xf32>
    %119 = vector.broadcast %118 : vector<4x32x1xf32> to vector<4x32x2xf32>
    %120 = arith.mulf %119, %106 : vector<4x32x2xf32>
    %121 = arith.subf %117, %120 : vector<4x32x2xf32>
    %122 = tpu.concatenate %111, %116, %121 in 2 : vector<4x32x2xf32>, vector<4x32x2xf32>, vector<4x32x2xf32> -> vector<4x32x6xf32>
    %cst_33 = arith.constant 0.000000e+00 : f32
    %123 = vector.broadcast %cst_33 : f32 to vector<4x32x95xf32>
    %124 = tpu.concatenate %90, %122, %123 in 2 : vector<4x32x27xf32>, vector<4x32x6xf32>, vector<4x32x95xf32> -> vector<4x32x128xf32>
    %c0_34 = arith.constant 0 : index
    %c0_35 = arith.constant 0 : index
    %c0_36 = arith.constant 0 : index
    %125 = vector.load %arg7[%c0_34, %c0_35, %c0_36] : memref<4x32x128xf32, #tpu.memory_space<vmem>>, vector<4x32x128xf32>
    tpu.vector_store %arg7[%c0_34, %c0_35, %c0_36], %124 {strides = array<i32>} : memref<4x32x128xf32, #tpu.memory_space<vmem>>, vector<4x32x128xf32>,
    return
  }
  func.func @transform_0(%arg0: i32) -> (i32, i32, i32) {
    %c0_i32 = arith.constant 0 : i32
    %c0_i32_0 = arith.constant 0 : i32
    %c0_i32_1 = arith.constant 0 : i32
    return %arg0, %c0_i32, %c0_i32_0 : i32, i32, i32
  }
  func.func @transform_1(%arg0: i32) -> (i32, i32, i32) {
    %c0_i32 = arith.constant 0 : i32
    %c0_i32_0 = arith.constant 0 : i32
    %c0_i32_1 = arith.constant 0 : i32
    return %arg0, %c0_i32, %c0_i32_0 : i32, i32, i32
  }
  func.func @transform_2(%arg0: i32) -> (i32, i32, i32) {
    %c0_i32 = arith.constant 0 : i32
    %c0_i32_0 = arith.constant 0 : i32
    %c0_i32_1 = arith.constant 0 : i32
    return %arg0, %c0_i32, %c0_i32_0 : i32, i32, i32
  }
  func.func @transform_3(%arg0: i32) -> (i32, i32, i32) {
    %c0_i32 = arith.constant 0 : i32
    %c0_i32_0 = arith.constant 0 : i32
    %c0_i32_1 = arith.constant 0 : i32
    %c0_i32_2 = arith.constant 0 : i32
    return %c0_i32, %c0_i32_0, %c0_i32_1 : i32, i32, i32
  }
  func.func @transform_4(%arg0: i32) -> (i32, i32) {
    %c0_i32 = arith.constant 0 : i32
    %c0_i32_0 = arith.constant 0 : i32
    %c0_i32_1 = arith.constant 0 : i32
    return %c0_i32, %c0_i32_0 : i32, i32
  }
  func.func @transform_5(%arg0: i32) -> (i32, i32) {
    %c0_i32 = arith.constant 0 : i32
    %c0_i32_0 = arith.constant 0 : i32
    %c0_i32_1 = arith.constant 0 : i32
    return %c0_i32, %c0_i32_0 : i32, i32
  }
  func.func @transform_6(%arg0: i32) -> (i32, i32, i32) {
    %c0_i32 = arith.constant 0 : i32
    %c0_i32_0 = arith.constant 0 : i32
    %c0_i32_1 = arith.constant 0 : i32
    return %arg0, %c0_i32, %c0_i32_0 : i32, i32, i32
  }
}

</mosaic_0001>

<llo_original>
// kernel: se3_transformer_wrapper.1
$region0: #{se3_transformer_wrapper.1}
  #allocation0 [shape = 'u32[]', space=smem, size = 0x4, offset = 0x4, fixed_abs, tag = 'smem constant byte address 0x4 - core index']
  #allocation1 [shape = 'u32[144,128]{1,0:T(1,128)}', space=vmem, size = 0x12000, scoped, tag = 'internal scratch']
  %s0 = inlined_call_operand.vmem [shape: f32[8,32,32], index: 0, kind: input, shape index: {}]
  %s1 = inlined_call_operand.vmem [shape: bf16[8,32,32], index: 1, kind: input, shape index: {}]
  %s2 = inlined_call_operand.vmem [shape: f32[8,32,3], index: 2, kind: input, shape index: {}]
  %s3 = inlined_call_operand.vmem [shape: f32[2,32,128], index: 3, kind: input, shape index: {}]
  %s4 = inlined_call_operand.vmem [shape: f32[32,128], index: 4, kind: input, shape index: {}]
  %s5 = inlined_call_operand.vmem [shape: f32[1,128], index: 5, kind: input, shape index: {}]
  %s6 = inlined_call_operand.vmem [shape: f32[8,32,128], index: 6, kind: output, shape index: {}]
  %s7 = sld [smem:[#allocation0]]
  $region57: #{se3_transformer_wrapper.1} parent=0
    _
  %s9 = ssub.s32 1, %s7
  %s10 = scalar_select 0, %s9, %s7
  loop: start=0, step=1, limit=4
  $region2: #{se3_transformer_wrapper.1} parent=0 // loop_pre_header
    _
  $region3: #{se3_transformer_wrapper.1} parent=0 // loop_header
    %s12 = sphi 0, %s16
    %p13 = scmp.ge.s32.totalorder %s12, 4
    %s22 = sphi 0, %s24
    %s25 = sphi 0, %s22
    %s26 = sphi 0, %s25
    %s42 = sphi 0, %s26
    %s48 = sphi 0, %s50
    %s51 = sphi 0, %s48
    %s52 = sphi 0, %s51
    %s68 = sphi 0, %s52
    %s74 = sphi 0, %s76
    %s77 = sphi 0, %s74
    %s78 = sphi 0, %s77
    %s94 = sphi 0, %s78
    %s98 = sphi 0, %s98
    %s100 = sphi 0, %s98
    %s101 = sphi 0, %s100
    %s115 = sphi 0, %s101
    %s119 = sphi 0, %s119
    %s121 = sphi 0, %s119
    %s122 = sphi 0, %s121
    %s136 = sphi 0, %s122
    %s140 = sphi 0, %s140
    %s142 = sphi 0, %s140
    %s143 = sphi 0, %s142
    %s157 = sphi 0, %s143
    %s163 = sphi 0, %s165
    %s166 = sphi 0, %s163
    %s167 = sphi 0, %s166
    %s183 = sphi 0, %s167
  $region4: #{se3_transformer_wrapper.1} parent=0 // loop_header_branch
    %15 = sbr.rel (%p13) target = $region8
  $region5: #{se3_transformer_wrapper.1} parent=0 // loop_body
    %s17 = ssub.s32 %s12, 1
    %s18 = ssub.s32 %s12, 2
    %s19 = sadd.s32 %s12, 1
    %s20 = ssub.s32 %s12, %s19
    %p21 = scmp.eq.s32.totalorder %s20, 0
    %s23 = sadd.s32 %s22, 1
    %s24 = scalar_select %p21, %s22, %s23
    %p27 = pneg %p21
    %p28 = scmp.eq.s32.totalorder %s12, 1
    %p29 = por %p27, %p28
    %p30 = scmp.ne.s32.totalorder %s22, %s25
    %p31 = scmp.eq.s32.totalorder %s12, 0
    %p32 = por %p30, %p31
    %p33 = scmp.ne.s32.totalorder %s22, %s25
    %p34 = scmp.eq.s32.totalorder %s17, 1
    %p35 = por %p33, %p34
    %p36 = scmp.ne.s32.totalorder %s25, %s26
    %p37 = scmp.eq.s32.totalorder %s17, 0
    %p38 = por %p36, %p37
    %p39 = scmp.ne.s32.totalorder %s25, %s26
    %p40 = scmp.eq.s32.totalorder %s18, 1
    %p41 = por %p39, %p40
    %p43 = scmp.ne.s32.totalorder %s26, %s42
    %p44 = scmp.eq.s32.totalorder %s18, 0
    %p45 = por %p43, %p44
    %s46 = ssub.s32 %s12, %s19
    %p47 = scmp.eq.s32.totalorder %s46, 0
    %s49 = sadd.s32 %s48, 1
    %s50 = scalar_select %p47, %s48, %s49
    %p53 = pneg %p47
    %p54 = scmp.eq.s32.totalorder %s12, 1
    %p55 = por %p53, %p54
    %p56 = scmp.ne.s32.totalorder %s48, %s51
    %p57 = scmp.eq.s32.totalorder %s12, 0
    %p58 = por %p56, %p57
    %p59 = scmp.ne.s32.totalorder %s48, %s51
    %p60 = scmp.eq.s32.totalorder %s17, 1
    %p61 = por %p59, %p60
    %p62 = scmp.ne.s32.totalorder %s51, %s52
    %p63 = scmp.eq.s32.totalorder %s17, 0
    %p64 = por %p62, %p63
    %p65 = scmp.ne.s32.totalorder %s51, %s52
    %p66 = scmp.eq.s32.totalorder %s18, 1
    %p67 = por %p65, %p66
    %p69 = scmp.ne.s32.totalorder %s52, %s68
    %p70 = scmp.eq.s32.totalorder %s18, 0
    %p71 = por %p69, %p70
    %s72 = ssub.s32 %s12, %s19
    %p73 = scmp.eq.s32.totalorder %s72, 0
    %s75 = sadd.s32 %s74, 1
    %s76 = scalar_select %p73, %s74, %s75
    %p79 = pneg %p73
    %p80 = scmp.eq.s32.totalorder %s12, 1
    %p81 = por %p79, %p80
    %p82 = scmp.ne.s32.totalorder %s74, %s77
    %p83 = scmp.eq.s32.totalorder %s12, 0
    %p84 = por %p82, %p83
    %p85 = scmp.ne.s32.totalorder %s74, %s77
    %p86 = scmp.eq.s32.totalorder %s17, 1
    %p87 = por %p85, %p86
    %p88 = scmp.ne.s32.totalorder %s77, %s78
    %p89 = scmp.eq.s32.totalorder %s17, 0
    %p90 = por %p88, %p89
    %p91 = scmp.ne.s32.totalorder %s77, %s78
    %p92 = scmp.eq.s32.totalorder %s18, 1
    %p93 = por %p91, %p92
    %p95 = scmp.ne.s32.totalorder %s78, %s94
    %p96 = scmp.eq.s32.totalorder %s18, 0
    %p97 = por %p95, %p96
    %s99 = sadd.s32 %s98, 1
    %p102 = scmp.eq.s32.totalorder %s12, 1
    %p103 = scmp.ne.s32.totalorder %s98, %s100
    %p104 = scmp.eq.s32.totalorder %s12, 0
    %p105 = por %p103, %p104
    %p106 = scmp.ne.s32.totalorder %s98, %s100
    %p107 = scmp.eq.s32.totalorder %s17, 1
    %p108 = por %p106, %p107
    %p109 = scmp.ne.s32.totalorder %s100, %s101
    %p110 = scmp.eq.s32.totalorder %s17, 0
    %p111 = por %p109, %p110
    %p112 = scmp.ne.s32.totalorder %s100, %s101
    %p113 = scmp.eq.s32.totalorder %s18, 1
    %p114 = por %p112, %p113
    %p116 = scmp.ne.s32.totalorder %s101, %s115
    %p117 = scmp.eq.s32.totalorder %s18, 0
    %p118 = por %p116, %p117
    %s120 = sadd.s32 %s119, 1
    %p123 = scmp.eq.s32.totalorder %s12, 1
    %p124 = scmp.ne.s32.totalorder %s119, %s121
    %p125 = scmp.eq.s32.totalorder %s12, 0
    %p126 = por %p124, %p125
    %p127 = scmp.ne.s32.totalorder %s119, %s121
    %p128 = scmp.eq.s32.totalorder %s17, 1
    %p129 = por %p127, %p128
    %p130 = scmp.ne.s32.totalorder %s121, %s122
    %p131 = scmp.eq.s32.totalorder %s17, 0
    %p132 = por %p130, %p131
    %p133 = scmp.ne.s32.totalorder %s121, %s122
    %p134 = scmp.eq.s32.totalorder %s18, 1
    %p135 = por %p133, %p134
    %p137 = scmp.ne.s32.totalorder %s122, %s136
    %p138 = scmp.eq.s32.totalorder %s18, 0
    %p139 = por %p137, %p138
    %s141 = sadd.s32 %s140, 1
    %p144 = scmp.eq.s32.totalorder %s12, 1
    %p145 = scmp.ne.s32.totalorder %s140, %s142
    %p146 = scmp.eq.s32.totalorder %s12, 0
    %p147 = por %p145, %p146
    %p148 = scmp.ne.s32.totalorder %s140, %s142
    %p149 = scmp.eq.s32.totalorder %s17, 1
    %p150 = por %p148, %p149
    %p151 = scmp.ne.s32.totalorder %s142, %s143
    %p152 = scmp.eq.s32.totalorder %s17, 0
    %p153 = por %p151, %p152
    %p154 = scmp.ne.s32.totalorder %s142, %s143
    %p155 = scmp.eq.s32.totalorder %s18, 1
    %p156 = por %p154, %p155
    %p158 = scmp.ne.s32.totalorder %s143, %s157
    %p159 = scmp.eq.s32.totalorder %s18, 0
    %p160 = por %p158, %p159
    %s161 = ssub.s32 %s12, %s19
    %p162 = scmp.eq.s32.totalorder %s161, 0
    %s164 = sadd.s32 %s163, 1
    %s165 = scalar_select %p162, %s163, %s164
    %p168 = pneg %p162
    %p169 = scmp.eq.s32.totalorder %s12, 1
    %p170 = por %p168, %p169
    %p171 = scmp.ne.s32.totalorder %s163, %s166
    %p172 = scmp.eq.s32.totalorder %s12, 0
    %p173 = por %p171, %p172
    %p174 = scmp.ne.s32.totalorder %s163, %s166
    %p175 = scmp.eq.s32.totalorder %s17, 1
    %p176 = por %p174, %p175
    %p177 = scmp.ne.s32.totalorder %s166, %s167
    %p178 = scmp.eq.s32.totalorder %s17, 0
    %p179 = por %p177, %p178
    %p180 = scmp.ne.s32.totalorder %s166, %s167
    %p181 = scmp.eq.s32.totalorder %s18, 1
    %p182 = por %p180, %p181
    %p184 = scmp.ne.s32.totalorder %s167, %s183
    %p185 = scmp.eq.s32.totalorder %s18, 0
    %p186 = por %p184, %p185
    %p187 = scmp.le.s32.totalorder 1, %s12
    %p188 = scmp.lt.s32.totalorder %s12, 3
    %p189 = pnand %p187, %p188
    %p190 = pneg %p189
    // Predicated region
    $region9: #{se3_transformer_wrapper.1} parent=5 // pred_check
      _
    $region10: #{se3_transformer_wrapper.1} parent=5 // pred_check_branch
      %192 = sbr.rel (%p189) target = $region12
    $region11: #{se3_transformer_wrapper.1} parent=5 // pred_region
      %s193 = ssub.s32 %s12, 1
      // Predicated region
      $region13: #{se3_transformer_wrapper.1} parent=11 // pred_check
        %p194 = pneg %p111
      $region14: #{se3_transformer_wrapper.1} parent=11 // pred_check_branch
        %196 = sbr.rel (%p194) target = $region16
      $region15: #{se3_transformer_wrapper.1} parent=11 // pred_region
        _
      $region16: #{se3_transformer_wrapper.1} parent=11 // pred_fallthru
        _
      // Predicated region
      $region17: #{se3_transformer_wrapper.1} parent=11 // pred_check
        %p197 = pneg %p132
      $region18: #{se3_transformer_wrapper.1} parent=11 // pred_check_branch
        %199 = sbr.rel (%p197) target = $region20
      $region19: #{se3_transformer_wrapper.1} parent=11 // pred_region
        _
      $region20: #{se3_transformer_wrapper.1} parent=11 // pred_fallthru
        _
      // Predicated region
      $region21: #{se3_transformer_wrapper.1} parent=11 // pred_check
        %p200 = pneg %p153
      $region22: #{se3_transformer_wrapper.1} parent=11 // pred_check_branch
        %202 = sbr.rel (%p200) target = $region24
      $region23: #{se3_transformer_wrapper.1} parent=11 // pred_region
        _
      $region24: #{se3_transformer_wrapper.1} parent=11 // pred_fallthru
        _
    $region12: #{se3_transformer_wrapper.1} parent=5 // pred_fallthru
      _
    %p203 = scmp.lt.s32.totalorder %s12, 2
    // Predicated region
    $region25: #{se3_transformer_wrapper.1} parent=5 // pred_check
      %p204 = pneg %p203
    $region26: #{se3_transformer_wrapper.1} parent=5 // pred_check_branch
      %206 = sbr.rel (%p204) target = $region28
    $region27: #{se3_transformer_wrapper.1} parent=5 // pred_region
      // Predicated region
      $region29: #{se3_transformer_wrapper.1} parent=27 // pred_check
        %p207 = pneg %p32
      $region30: #{se3_transformer_wrapper.1} parent=27 // pred_check_branch
        %209 = sbr.rel (%p207) target = $region32
      $region31: #{se3_transformer_wrapper.1} parent=27 // pred_region
        %s210 = smul.u32 4, %s12
        %p211 = scmp.lt.s32.totalorder %s210, 7
        %s212 = scalar_select %p211, %s210, 7
        %s213 = smul.addr %s212, 4
        %s214 = smul.addr %s213, 8
        %s215 = scalar_lea.vmem %s0, %s214
        %s216 = smul.u32 4, %s12
      $region32: #{se3_transformer_wrapper.1} parent=27 // pred_fallthru
        _
      // Predicated region
      $region33: #{se3_transformer_wrapper.1} parent=27 // pred_check
        %p217 = pneg %p58
      $region34: #{se3_transformer_wrapper.1} parent=27 // pred_check_branch
        %219 = sbr.rel (%p217) target = $region36
      $region35: #{se3_transformer_wrapper.1} parent=27 // pred_region
        %s220 = smul.u32 4, %s12
        %p221 = scmp.lt.s32.totalorder %s220, 7
        %s222 = scalar_select %p221, %s220, 7
        %s223 = smul.addr %s222, 4
        %s224 = smul.addr %s223, 4
        %s225 = scalar_lea.vmem %s1, %s224
        %s226 = smul.u32 4, %s12
      $region36: #{se3_transformer_wrapper.1} parent=27 // pred_fallthru
        _
      // Predicated region
      $region37: #{se3_transformer_wrapper.1} parent=27 // pred_check
        %p227 = pneg %p84
      $region38: #{se3_transformer_wrapper.1} parent=27 // pred_check_branch
        %229 = sbr.rel (%p227) target = $region40
      $region39: #{se3_transformer_wrapper.1} parent=27 // pred_region
        %s230 = smul.u32 4, %s12
        %p231 = scmp.lt.s32.totalorder %s230, 7
        %s232 = scalar_select %p231, %s230, 7
        %s233 = smul.addr %s232, 4
        %s234 = smul.addr %s233, 8
        %s235 = scalar_lea.vmem %s2, %s234
        %s236 = smul.u32 4, %s12
      $region40: #{se3_transformer_wrapper.1} parent=27 // pred_fallthru
        _
    $region28: #{se3_transformer_wrapper.1} parent=5 // pred_fallthru
      _
    %p237 = scmp.le.s32.totalorder 1, %s12
    %p238 = scmp.lt.s32.totalorder %s12, 3
    %p239 = pnand %p237, %p238
    %p240 = pneg %p239
    // Predicated region
    $region41: #{se3_transformer_wrapper.1} parent=5 // pred_check
      _
    $region42: #{se3_transformer_wrapper.1} parent=5 // pred_check_branch
      %242 = sbr.rel (%p239) target = $region44
    $region43: #{se3_transformer_wrapper.1} parent=5 // pred_region
      %s243 = ssub.s32 %s12, 1
      %s244 = smul.u32 4, %s17
      %p245 = scmp.lt.s32.totalorder %s244, 7
      %s246 = scalar_select %p245, %s244, 7
      %s247 = smul.addr %s246, 4
      %s248 = smul.addr %s247, 8
      %s249 = scalar_lea.vmem %s0, %s248
      %p250 = pneg %p38
      %p251 = pneg %p35
      %s252 = smul.u32 4, %s17
      %p253 = scmp.lt.s32.totalorder %s252, 7
      %s254 = scalar_select %p253, %s252, 7
      %s255 = smul.addr %s254, 4
      %s256 = smul.addr %s255, 4
      %s257 = scalar_lea.vmem %s1, %s256
      %p258 = pneg %p64
      %p259 = pneg %p61
      %s260 = smul.u32 4, %s17
      %p261 = scmp.lt.s32.totalorder %s260, 7
      %s262 = scalar_select %p261, %s260, 7
      %s263 = smul.addr %s262, 4
      %s264 = smul.addr %s263, 8
      %s265 = scalar_lea.vmem %s2, %s264
      %p266 = pneg %p90
      %p267 = pneg %p87
      %p268 = pneg %p111
      %p269 = pneg %p108
      %p270 = pneg %p132
      %p271 = pneg %p129
      %p272 = pneg %p153
      %p273 = pneg %p150
      %p274 = pneg %p179
      %p275 = pneg %p176
      %s276 = smul.u32 4, %s17
      %p277 = scmp.lt.s32.totalorder %s276, 7
      %s278 = scalar_select %p277, %s276, 7
      %s279 = smul.addr %s278, 4
      %s280 = smul.addr %s279, 8
      %s281 = scalar_lea.vmem %s6, %s280
      %s282 = smul.u32 4, %s17
      %p283 = scmp.lt.s32.totalorder %s282, 7
      %s284 = scalar_select %p283, %s282, 7
      %s285 = smul.addr %s284, 4
      %s286 = smul.addr %s285, 8
      %s287 = scalar_lea.vmem %s0, %s286
      %s288 = smul.u32 4, %s17
      %s289 = smul.u32 4, %s17
      %p290 = scmp.lt.s32.totalorder %s289, 7
      %s291 = scalar_select %p290, %s289, 7
      %s292 = smul.addr %s291, 4
      %s293 = smul.addr %s292, 4
      %s294 = scalar_lea.vmem %s1, %s293
      %s295 = smul.u32 4, %s17
      %s296 = smul.u32 4, %s17
      %p297 = scmp.lt.s32.totalorder %s296, 7
      %s298 = scalar_select %p297, %s296, 7
      %s299 = smul.addr %s298, 4
      %s300 = smul.addr %s299, 8
      %s301 = scalar_lea.vmem %s2, %s300
      %s302 = smul.u32 4, %s17
      %s303 = smul.u32 4, %s17
      %p304 = scmp.lt.s32.totalorder %s303, 7
      %s305 = scalar_select %p304, %s303, 7
      %s306 = smul.addr %s305, 4
      %s307 = smul.addr %s306, 8
      %s308 = scalar_lea.vmem %s6, %s307
      %s309 = smul.u32 4, %s17
      %v311 = vld [vmem:[%s287] sm:$0xff]
      %v312 = vld [vmem:[%s287 + $0x8] sm:$0xff]
      %v313 = vld [vmem:[%s287 + $0x10] sm:$0xff]
      %v314 = vld [vmem:[%s287 + $0x18] sm:$0xff]
      %v315 = vld [vmem:[%s287 + $0x20] sm:$0xff]
      %v316 = vld [vmem:[%s287 + $0x28] sm:$0xff]
      %v317 = vld [vmem:[%s287 + $0x30] sm:$0xff]
      %v318 = vld [vmem:[%s287 + $0x38] sm:$0xff]
      %v319 = vld [vmem:[%s287 + $0x40] sm:$0xff]
      %v320 = vld [vmem:[%s287 + $0x48] sm:$0xff]
      %v321 = vld [vmem:[%s287 + $0x50] sm:$0xff]
      %v322 = vld [vmem:[%s287 + $0x58] sm:$0xff]
      %v323 = vld [vmem:[%s287 + $0x60] sm:$0xff]
      %v324 = vld [vmem:[%s287 + $0x68] sm:$0xff]
      %v325 = vld [vmem:[%s287 + $0x70] sm:$0xff]
      %v326 = vld [vmem:[%s287 + $0x78] sm:$0xff]
      %v327 = vld [vmem:[%s301] sm:$0xff]
      %v328 = vld [vmem:[%s301 + $0x8] sm:$0xff]
      %v329 = vld [vmem:[%s301 + $0x10] sm:$0xff]
      %v330 = vld [vmem:[%s301 + $0x18] sm:$0xff]
      %v331 = vld [vmem:[%s301 + $0x20] sm:$0xff]
      %v332 = vld [vmem:[%s301 + $0x28] sm:$0xff]
      %v333 = vld [vmem:[%s301 + $0x30] sm:$0xff]
      %v334 = vld [vmem:[%s301 + $0x38] sm:$0xff]
      %v335 = vld [vmem:[%s301 + $0x40] sm:$0xff]
      %v336 = vld [vmem:[%s301 + $0x48] sm:$0xff]
      %v337 = vld [vmem:[%s301 + $0x50] sm:$0xff]
      %v338 = vld [vmem:[%s301 + $0x58] sm:$0xff]
      %v339 = vld [vmem:[%s301 + $0x60] sm:$0xff]
      %v340 = vld [vmem:[%s301 + $0x68] sm:$0xff]
      %v341 = vld [vmem:[%s301 + $0x70] sm:$0xff]
      %v342 = vld [vmem:[%s301 + $0x78] sm:$0xff]
      %v343 = vld [vmem:[%s294] sm:$0xf]
      %v344 = vld [vmem:[%s294 + $0x4] sm:$0xf]
      %v345 = vld [vmem:[%s294 + $0x8] sm:$0xf]
      %v346 = vld [vmem:[%s294 + $0xc] sm:$0xf]
      %v347 = vld [vmem:[%s294 + $0x10] sm:$0xf]
      %v348 = vld [vmem:[%s294 + $0x14] sm:$0xf]
      %v349 = vld [vmem:[%s294 + $0x18] sm:$0xf]
      %v350 = vld [vmem:[%s294 + $0x1c] sm:$0xf]
      %v351 = vld [vmem:[%s294 + $0x20] sm:$0xf]
      %v352 = vld [vmem:[%s294 + $0x24] sm:$0xf]
      %v353 = vld [vmem:[%s294 + $0x28] sm:$0xf]
      %v354 = vld [vmem:[%s294 + $0x2c] sm:$0xf]
      %v355 = vld [vmem:[%s294 + $0x30] sm:$0xf]
      %v356 = vld [vmem:[%s294 + $0x34] sm:$0xf]
      %v357 = vld [vmem:[%s294 + $0x38] sm:$0xf]
      %v358 = vld [vmem:[%s294 + $0x3c] sm:$0xf]
      %v359 = vunpack.c.l.bf16 %v343
      %v360 = vunpack.c.l.bf16 %v344
      %v361 = vunpack.c.l.bf16 %v345
      %v362 = vunpack.c.l.bf16 %v346
      %v363 = vunpack.c.l.bf16 %v347
      %v364 = vunpack.c.l.bf16 %v348
      %v365 = vunpack.c.l.bf16 %v349
      %v366 = vunpack.c.l.bf16 %v350
      %v367 = vunpack.c.l.bf16 %v351
      %v368 = vunpack.c.l.bf16 %v352
      %v369 = vunpack.c.l.bf16 %v353
      %v370 = vunpack.c.l.bf16 %v354
      %v371 = vunpack.c.l.bf16 %v355
      %v372 = vunpack.c.l.bf16 %v356
      %v373 = vunpack.c.l.bf16 %v357
      %v374 = vunpack.c.l.bf16 %v358
      %v375 = vld [vmem:[%s3] sm:$0xff]
      %v376 = vld [vmem:[%s3 + $0x8] sm:$0xff]
      %v377 = vld [vmem:[%s3 + $0x10] sm:$0xff]
      %v378 = vld [vmem:[%s3 + $0x18] sm:$0xff]
      %v379 = vpack.c.bf16 %v376, %v375
      %v380 = vpack.c.bf16 %v378, %v377
      %v381 = vpack.c.bf16 %v312, %v311
      %v382 = vpack.c.bf16 %v314, %v313
      %v383 = vpack.c.bf16 %v316, %v315
      %v384 = vpack.c.bf16 %v318, %v317
      %v385 = vpack.c.bf16 %v320, %v319
      %v386 = vpack.c.bf16 %v322, %v321
      %v387 = vpack.c.bf16 %v324, %v323
      %v388 = vpack.c.bf16 %v326, %v325
      %vm389 = vcmask 261120
      %v391 = vsel %vm389, %v381, 0
      %v394 = vsel %vm389, %v382, 0
      %v397 = vsel %vm389, %v383, 0
      %v400 = vsel %vm389, %v384, 0
      %v403 = vsel %vm389, %v385, 0
      %v406 = vsel %vm389, %v386, 0
      %v409 = vsel %vm389, %v387, 0
      %v412 = vsel %vm389, %v388, 0
      %414 = vmatprep.subr.bf16.mxu0 0
      %415 = vmatpush1.bf16.msra.mxu0 %v379
      %416 = vmatprep.subr.bf16.mxu0 0
      %417 = vmatpush1.bf16.msra.mxu0 %v380
      %418 = vmatprep.subr.bf16.mxu0 0
      %419 = vmatpush1.bf16.msra.mxu0 0
      %420 = vmatprep.subr.bf16.mxu0 0
      %421 = vmatpush1.bf16.msra.mxu0 0
      %422 = vmatprep.subr.bf16.mxu0 0
      %423 = vmatpush1.bf16.msra.mxu0 0
      %424 = vmatprep.subr.bf16.mxu0 0
      %425 = vmatpush1.bf16.msra.mxu0 0
      %426 = vmatprep.subr.bf16.mxu0 0
      %427 = vmatpush1.bf16.msra.mxu0 0
      %428 = vmatprep.subr.bf16.mxu0 0
      %429 = vmatpush1.bf16.msra.mxu0 0
      %430 = vmatprep.subr.bf16.mxu0 0
      %431 = vmatpush1.bf16.msra.mxu0 0
      %432 = vmatprep.subr.bf16.mxu0 0
      %433 = vmatpush1.bf16.msra.mxu0 0
      %434 = vmatprep.subr.bf16.mxu0 0
      %435 = vmatpush1.bf16.msra.mxu0 0
      %436 = vmatprep.subr.bf16.mxu0 0
      %437 = vmatpush1.bf16.msra.mxu0 0
      %438 = vmatprep.subr.bf16.mxu0 0
      %439 = vmatpush1.bf16.msra.mxu0 0
      %440 = vmatprep.subr.bf16.mxu0 0
      %441 = vmatpush1.bf16.msra.mxu0 0
      %442 = vmatprep.subr.bf16.mxu0 0
      %443 = vmatpush1.bf16.msra.mxu0 0
      %444 = vmatprep.subr.bf16.mxu0 0
      %445 = vmatpush1.bf16.msra.mxu0 0
      %446 = vmatprep.mubr.bf16.mxu0 0
      %447 = vmatmul.mubr.bf16.gmra.mrb[0].mxu0 %v391
      %v448 = vpop.f32.mrb[0].mxu0
      %v449 = vadd.f32 0.0, %v448
      %v450 = vpop.f32.mrb[0].mxu0
      %v451 = vpop.f32.mrb[0].mxu0
      %v452 = vadd.f32 0.0, %v451
      %v453 = vpop.f32.mrb[0].mxu0
      %454 = vmatprep.mubr.bf16.mxu0 0
      %455 = vmatmul.mubr.bf16.gmra.mrb[0].mxu0 %v394
      %v456 = vpop.f32.mrb[0].mxu0
      %v457 = vadd.f32 0.0, %v456
      %v458 = vpop.f32.mrb[0].mxu0
      %v459 = vpop.f32.mrb[0].mxu0
      %v460 = vadd.f32 0.0, %v459
      %v461 = vpop.f32.mrb[0].mxu0
      %462 = vmatprep.mubr.bf16.mxu0 0
      %463 = vmatmul.mubr.bf16.gmra.mrb[0].mxu0 %v397
      %v464 = vpop.f32.mrb[0].mxu0
      %v465 = vadd.f32 0.0, %v464
      %v466 = vpop.f32.mrb[0].mxu0
      %v467 = vpop.f32.mrb[0].mxu0
      %v468 = vadd.f32 0.0, %v467
      %v469 = vpop.f32.mrb[0].mxu0
      %470 = vmatprep.mubr.bf16.mxu0 0
      %471 = vmatmul.mubr.bf16.gmra.mrb[0].mxu0 %v400
      %v472 = vpop.f32.mrb[0].mxu0
      %v473 = vadd.f32 0.0, %v472
      %v474 = vpop.f32.mrb[0].mxu0
      %v475 = vpop.f32.mrb[0].mxu0
      %v476 = vadd.f32 0.0, %v475
      %v477 = vpop.f32.mrb[0].mxu0
      %478 = vmatprep.mubr.bf16.mxu0 0
      %479 = vmatmul.mubr.bf16.gmra.mrb[0].mxu0 %v403
      %v480 = vpop.f32.mrb[0].mxu0
      %v481 = vadd.f32 0.0, %v480
      %v482 = vpop.f32.mrb[0].mxu0
      %v483 = vpop.f32.mrb[0].mxu0
      %v484 = vadd.f32 0.0, %v483
      %v485 = vpop.f32.mrb[0].mxu0
      %486 = vmatprep.mubr.bf16.mxu0 0
      %487 = vmatmul.mubr.bf16.gmra.mrb[0].mxu0 %v406
      %v488 = vpop.f32.mrb[0].mxu0
      %v489 = vadd.f32 0.0, %v488
      %v490 = vpop.f32.mrb[0].mxu0
      %v491 = vpop.f32.mrb[0].mxu0
      %v492 = vadd.f32 0.0, %v491
      %v493 = vpop.f32.mrb[0].mxu0
      %494 = vmatprep.mubr.bf16.mxu0 0
      %495 = vmatmul.mubr.bf16.gmra.mrb[0].mxu0 %v409
      %v496 = vpop.f32.mrb[0].mxu0
      %v497 = vadd.f32 0.0, %v496
      %v498 = vpop.f32.mrb[0].mxu0
      %v499 = vpop.f32.mrb[0].mxu0
      %v500 = vadd.f32 0.0, %v499
      %v501 = vpop.f32.mrb[0].mxu0
      %502 = vmatprep.mubr.bf16.mxu0 0
      %503 = vmatmul.mubr.bf16.gmra.mrb[0].mxu0 %v412
      %v504 = vpop.f32.mrb[0].mxu0
      %v505 = vadd.f32 0.0, %v504
      %v506 = vpop.f32.mrb[0].mxu0
      %v507 = vpop.f32.mrb[0].mxu0
      %v508 = vadd.f32 0.0, %v507
      %v509 = vpop.f32.mrb[0].mxu0
      %510 = vdwg.mxu0
      %v511 = vpack.c.bf16 %v452, %v449
      %v512 = vpack.c.bf16 %v460, %v457
      %v513 = vpack.c.bf16 %v468, %v465
      %v514 = vpack.c.bf16 %v476, %v473
      %v515 = vpack.c.bf16 %v484, %v481
      %v516 = vpack.c.bf16 %v492, %v489
      %v517 = vpack.c.bf16 %v500, %v497
      %v518 = vpack.c.bf16 %v508, %v505
      %521 = vrot.lane.b32.xlu0 %v511, 96
      %v522 = vpop.permute.xlu0 %521
      %523 = vrot.lane.b32.xlu0 %v512, 96
      %v524 = vpop.permute.xlu0 %523
      %v526 = vsel %vm389, %v511, 0
      %v529 = vsel %vm389, %v512, 0
      %v532 = vsel %vm389, %v522, 0
      %v535 = vsel %vm389, %v524, 0
      %537 = vmatprep.subr.bf16.mxu0 0
      %538 = vmatpush1.bf16.xpose.msra.mxu0 %v532
      %539 = vmatprep.subr.bf16.mxu0 0
      %540 = vmatpush1.bf16.xpose.msra.mxu0 %v535
      %541 = vmatprep.subr.bf16.mxu0 0
      %542 = vmatpush1.bf16.xpose.msra.mxu0 0
      %543 = vmatprep.subr.bf16.mxu0 0
      %544 = vmatpush1.bf16.xpose.msra.mxu0 0
      %545 = vmatprep.subr.bf16.mxu0 0
      %546 = vmatpush1.bf16.xpose.msra.mxu0 0
      %547 = vmatprep.subr.bf16.mxu0 0
      %548 = vmatpush1.bf16.xpose.msra.mxu0 0
      %549 = vmatprep.subr.bf16.mxu0 0
      %550 = vmatpush1.bf16.xpose.msra.mxu0 0
      %551 = vmatprep.subr.bf16.mxu0 0
      %552 = vmatpush1.bf16.xpose.msra.mxu0 0
      %553 = vmatprep.subr.bf16.mxu0 0
      %554 = vmatpush1.bf16.xpose.msra.mxu0 0
      %555 = vmatprep.subr.bf16.mxu0 0
      %556 = vmatpush1.bf16.xpose.msra.mxu0 0
      %557 = vmatprep.subr.bf16.mxu0 0
      %558 = vmatpush1.bf16.xpose.msra.mxu0 0
      %559 = vmatprep.subr.bf16.mxu0 0
      %560 = vmatpush1.bf16.xpose.msra.mxu0 0
      %561 = vmatprep.subr.bf16.mxu0 0
      %562 = vmatpush1.bf16.xpose.msra.mxu0 0
      %563 = vmatprep.subr.bf16.mxu0 0
      %564 = vmatpush1.bf16.xpose.msra.mxu0 0
      %565 = vmatprep.subr.bf16.mxu0 0
      %566 = vmatpush1.bf16.xpose.msra.mxu0 0
      %567 = vmatprep.subr.bf16.mxu0 0
      %568 = vmatpush1.bf16.xpose.msra.mxu0 0
      %569 = vmatprep.mubr.bf16.mxu0 0
      %570 = vmatmul.mubr.bf16.gmra.mrb[0].mxu0 %v526
      %v571 = vpop.f32.mrb[0].mxu0
      %v572 = vadd.f32 0.0, %v571
      %v573 = vpop.f32.mrb[0].mxu0
      %v574 = vpop.f32.mrb[0].mxu0
      %v575 = vadd.f32 0.0, %v574
      %v576 = vpop.f32.mrb[0].mxu0
      %577 = vmatprep.mubr.bf16.mxu0 0
      %578 = vmatmul.mubr.bf16.gmra.mrb[0].mxu0 %v529
      %v579 = vpop.f32.mrb[0].mxu0
      %v580 = vadd.f32 0.0, %v579
      %v581 = vpop.f32.mrb[0].mxu0
      %v582 = vpop.f32.mrb[0].mxu0
      %v583 = vadd.f32 0.0, %v582
      %v584 = vpop.f32.mrb[0].mxu0
      %585 = vdwg.mxu0
      %588 = vrot.lane.b32.xlu0 %v513, 96
      %v589 = vpop.permute.xlu0 %588
      %590 = vrot.lane.b32.xlu0 %v514, 96
      %v591 = vpop.permute.xlu0 %590
      %v593 = vsel %vm389, %v513, 0
      %v596 = vsel %vm389, %v514, 0
      %v599 = vsel %vm389, %v589, 0
      %v602 = vsel %vm389, %v591, 0
      %604 = vmatprep.subr.bf16.mxu0 0
      %605 = vmatpush1.bf16.xpose.msra.mxu0 %v599
      %606 = vmatprep.subr.bf16.mxu0 0
      %607 = vmatpush1.bf16.xpose.msra.mxu0 %v602
      %608 = vmatprep.subr.bf16.mxu0 0
      %609 = vmatpush1.bf16.xpose.msra.mxu0 0
      %610 = vmatprep.subr.bf16.mxu0 0
      %611 = vmatpush1.bf16.xpose.msra.mxu0 0
      %612 = vmatprep.subr.bf16.mxu0 0
      %613 = vmatpush1.bf16.xpose.msra.mxu0 0
      %614 = vmatprep.subr.bf16.mxu0 0
      %615 = vmatpush1.bf16.xpose.msra.mxu0 0
      %616 = vmatprep.subr.bf16.mxu0 0
      %617 = vmatpush1.bf16.xpose.msra.mxu0 0
      %618 = vmatprep.subr.bf16.mxu0 0
      %619 = vmatpush1.bf16.xpose.msra.mxu0 0
      %620 = vmatprep.subr.bf16.mxu0 0
      %621 = vmatpush1.bf16.xpose.msra.mxu0 0
      %622 = vmatprep.subr.bf16.mxu0 0
      %623 = vmatpush1.bf16.xpose.msra.mxu0 0
      %624 = vmatprep.subr.bf16.mxu0 0
      %625 = vmatpush1.bf16.xpose.msra.mxu0 0
      %626 = vmatprep.subr.bf16.mxu0 0
      %627 = vmatpush1.bf16.xpose.msra.mxu0 0
      %628 = vmatprep.subr.bf16.mxu0 0
      %629 = vmatpush1.bf16.xpose.msra.mxu0 0
      %630 = vmatprep.subr.bf16.mxu0 0
      %631 = vmatpush1.bf16.xpose.msra.mxu0 0
      %632 = vmatprep.subr.bf16.mxu0 0
      %633 = vmatpush1.bf16.xpose.msra.mxu0 0
      %634 = vmatprep.subr.bf16.mxu0 0
      %635 = vmatpush1.bf16.xpose.msra.mxu0 0
      %636 = vmatprep.mubr.bf16.mxu0 0
      %637 = vmatmul.mubr.bf16.gmra.mrb[0].mxu0 %v593
      %v638 = vpop.f32.mrb[0].mxu0
      %v639 = vadd.f32 0.0, %v638
      %v640 = vpop.f32.mrb[0].mxu0
      %v641 = vpop.f32.mrb[0].mxu0
      %v642 = vadd.f32 0.0, %v641
      %v643 = vpop.f32.mrb[0].mxu0
      %644 = vmatprep.mubr.bf16.mxu0 0
      %645 = vmatmul.mubr.bf16.gmra.mrb[0].mxu0 %v596
      %v646 = vpop.f32.mrb[0].mxu0
      %v647 = vadd.f32 0.0, %v646
      %v648 = vpop.f32.mrb[0].mxu0
      %v649 = vpop.f32.mrb[0].mxu0
      %v650 = vadd.f32 0.0, %v649
      %v651 = vpop.f32.mrb[0].mxu0
      %652 = vdwg.mxu0
      %655 = vrot.lane.b32.xlu0 %v515, 96
      %v656 = vpop.permute.xlu0 %655
      %657 = vrot.lane.b32.xlu0 %v516, 96
      %v658 = vpop.permute.xlu0 %657
      %v660 = vsel %vm389, %v515, 0
      %v663 = vsel %vm389, %v516, 0
      %v666 = vsel %vm389, %v656, 0
      %v669 = vsel %vm389, %v658, 0
      %671 = vmatprep.subr.bf16.mxu0 0
      %672 = vmatpush1.bf16.xpose.msra.mxu0 %v666
      %673 = vmatprep.subr.bf16.mxu0 0
      %674 = vmatpush1.bf16.xpose.msra.mxu0 %v669
      %675 = vmatprep.subr.bf16.mxu0 0
      %676 = vmatpush1.bf16.xpose.msra.mxu0 0
      %677 = vmatprep.subr.bf16.mxu0 0
      %678 = vmatpush1.bf16.xpose.msra.mxu0 0
      %679 = vmatprep.subr.bf16.mxu0 0
      %680 = vmatpush1.bf16.xpose.msra.mxu0 0
      %681 = vmatprep.subr.bf16.mxu0 0
      %682 = vmatpush1.bf16.xpose.msra.mxu0 0
      %683 = vmatprep.subr.bf16.mxu0 0
      %684 = vmatpush1.bf16.xpose.msra.mxu0 0
      %685 = vmatprep.subr.bf16.mxu0 0
      %686 = vmatpush1.bf16.xpose.msra.mxu0 0
      %687 = vmatprep.subr.bf16.mxu0 0
      %688 = vmatpush1.bf16.xpose.msra.mxu0 0
      %689 = vmatprep.subr.bf16.mxu0 0
      %690 = vmatpush1.bf16.xpose.msra.mxu0 0
      %691 = vmatprep.subr.bf16.mxu0 0
      %692 = vmatpush1.bf16.xpose.msra.mxu0 0
      %693 = vmatprep.subr.bf16.mxu0 0
      %694 = vmatpush1.bf16.xpose.msra.mxu0 0
      %695 = vmatprep.subr.bf16.mxu0 0
      %696 = vmatpush1.bf16.xpose.msra.mxu0 0
      %697 = vmatprep.subr.bf16.mxu0 0
      %698 = vmatpush1.bf16.xpose.msra.mxu0 0
      %699 = vmatprep.subr.bf16.mxu0 0
      %700 = vmatpush1.bf16.xpose.msra.mxu0 0
      %701 = vmatprep.subr.bf16.mxu0 0
      %702 = vmatpush1.bf16.xpose.msra.mxu0 0
      %703 = vmatprep.mubr.bf16.mxu0 0
      %704 = vmatmul.mubr.bf16.gmra.mrb[0].mxu0 %v660
      %v705 = vpop.f32.mrb[0].mxu0
      %v706 = vadd.f32 0.0, %v705
      %v707 = vpop.f32.mrb[0].mxu0
      %v708 = vpop.f32.mrb[0].mxu0
      %v709 = vadd.f32 0.0, %v708
      %v710 = vpop.f32.mrb[0].mxu0
      %711 = vmatprep.mubr.bf16.mxu0 0
      %712 = vmatmul.mubr.bf16.gmra.mrb[0].mxu0 %v663
      %v713 = vpop.f32.mrb[0].mxu0
      %v714 = vadd.f32 0.0, %v713
      %v715 = vpop.f32.mrb[0].mxu0
      %v716 = vpop.f32.mrb[0].mxu0
      %v717 = vadd.f32 0.0, %v716
      %v718 = vpop.f32.mrb[0].mxu0
      %719 = vdwg.mxu0
      %722 = vrot.lane.b32.xlu0 %v517, 96
      %v723 = vpop.permute.xlu0 %722
      %724 = vrot.lane.b32.xlu0 %v518, 96
      %v725 = vpop.permute.xlu0 %724
      %v727 = vsel %vm389, %v517, 0
      %v730 = vsel %vm389, %v518, 0
      %v733 = vsel %vm389, %v723, 0
      %v736 = vsel %vm389, %v725, 0
      %738 = vmatprep.subr.bf16.mxu0 0
      %739 = vmatpush1.bf16.xpose.msra.mxu0 %v733
      %740 = vmatprep.subr.bf16.mxu0 0
      %741 = vmatpush1.bf16.xpose.msra.mxu0 %v736
      %742 = vmatprep.subr.bf16.mxu0 0
      %743 = vmatpush1.bf16.xpose.msra.mxu0 0
      %744 = vmatprep.subr.bf16.mxu0 0
      %745 = vmatpush1.bf16.xpose.msra.mxu0 0
      %746 = vmatprep.subr.bf16.mxu0 0
      %747 = vmatpush1.bf16.xpose.msra.mxu0 0
      %748 = vmatprep.subr.bf16.mxu0 0
      %749 = vmatpush1.bf16.xpose.msra.mxu0 0
      %750 = vmatprep.subr.bf16.mxu0 0
      %751 = vmatpush1.bf16.xpose.msra.mxu0 0
      %752 = vmatprep.subr.bf16.mxu0 0
      %753 = vmatpush1.bf16.xpose.msra.mxu0 0
      %754 = vmatprep.subr.bf16.mxu0 0
      %755 = vmatpush1.bf16.xpose.msra.mxu0 0
      %756 = vmatprep.subr.bf16.mxu0 0
      %757 = vmatpush1.bf16.xpose.msra.mxu0 0
      %758 = vmatprep.subr.bf16.mxu0 0
      %759 = vmatpush1.bf16.xpose.msra.mxu0 0
      %760 = vmatprep.subr.bf16.mxu0 0
      %761 = vmatpush1.bf16.xpose.msra.mxu0 0
      %762 = vmatprep.subr.bf16.mxu0 0
      %763 = vmatpush1.bf16.xpose.msra.mxu0 0
      %764 = vmatprep.subr.bf16.mxu0 0
      %765 = vmatpush1.bf16.xpose.msra.mxu0 0
      %766 = vmatprep.subr.bf16.mxu0 0
      %767 = vmatpush1.bf16.xpose.msra.mxu0 0
      %768 = vmatprep.subr.bf16.mxu0 0
      %769 = vmatpush1.bf16.xpose.msra.mxu0 0
      %770 = vmatprep.mubr.bf16.mxu0 0
      %771 = vmatmul.mubr.bf16.gmra.mrb[0].mxu0 %v727
      %v772 = vpop.f32.mrb[0].mxu0
      %v773 = vadd.f32 0.0, %v772
      %v774 = vpop.f32.mrb[0].mxu0
      %v775 = vpop.f32.mrb[0].mxu0
      %v776 = vadd.f32 0.0, %v775
      %v777 = vpop.f32.mrb[0].mxu0
      %778 = vmatprep.mubr.bf16.mxu0 0
      %779 = vmatmul.mubr.bf16.gmra.mrb[0].mxu0 %v730
      %v780 = vpop.f32.mrb[0].mxu0
      %v781 = vadd.f32 0.0, %v780
      %v782 = vpop.f32.mrb[0].mxu0
      %v783 = vpop.f32.mrb[0].mxu0
      %v784 = vadd.f32 0.0, %v783
      %v785 = vpop.f32.mrb[0].mxu0
      %786 = vdwg.mxu0
      %v787 = vmul.f32 %v572, 0.17677669
      %v788 = vmul.f32 %v575, 0.17677669
      %v789 = vmul.f32 %v580, 0.17677669
      %v790 = vmul.f32 %v583, 0.17677669
      %v791 = vmul.f32 %v639, 0.17677669
      %v792 = vmul.f32 %v642, 0.17677669
      %v793 = vmul.f32 %v647, 0.17677669
      %v794 = vmul.f32 %v650, 0.17677669
      %v795 = vmul.f32 %v706, 0.17677669
      %v796 = vmul.f32 %v709, 0.17677669
      %v797 = vmul.f32 %v714, 0.17677669
      %v798 = vmul.f32 %v717, 0.17677669
      %v799 = vmul.f32 %v773, 0.17677669
      %v800 = vmul.f32 %v776, 0.17677669
      %v801 = vmul.f32 %v781, 0.17677669
      %v802 = vmul.f32 %v784, 0.17677669
      %v803 = vadd.f32 %v787, %v359
      %v804 = vadd.f32 %v788, %v360
      %v805 = vadd.f32 %v789, %v361
      %v806 = vadd.f32 %v790, %v362
      %v807 = vadd.f32 %v791, %v363
      %v808 = vadd.f32 %v792, %v364
      %v809 = vadd.f32 %v793, %v365
      %v810 = vadd.f32 %v794, %v366
      %v811 = vadd.f32 %v795, %v367
      %v812 = vadd.f32 %v796, %v368
      %v813 = vadd.f32 %v797, %v369
      %v814 = vadd.f32 %v798, %v370
      %v815 = vadd.f32 %v799, %v371
      %v816 = vadd.f32 %v800, %v372
      %v817 = vadd.f32 %v801, %v373
      %v818 = vadd.f32 %v802, %v374
      %v819 = vsel %vm389, %v803, -inf
      %820 = vmax.xlane.f32.xlu0 %v819
      %v821 = vpop.xlane.xlu0 %820
      %v822 = vsel %vm389, %v804, -inf
      %823 = vmax.xlane.f32.xlu0 %v822
      %v824 = vpop.xlane.xlu0 %823
      %v825 = vsel %vm389, %v805, -inf
      %826 = vmax.xlane.f32.xlu0 %v825
      %v827 = vpop.xlane.xlu0 %826
      %v828 = vsel %vm389, %v806, -inf
      %829 = vmax.xlane.f32.xlu0 %v828
      %v830 = vpop.xlane.xlu0 %829
      %v831 = vsel %vm389, %v807, -inf
      %832 = vmax.xlane.f32.xlu0 %v831
      %v833 = vpop.xlane.xlu0 %832
      %v834 = vsel %vm389, %v808, -inf
      %835 = vmax.xlane.f32.xlu0 %v834
      %v836 = vpop.xlane.xlu0 %835
      %v837 = vsel %vm389, %v809, -inf
      %838 = vmax.xlane.f32.xlu0 %v837
      %v839 = vpop.xlane.xlu0 %838
      %v840 = vsel %vm389, %v810, -inf
      %841 = vmax.xlane.f32.xlu0 %v840
      %v842 = vpop.xlane.xlu0 %841
      %v843 = vsel %vm389, %v811, -inf
      %844 = vmax.xlane.f32.xlu0 %v843
      %v845 = vpop.xlane.xlu0 %844
      %v846 = vsel %vm389, %v812, -inf
      %847 = vmax.xlane.f32.xlu0 %v846
      %v848 = vpop.xlane.xlu0 %847
      %v849 = vsel %vm389, %v813, -inf
      %850 = vmax.xlane.f32.xlu0 %v849
      %v851 = vpop.xlane.xlu0 %850
      %v852 = vsel %vm389, %v814, -inf
      %853 = vmax.xlane.f32.xlu0 %v852
      %v854 = vpop.xlane.xlu0 %853
      %v855 = vsel %vm389, %v815, -inf
      %856 = vmax.xlane.f32.xlu0 %v855
      %v857 = vpop.xlane.xlu0 %856
      %v858 = vsel %vm389, %v816, -inf
      %859 = vmax.xlane.f32.xlu0 %v858
      %v860 = vpop.xlane.xlu0 %859
      %v861 = vsel %vm389, %v817, -inf
      %862 = vmax.xlane.f32.xlu0 %v861
      %v863 = vpop.xlane.xlu0 %862
      %v864 = vsel %vm389, %v818, -inf
      %865 = vmax.xlane.f32.xlu0 %v864
      %v866 = vpop.xlane.xlu0 %865
      %v867 = vsub.f32 %v803, %v821
      %v868 = vsub.f32 %v804, %v824
      %v869 = vsub.f32 %v805, %v827
      %v870 = vsub.f32 %v806, %v830
      %v871 = vsub.f32 %v807, %v833
      %v872 = vsub.f32 %v808, %v836
      %v873 = vsub.f32 %v809, %v839
      %v874 = vsub.f32 %v810, %v842
      %v875 = vsub.f32 %v811, %v845
      %v876 = vsub.f32 %v812, %v848
      %v877 = vsub.f32 %v813, %v851
      %v878 = vsub.f32 %v814, %v854
      %v879 = vsub.f32 %v815, %v857
      %v880 = vsub.f32 %v816, %v860
      %v881 = vsub.f32 %v817, %v863
      %v882 = vsub.f32 %v818, %v866
      %v883 = vmul.f32 %v867, 1.442695
      %v884 = vpow.pop %v883
      %v885 = vmul.f32 %v868, 1.442695
      %v886 = vpow.pop %v885
      %v887 = vmul.f32 %v869, 1.442695
      %v888 = vpow.pop %v887
      %v889 = vmul.f32 %v870, 1.442695
      %v890 = vpow.pop %v889
      %v891 = vmul.f32 %v871, 1.442695
      %v892 = vpow.pop %v891
      %v893 = vmul.f32 %v872, 1.442695
      %v894 = vpow.pop %v893
      %v895 = vmul.f32 %v873, 1.442695
      %v896 = vpow.pop %v895
      %v897 = vmul.f32 %v874, 1.442695
      %v898 = vpow.pop %v897
      %v899 = vmul.f32 %v875, 1.442695
      %v900 = vpow.pop %v899
      %v901 = vmul.f32 %v876, 1.442695
      %v902 = vpow.pop %v901
      %v903 = vmul.f32 %v877, 1.442695
      %v904 = vpow.pop %v903
      %v905 = vmul.f32 %v878, 1.442695
      %v906 = vpow.pop %v905
      %v907 = vmul.f32 %v879, 1.442695
      %v908 = vpow.pop %v907
      %v909 = vmul.f32 %v880, 1.442695
      %v910 = vpow.pop %v909
      %v911 = vmul.f32 %v881, 1.442695
      %v912 = vpow.pop %v911
      %v913 = vmul.f32 %v882, 1.442695
      %v914 = vpow.pop %v913
      %v915 = vsel %vm389, %v884, 0.0
      %916 = vadd.xlane.f32.xlu0 %v915
      %v917 = vpop.xlane.xlu0 %916
      %v918 = vsel %vm389, %v886, 0.0
      %919 = vadd.xlane.f32.xlu0 %v918
      %v920 = vpop.xlane.xlu0 %919
      %v921 = vsel %vm389, %v888, 0.0
      %922 = vadd.xlane.f32.xlu0 %v921
      %v923 = vpop.xlane.xlu0 %922
      %v924 = vsel %vm389, %v890, 0.0
      %925 = vadd.xlane.f32.xlu0 %v924
      %v926 = vpop.xlane.xlu0 %925
      %v927 = vsel %vm389, %v892, 0.0
      %928 = vadd.xlane.f32.xlu0 %v927
      %v929 = vpop.xlane.xlu0 %928
      %v930 = vsel %vm389, %v894, 0.0
      %931 = vadd.xlane.f32.xlu0 %v930
      %v932 = vpop.xlane.xlu0 %931
      %v933 = vsel %vm389, %v896, 0.0
      %934 = vadd.xlane.f32.xlu0 %v933
      %v935 = vpop.xlane.xlu0 %934
      %v936 = vsel %vm389, %v898, 0.0
      %937 = vadd.xlane.f32.xlu0 %v936
      %v938 = vpop.xlane.xlu0 %937
      %v939 = vsel %vm389, %v900, 0.0
      %940 = vadd.xlane.f32.xlu0 %v939
      %v941 = vpop.xlane.xlu0 %940
      %v942 = vsel %vm389, %v902, 0.0
      %943 = vadd.xlane.f32.xlu0 %v942
      %v944 = vpop.xlane.xlu0 %943
      %v945 = vsel %vm389, %v904, 0.0
      %946 = vadd.xlane.f32.xlu0 %v945
      %v947 = vpop.xlane.xlu0 %946
      %v948 = vsel %vm389, %v906, 0.0
      %949 = vadd.xlane.f32.xlu0 %v948
      %v950 = vpop.xlane.xlu0 %949
      %v951 = vsel %vm389, %v908, 0.0
      %952 = vadd.xlane.f32.xlu0 %v951
      %v953 = vpop.xlane.xlu0 %952
      %v954 = vsel %vm389, %v910, 0.0
      %955 = vadd.xlane.f32.xlu0 %v954
      %v956 = vpop.xlane.xlu0 %955
      %v957 = vsel %vm389, %v912, 0.0
      %958 = vadd.xlane.f32.xlu0 %v957
      %v959 = vpop.xlane.xlu0 %958
      %v960 = vsel %vm389, %v914, 0.0
      %961 = vadd.xlane.f32.xlu0 %v960
      %v962 = vpop.xlane.xlu0 %961
      %v963 = vrcp.pop %v917
      %v964 = vrcp.pop %v920
      %v965 = vrcp.pop %v923
      %v966 = vrcp.pop %v926
      %v967 = vrcp.pop %v929
      %v968 = vrcp.pop %v932
      %v969 = vrcp.pop %v935
      %v970 = vrcp.pop %v938
      %v971 = vrcp.pop %v941
      %v972 = vrcp.pop %v944
      %v973 = vrcp.pop %v947
      %v974 = vrcp.pop %v950
      %v975 = vrcp.pop %v953
      %v976 = vrcp.pop %v956
      %v977 = vrcp.pop %v959
      %v978 = vrcp.pop %v962
      %v979 = vmul.f32 %v884, %v963
      %v980 = vmul.f32 %v886, %v964
      %v981 = vmul.f32 %v888, %v965
      %v982 = vmul.f32 %v890, %v966
      %v983 = vmul.f32 %v892, %v967
      %v984 = vmul.f32 %v894, %v968
      %v985 = vmul.f32 %v896, %v969
      %v986 = vmul.f32 %v898, %v970
      %v987 = vmul.f32 %v900, %v971
      %v988 = vmul.f32 %v902, %v972
      %v989 = vmul.f32 %v904, %v973
      %v990 = vmul.f32 %v906, %v974
      %v991 = vmul.f32 %v908, %v975
      %v992 = vmul.f32 %v910, %v976
      %v993 = vmul.f32 %v912, %v977
      %v994 = vmul.f32 %v914, %v978
      %v995 = vpack.c.bf16 %v980, %v979
      %v996 = vpack.c.bf16 %v982, %v981
      %v997 = vpack.c.bf16 %v984, %v983
      %v998 = vpack.c.bf16 %v986, %v985
      %v999 = vpack.c.bf16 %v988, %v987
      %v1000 = vpack.c.bf16 %v990, %v989
      %v1001 = vpack.c.bf16 %v992, %v991
      %v1002 = vpack.c.bf16 %v994, %v993
      %1003 = vrot.lane.b32.xlu0 %v511, 64
      %v1004 = vpop.permute.xlu0 %1003
      %1005 = vrot.lane.b32.xlu0 %v512, 64
      %v1006 = vpop.permute.xlu0 %1005
      %v1010 = vsel %vm389, %v995, 0
      %v1013 = vsel %vm389, %v996, 0
      %1015 = vmatprep.subr.bf16.mxu0 0
      %1016 = vmatpush1.bf16.msra.mxu0 %v1004
      %1017 = vmatprep.subr.bf16.mxu0 0
      %1018 = vmatpush1.bf16.msra.mxu0 %v1006
      %1019 = vmatprep.subr.bf16.mxu0 0
      %1020 = vmatpush1.bf16.msra.mxu0 0
      %1021 = vmatprep.subr.bf16.mxu0 0
      %1022 = vmatpush1.bf16.msra.mxu0 0
      %1023 = vmatprep.subr.bf16.mxu0 0
      %1024 = vmatpush1.bf16.msra.mxu0 0
      %1025 = vmatprep.subr.bf16.mxu0 0
      %1026 = vmatpush1.bf16.msra.mxu0 0
      %1027 = vmatprep.subr.bf16.mxu0 0
      %1028 = vmatpush1.bf16.msra.mxu0 0
      %1029 = vmatprep.subr.bf16.mxu0 0
      %1030 = vmatpush1.bf16.msra.mxu0 0
      %1031 = vmatprep.subr.bf16.mxu0 0
      %1032 = vmatpush1.bf16.msra.mxu0 0
      %1033 = vmatprep.subr.bf16.mxu0 0
      %1034 = vmatpush1.bf16.msra.mxu0 0
      %1035 = vmatprep.subr.bf16.mxu0 0
      %1036 = vmatpush1.bf16.msra.mxu0 0
      %1037 = vmatprep.subr.bf16.mxu0 0
      %1038 = vmatpush1.bf16.msra.mxu0 0
      %1039 = vmatprep.subr.bf16.mxu0 0
      %1040 = vmatpush1.bf16.msra.mxu0 0
      %1041 = vmatprep.subr.bf16.mxu0 0
      %1042 = vmatpush1.bf16.msra.mxu0 0
      %1043 = vmatprep.subr.bf16.mxu0 0
      %1044 = vmatpush1.bf16.msra.mxu0 0
      %1045 = vmatprep.subr.bf16.mxu0 0
      %1046 = vmatpush1.bf16.msra.mxu0 0
      %1047 = vmatprep.mubr.bf16.mxu0 0
      %1048 = vmatmul.mubr.bf16.gmra.mrb[0].mxu0 %v1010
      %v1049 = vpop.f32.mrb[0].mxu0
      %v1050 = vadd.f32 0.0, %v1049
      %v1051 = vpop.f32.mrb[0].mxu0
      %v1052 = vpop.f32.mrb[0].mxu0
      %v1053 = vadd.f32 0.0, %v1052
      %v1054 = vpop.f32.mrb[0].mxu0
      %1055 = vmatprep.mubr.bf16.mxu0 0
      %1056 = vmatmul.mubr.bf16.gmra.mrb[0].mxu0 %v1013
      %v1057 = vpop.f32.mrb[0].mxu0
      %v1058 = vadd.f32 0.0, %v1057
      %v1059 = vpop.f32.mrb[0].mxu0
      %v1060 = vpop.f32.mrb[0].mxu0
      %v1061 = vadd.f32 0.0, %v1060
      %v1062 = vpop.f32.mrb[0].mxu0
      %1063 = vdwg.mxu0
      %1064 = vrot.lane.b32.xlu0 %v513, 64
      %v1065 = vpop.permute.xlu0 %1064
      %1066 = vrot.lane.b32.xlu0 %v514, 64
      %v1067 = vpop.permute.xlu0 %1066
      %v1071 = vsel %vm389, %v997, 0
      %v1074 = vsel %vm389, %v998, 0
      %1076 = vmatprep.subr.bf16.mxu0 0
      %1077 = vmatpush1.bf16.msra.mxu0 %v1065
      %1078 = vmatprep.subr.bf16.mxu0 0
      %1079 = vmatpush1.bf16.msra.mxu0 %v1067
      %1080 = vmatprep.subr.bf16.mxu0 0
      %1081 = vmatpush1.bf16.msra.mxu0 0
      %1082 = vmatprep.subr.bf16.mxu0 0
      %1083 = vmatpush1.bf16.msra.mxu0 0
      %1084 = vmatprep.subr.bf16.mxu0 0
      %1085 = vmatpush1.bf16.msra.mxu0 0
      %1086 = vmatprep.subr.bf16.mxu0 0
      %1087 = vmatpush1.bf16.msra.mxu0 0
      %1088 = vmatprep.subr.bf16.mxu0 0
      %1089 = vmatpush1.bf16.msra.mxu0 0
      %1090 = vmatprep.subr.bf16.mxu0 0
      %1091 = vmatpush1.bf16.msra.mxu0 0
      %1092 = vmatprep.subr.bf16.mxu0 0
      %1093 = vmatpush1.bf16.msra.mxu0 0
      %1094 = vmatprep.subr.bf16.mxu0 0
      %1095 = vmatpush1.bf16.msra.mxu0 0
      %1096 = vmatprep.subr.bf16.mxu0 0
      %1097 = vmatpush1.bf16.msra.mxu0 0
      %1098 = vmatprep.subr.bf16.mxu0 0
      %1099 = vmatpush1.bf16.msra.mxu0 0
      %1100 = vmatprep.subr.bf16.mxu0 0
      %1101 = vmatpush1.bf16.msra.mxu0 0
      %1102 = vmatprep.subr.bf16.mxu0 0
      %1103 = vmatpush1.bf16.msra.mxu0 0
      %1104 = vmatprep.subr.bf16.mxu0 0
      %1105 = vmatpush1.bf16.msra.mxu0 0
      %1106 = vmatprep.subr.bf16.mxu0 0
      %1107 = vmatpush1.bf16.msra.mxu0 0
      %1108 = vmatprep.mubr.bf16.mxu0 0
      %1109 = vmatmul.mubr.bf16.gmra.mrb[0].mxu0 %v1071
      %v1110 = vpop.f32.mrb[0].mxu0
      %v1111 = vadd.f32 0.0, %v1110
      %v1112 = vpop.f32.mrb[0].mxu0
      %v1113 = vpop.f32.mrb[0].mxu0
      %v1114 = vadd.f32 0.0, %v1113
      %v1115 = vpop.f32.mrb[0].mxu0
      %1116 = vmatprep.mubr.bf16.mxu0 0
      %1117 = vmatmul.mubr.bf16.gmra.mrb[0].mxu0 %v1074
      %v1118 = vpop.f32.mrb[0].mxu0
      %v1119 = vadd.f32 0.0, %v1118
      %v1120 = vpop.f32.mrb[0].mxu0
      %v1121 = vpop.f32.mrb[0].mxu0
      %v1122 = vadd.f32 0.0, %v1121
      %v1123 = vpop.f32.mrb[0].mxu0
      %1124 = vdwg.mxu0
      %1125 = vrot.lane.b32.xlu0 %v515, 64
      %v1126 = vpop.permute.xlu0 %1125
      %1127 = vrot.lane.b32.xlu0 %v516, 64
      %v1128 = vpop.permute.xlu0 %1127
      %v1132 = vsel %vm389, %v999, 0
      %v1135 = vsel %vm389, %v1000, 0
      %1137 = vmatprep.subr.bf16.mxu0 0
      %1138 = vmatpush1.bf16.msra.mxu0 %v1126
      %1139 = vmatprep.subr.bf16.mxu0 0
      %1140 = vmatpush1.bf16.msra.mxu0 %v1128
      %1141 = vmatprep.subr.bf16.mxu0 0
      %1142 = vmatpush1.bf16.msra.mxu0 0
      %1143 = vmatprep.subr.bf16.mxu0 0
      %1144 = vmatpush1.bf16.msra.mxu0 0
      %1145 = vmatprep.subr.bf16.mxu0 0
      %1146 = vmatpush1.bf16.msra.mxu0 0
      %1147 = vmatprep.subr.bf16.mxu0 0
      %1148 = vmatpush1.bf16.msra.mxu0 0
      %1149 = vmatprep.subr.bf16.mxu0 0
      %1150 = vmatpush1.bf16.msra.mxu0 0
      %1151 = vmatprep.subr.bf16.mxu0 0
      %1152 = vmatpush1.bf16.msra.mxu0 0
      %1153 = vmatprep.subr.bf16.mxu0 0
      %1154 = vmatpush1.bf16.msra.mxu0 0
      %1155 = vmatprep.subr.bf16.mxu0 0
      %1156 = vmatpush1.bf16.msra.mxu0 0
      %1157 = vmatprep.subr.bf16.mxu0 0
      %1158 = vmatpush1.bf16.msra.mxu0 0
      %1159 = vmatprep.subr.bf16.mxu0 0
      %1160 = vmatpush1.bf16.msra.mxu0 0
      %1161 = vmatprep.subr.bf16.mxu0 0
      %1162 = vmatpush1.bf16.msra.mxu0 0
      %1163 = vmatprep.subr.bf16.mxu0 0
      %1164 = vmatpush1.bf16.msra.mxu0 0
      %1165 = vmatprep.subr.bf16.mxu0 0
      %1166 = vmatpush1.bf16.msra.mxu0 0
      %1167 = vmatprep.subr.bf16.mxu0 0
      %1168 = vmatpush1.bf16.msra.mxu0 0
      %1169 = vmatprep.mubr.bf16.mxu0 0
      %1170 = vmatmul.mubr.bf16.gmra.mrb[0].mxu0 %v1132
      %v1171 = vpop.f32.mrb[0].mxu0
      %v1172 = vadd.f32 0.0, %v1171
      %v1173 = vpop.f32.mrb[0].mxu0
      %v1174 = vpop.f32.mrb[0].mxu0
      %v1175 = vadd.f32 0.0, %v1174
      %v1176 = vpop.f32.mrb[0].mxu0
      %1177 = vmatprep.mubr.bf16.mxu0 0
      %1178 = vmatmul.mubr.bf16.gmra.mrb[0].mxu0 %v1135
      %v1179 = vpop.f32.mrb[0].mxu0
      %v1180 = vadd.f32 0.0, %v1179
      %v1181 = vpop.f32.mrb[0].mxu0
      %v1182 = vpop.f32.mrb[0].mxu0
      %v1183 = vadd.f32 0.0, %v1182
      %v1184 = vpop.f32.mrb[0].mxu0
      %1185 = vdwg.mxu0
      %1186 = vrot.lane.b32.xlu0 %v517, 64
      %v1187 = vpop.permute.xlu0 %1186
      %1188 = vrot.lane.b32.xlu0 %v518, 64
      %v1189 = vpop.permute.xlu0 %1188
      %v1193 = vsel %vm389, %v1001, 0
      %v1196 = vsel %vm389, %v1002, 0
      %1198 = vmatprep.subr.bf16.mxu0 0
      %1199 = vmatpush1.bf16.msra.mxu0 %v1187
      %1200 = vmatprep.subr.bf16.mxu0 0
      %1201 = vmatpush1.bf16.msra.mxu0 %v1189
      %1202 = vmatprep.subr.bf16.mxu0 0
      %1203 = vmatpush1.bf16.msra.mxu0 0
      %1204 = vmatprep.subr.bf16.mxu0 0
      %1205 = vmatpush1.bf16.msra.mxu0 0
      %1206 = vmatprep.subr.bf16.mxu0 0
      %1207 = vmatpush1.bf16.msra.mxu0 0
      %1208 = vmatprep.subr.bf16.mxu0 0
      %1209 = vmatpush1.bf16.msra.mxu0 0
      %1210 = vmatprep.subr.bf16.mxu0 0
      %1211 = vmatpush1.bf16.msra.mxu0 0
      %1212 = vmatprep.subr.bf16.mxu0 0
      %1213 = vmatpush1.bf16.msra.mxu0 0
      %1214 = vmatprep.subr.bf16.mxu0 0
      %1215 = vmatpush1.bf16.msra.mxu0 0
      %1216 = vmatprep.subr.bf16.mxu0 0
      %1217 = vmatpush1.bf16.msra.mxu0 0
      %1218 = vmatprep.subr.bf16.mxu0 0
      %1219 = vmatpush1.bf16.msra.mxu0 0
      %1220 = vmatprep.subr.bf16.mxu0 0
      %1221 = vmatpush1.bf16.msra.mxu0 0
      %1222 = vmatprep.subr.bf16.mxu0 0
      %1223 = vmatpush1.bf16.msra.mxu0 0
      %1224 = vmatprep.subr.bf16.mxu0 0
      %1225 = vmatpush1.bf16.msra.mxu0 0
      %1226 = vmatprep.subr.bf16.mxu0 0
      %1227 = vmatpush1.bf16.msra.mxu0 0
      %1228 = vmatprep.subr.bf16.mxu0 0
      %1229 = vmatpush1.bf16.msra.mxu0 0
      %1230 = vmatprep.mubr.bf16.mxu0 0
      %1231 = vmatmul.mubr.bf16.gmra.mrb[0].mxu0 %v1193
      %v1232 = vpop.f32.mrb[0].mxu0
      %v1233 = vadd.f32 0.0, %v1232
      %v1234 = vpop.f32.mrb[0].mxu0
      %v1235 = vpop.f32.mrb[0].mxu0
      %v1236 = vadd.f32 0.0, %v1235
      %v1237 = vpop.f32.mrb[0].mxu0
      %1238 = vmatprep.mubr.bf16.mxu0 0
      %1239 = vmatmul.mubr.bf16.gmra.mrb[0].mxu0 %v1196
      %v1240 = vpop.f32.mrb[0].mxu0
      %v1241 = vadd.f32 0.0, %v1240
      %v1242 = vpop.f32.mrb[0].mxu0
      %v1243 = vpop.f32.mrb[0].mxu0
      %v1244 = vadd.f32 0.0, %v1243
      %v1245 = vpop.f32.mrb[0].mxu0
      %1246 = vdwg.mxu0
      %1263 = vrot.lane.b32.xlu0 %v449, 32
      %v1264 = vpop.permute.xlu0 %1263
      %1265 = vrot.lane.b32.xlu0 %v452, 32
      %v1266 = vpop.permute.xlu0 %1265
      %1267 = vrot.lane.b32.xlu0 %v457, 32
      %v1268 = vpop.permute.xlu0 %1267
      %1269 = vrot.lane.b32.xlu0 %v460, 32
      %v1270 = vpop.permute.xlu0 %1269
      %1271 = vrot.lane.b32.xlu0 %v465, 32
      %v1272 = vpop.permute.xlu0 %1271
      %1273 = vrot.lane.b32.xlu0 %v468, 32
      %v1274 = vpop.permute.xlu0 %1273
      %1275 = vrot.lane.b32.xlu0 %v473, 32
      %v1276 = vpop.permute.xlu0 %1275
      %1277 = vrot.lane.b32.xlu0 %v476, 32
      %v1278 = vpop.permute.xlu0 %1277
      %1279 = vrot.lane.b32.xlu0 %v481, 32
      %v1280 = vpop.permute.xlu0 %1279
      %1281 = vrot.lane.b32.xlu0 %v484, 32
      %v1282 = vpop.permute.xlu0 %1281
      %1283 = vrot.lane.b32.xlu0 %v489, 32
      %v1284 = vpop.permute.xlu0 %1283
      %1285 = vrot.lane.b32.xlu0 %v492, 32
      %v1286 = vpop.permute.xlu0 %1285
      %1287 = vrot.lane.b32.xlu0 %v497, 32
      %v1288 = vpop.permute.xlu0 %1287
      %1289 = vrot.lane.b32.xlu0 %v500, 32
      %v1290 = vpop.permute.xlu0 %1289
      %1291 = vrot.lane.b32.xlu0 %v505, 32
      %v1292 = vpop.permute.xlu0 %1291
      %1293 = vrot.lane.b32.xlu0 %v508, 32
      %v1294 = vpop.permute.xlu0 %1293
      %v1311 = vadd.f32 %v1050, %v1264
      %v1312 = vadd.f32 %v1053, %v1266
      %v1313 = vadd.f32 %v1058, %v1268
      %v1314 = vadd.f32 %v1061, %v1270
      %v1315 = vadd.f32 %v1111, %v1272
      %v1316 = vadd.f32 %v1114, %v1274
      %v1317 = vadd.f32 %v1119, %v1276
      %v1318 = vadd.f32 %v1122, %v1278
      %v1319 = vadd.f32 %v1172, %v1280
      %v1320 = vadd.f32 %v1175, %v1282
      %v1321 = vadd.f32 %v1180, %v1284
      %v1322 = vadd.f32 %v1183, %v1286
      %v1323 = vadd.f32 %v1233, %v1288
      %v1324 = vadd.f32 %v1236, %v1290
      %v1325 = vadd.f32 %v1241, %v1292
      %v1326 = vadd.f32 %v1244, %v1294
      %v1327 = vmax.f32 %v1311, 0.0
      %v1328 = vmax.f32 %v1312, 0.0
      %v1329 = vmax.f32 %v1313, 0.0
      %v1330 = vmax.f32 %v1314, 0.0
      %v1331 = vmax.f32 %v1315, 0.0
      %v1332 = vmax.f32 %v1316, 0.0
      %v1333 = vmax.f32 %v1317, 0.0
      %v1334 = vmax.f32 %v1318, 0.0
      %v1335 = vmax.f32 %v1319, 0.0
      %v1336 = vmax.f32 %v1320, 0.0
      %v1337 = vmax.f32 %v1321, 0.0
      %v1338 = vmax.f32 %v1322, 0.0
      %v1339 = vmax.f32 %v1323, 0.0
      %v1340 = vmax.f32 %v1324, 0.0
      %v1341 = vmax.f32 %v1325, 0.0
      %v1342 = vmax.f32 %v1326, 0.0
      %s1343 = scalar_lea.vmem %s3, 32
      %v1344 = vld [vmem:[%s1343] sm:$0xff]
      %v1345 = vld [vmem:[%s1343 + $0x8] sm:$0xff]
      %v1346 = vld [vmem:[%s1343 + $0x10] sm:$0xff]
      %v1347 = vld [vmem:[%s1343 + $0x18] sm:$0xff]
      %v1348 = vpack.c.bf16 %v1345, %v1344
      %v1349 = vpack.c.bf16 %v1347, %v1346
      %v1350 = vpack.c.bf16 %v1328, %v1327
      %v1351 = vpack.c.bf16 %v1330, %v1329
      %v1352 = vpack.c.bf16 %v1332, %v1331
      %v1353 = vpack.c.bf16 %v1334, %v1333
      %v1354 = vpack.c.bf16 %v1336, %v1335
      %v1355 = vpack.c.bf16 %v1338, %v1337
      %v1356 = vpack.c.bf16 %v1340, %v1339
      %v1357 = vpack.c.bf16 %v1342, %v1341
      %v1359 = vsel %vm389, %v1350, 0
      %v1362 = vsel %vm389, %v1351, 0
      %v1365 = vsel %vm389, %v1352, 0
      %v1368 = vsel %vm389, %v1353, 0
      %v1371 = vsel %vm389, %v1354, 0
      %v1374 = vsel %vm389, %v1355, 0
      %v1377 = vsel %vm389, %v1356, 0
      %v1380 = vsel %vm389, %v1357, 0
      %1382 = vmatprep.subr.bf16.mxu0 0
      %1383 = vmatpush1.bf16.msra.mxu0 %v1348
      %1384 = vmatprep.subr.bf16.mxu0 0
      %1385 = vmatpush1.bf16.msra.mxu0 %v1349
      %1386 = vmatprep.subr.bf16.mxu0 0
      %1387 = vmatpush1.bf16.msra.mxu0 0
      %1388 = vmatprep.subr.bf16.mxu0 0
      %1389 = vmatpush1.bf16.msra.mxu0 0
      %1390 = vmatprep.subr.bf16.mxu0 0
      %1391 = vmatpush1.bf16.msra.mxu0 0
      %1392 = vmatprep.subr.bf16.mxu0 0
      %1393 = vmatpush1.bf16.msra.mxu0 0
      %1394 = vmatprep.subr.bf16.mxu0 0
      %1395 = vmatpush1.bf16.msra.mxu0 0
      %1396 = vmatprep.subr.bf16.mxu0 0
      %1397 = vmatpush1.bf16.msra.mxu0 0
      %1398 = vmatprep.subr.bf16.mxu0 0
      %1399 = vmatpush1.bf16.msra.mxu0 0
      %1400 = vmatprep.subr.bf16.mxu0 0
      %1401 = vmatpush1.bf16.msra.mxu0 0
      %1402 = vmatprep.subr.bf16.mxu0 0
      %1403 = vmatpush1.bf16.msra.mxu0 0
      %1404 = vmatprep.subr.bf16.mxu0 0
      %1405 = vmatpush1.bf16.msra.mxu0 0
      %1406 = vmatprep.subr.bf16.mxu0 0
      %1407 = vmatpush1.bf16.msra.mxu0 0
      %1408 = vmatprep.subr.bf16.mxu0 0
      %1409 = vmatpush1.bf16.msra.mxu0 0
      %1410 = vmatprep.subr.bf16.mxu0 0
      %1411 = vmatpush1.bf16.msra.mxu0 0
      %1412 = vmatprep.subr.bf16.mxu0 0
      %1413 = vmatpush1.bf16.msra.mxu0 0
      %1414 = vmatprep.mubr.bf16.mxu0 0
      %1415 = vmatmul.mubr.bf16.gmra.mrb[0].mxu0 %v1359
      %v1416 = vpop.f32.mrb[0].mxu0
      %v1417 = vadd.f32 0.0, %v1416
      %v1418 = vpop.f32.mrb[0].mxu0
      %v1419 = vpop.f32.mrb[0].mxu0
      %v1420 = vadd.f32 0.0, %v1419
      %v1421 = vpop.f32.mrb[0].mxu0
      %1422 = vmatprep.mubr.bf16.mxu0 0
      %1423 = vmatmul.mubr.bf16.gmra.mrb[0].mxu0 %v1362
      %v1424 = vpop.f32.mrb[0].mxu0
      %v1425 = vadd.f32 0.0, %v1424
      %v1426 = vpop.f32.mrb[0].mxu0
      %v1427 = vpop.f32.mrb[0].mxu0
      %v1428 = vadd.f32 0.0, %v1427
      %v1429 = vpop.f32.mrb[0].mxu0
      %1430 = vmatprep.mubr.bf16.mxu0 0
      %1431 = vmatmul.mubr.bf16.gmra.mrb[0].mxu0 %v1365
      %v1432 = vpop.f32.mrb[0].mxu0
      %v1433 = vadd.f32 0.0, %v1432
      %v1434 = vpop.f32.mrb[0].mxu0
      %v1435 = vpop.f32.mrb[0].mxu0
      %v1436 = vadd.f32 0.0, %v1435
      %v1437 = vpop.f32.mrb[0].mxu0
      %1438 = vmatprep.mubr.bf16.mxu0 0
      %1439 = vmatmul.mubr.bf16.gmra.mrb[0].mxu0 %v1368
      %v1440 = vpop.f32.mrb[0].mxu0
      %v1441 = vadd.f32 0.0, %v1440
      %v1442 = vpop.f32.mrb[0].mxu0
      %v1443 = vpop.f32.mrb[0].mxu0
      %v1444 = vadd.f32 0.0, %v1443
      %v1445 = vpop.f32.mrb[0].mxu0
      %1446 = vmatprep.mubr.bf16.mxu0 0
      %1447 = vmatmul.mubr.bf16.gmra.mrb[0].mxu0 %v1371
      %v1448 = vpop.f32.mrb[0].mxu0
      %v1449 = vadd.f32 0.0, %v1448
      %v1450 = vpop.f32.mrb[0].mxu0
      %v1451 = vpop.f32.mrb[0].mxu0
      %v1452 = vadd.f32 0.0, %v1451
      %v1453 = vpop.f32.mrb[0].mxu0
      %1454 = vmatprep.mubr.bf16.mxu0 0
      %1455 = vmatmul.mubr.bf16.gmra.mrb[0].mxu0 %v1374
      %v1456 = vpop.f32.mrb[0].mxu0
      %v1457 = vadd.f32 0.0, %v1456
      %v1458 = vpop.f32.mrb[0].mxu0
      %v1459 = vpop.f32.mrb[0].mxu0
      %v1460 = vadd.f32 0.0, %v1459
      %v1461 = vpop.f32.mrb[0].mxu0
      %1462 = vmatprep.mubr.bf16.mxu0 0
      %1463 = vmatmul.mubr.bf16.gmra.mrb[0].mxu0 %v1377
      %v1464 = vpop.f32.mrb[0].mxu0
      %v1465 = vadd.f32 0.0, %v1464
      %v1466 = vpop.f32.mrb[0].mxu0
      %v1467 = vpop.f32.mrb[0].mxu0
      %v1468 = vadd.f32 0.0, %v1467
      %v1469 = vpop.f32.mrb[0].mxu0
      %1470 = vmatprep.mubr.bf16.mxu0 0
      %1471 = vmatmul.mubr.bf16.gmra.mrb[0].mxu0 %v1380
      %v1472 = vpop.f32.mrb[0].mxu0
      %v1473 = vadd.f32 0.0, %v1472
      %v1474 = vpop.f32.mrb[0].mxu0
      %v1475 = vpop.f32.mrb[0].mxu0
      %v1476 = vadd.f32 0.0, %v1475
      %v1477 = vpop.f32.mrb[0].mxu0
      %1478 = vdwg.mxu0
      %v1479 = vpack.c.bf16 %v1420, %v1417
      %v1480 = vpack.c.bf16 %v1428, %v1425
      %v1481 = vpack.c.bf16 %v1436, %v1433
      %v1482 = vpack.c.bf16 %v1444, %v1441
      %v1483 = vpack.c.bf16 %v1452, %v1449
      %v1484 = vpack.c.bf16 %v1460, %v1457
      %v1485 = vpack.c.bf16 %v1468, %v1465
      %v1486 = vpack.c.bf16 %v1476, %v1473
      %1489 = vrot.lane.b32.xlu0 %v1479, 96
      %v1490 = vpop.permute.xlu0 %1489
      %1491 = vrot.lane.b32.xlu0 %v1480, 96
      %v1492 = vpop.permute.xlu0 %1491
      %v1494 = vsel %vm389, %v1479, 0
      %v1497 = vsel %vm389, %v1480, 0
      %v1500 = vsel %vm389, %v1490, 0
      %v1503 = vsel %vm389, %v1492, 0
      %1505 = vmatprep.subr.bf16.mxu0 0
      %1506 = vmatpush1.bf16.xpose.msra.mxu0 %v1500
      %1507 = vmatprep.subr.bf16.mxu0 0
      %1508 = vmatpush1.bf16.xpose.msra.mxu0 %v1503
      %1509 = vmatprep.subr.bf16.mxu0 0
      %1510 = vmatpush1.bf16.xpose.msra.mxu0 0
      %1511 = vmatprep.subr.bf16.mxu0 0
      %1512 = vmatpush1.bf16.xpose.msra.mxu0 0
      %1513 = vmatprep.subr.bf16.mxu0 0
      %1514 = vmatpush1.bf16.xpose.msra.mxu0 0
      %1515 = vmatprep.subr.bf16.mxu0 0
      %1516 = vmatpush1.bf16.xpose.msra.mxu0 0
      %1517 = vmatprep.subr.bf16.mxu0 0
      %1518 = vmatpush1.bf16.xpose.msra.mxu0 0
      %1519 = vmatprep.subr.bf16.mxu0 0
      %1520 = vmatpush1.bf16.xpose.msra.mxu0 0
      %1521 = vmatprep.subr.bf16.mxu0 0
      %1522 = vmatpush1.bf16.xpose.msra.mxu0 0
      %1523 = vmatprep.subr.bf16.mxu0 0
      %1524 = vmatpush1.bf16.xpose.msra.mxu0 0
      %1525 = vmatprep.subr.bf16.mxu0 0
      %1526 = vmatpush1.bf16.xpose.msra.mxu0 0
      %1527 = vmatprep.subr.bf16.mxu0 0
      %1528 = vmatpush1.bf16.xpose.msra.mxu0 0
      %1529 = vmatprep.subr.bf16.mxu0 0
      %1530 = vmatpush1.bf16.xpose.msra.mxu0 0
      %1531 = vmatprep.subr.bf16.mxu0 0
      %1532 = vmatpush1.bf16.xpose.msra.mxu0 0
      %1533 = vmatprep.subr.bf16.mxu0 0
      %1534 = vmatpush1.bf16.xpose.msra.mxu0 0
      %1535 = vmatprep.subr.bf16.mxu0 0
      %1536 = vmatpush1.bf16.xpose.msra.mxu0 0
      %1537 = vmatprep.mubr.bf16.mxu0 0
      %1538 = vmatmul.mubr.bf16.gmra.mrb[0].mxu0 %v1494
      %v1539 = vpop.f32.mrb[0].mxu0
      %v1540 = vadd.f32 0.0, %v1539
      %v1541 = vpop.f32.mrb[0].mxu0
      %v1542 = vpop.f32.mrb[0].mxu0
      %v1543 = vadd.f32 0.0, %v1542
      %v1544 = vpop.f32.mrb[0].mxu0
      %1545 = vmatprep.mubr.bf16.mxu0 0
      %1546 = vmatmul.mubr.bf16.gmra.mrb[0].mxu0 %v1497
      %v1547 = vpop.f32.mrb[0].mxu0
      %v1548 = vadd.f32 0.0, %v1547
      %v1549 = vpop.f32.mrb[0].mxu0
      %v1550 = vpop.f32.mrb[0].mxu0
      %v1551 = vadd.f32 0.0, %v1550
      %v1552 = vpop.f32.mrb[0].mxu0
      %1553 = vdwg.mxu0
      %1556 = vrot.lane.b32.xlu0 %v1481, 96
      %v1557 = vpop.permute.xlu0 %1556
      %1558 = vrot.lane.b32.xlu0 %v1482, 96
      %v1559 = vpop.permute.xlu0 %1558
      %v1561 = vsel %vm389, %v1481, 0
      %v1564 = vsel %vm389, %v1482, 0
      %v1567 = vsel %vm389, %v1557, 0
      %v1570 = vsel %vm389, %v1559, 0
      %1572 = vmatprep.subr.bf16.mxu0 0
      %1573 = vmatpush1.bf16.xpose.msra.mxu0 %v1567
      %1574 = vmatprep.subr.bf16.mxu0 0
      %1575 = vmatpush1.bf16.xpose.msra.mxu0 %v1570
      %1576 = vmatprep.subr.bf16.mxu0 0
      %1577 = vmatpush1.bf16.xpose.msra.mxu0 0
      %1578 = vmatprep.subr.bf16.mxu0 0
      %1579 = vmatpush1.bf16.xpose.msra.mxu0 0
      %1580 = vmatprep.subr.bf16.mxu0 0
      %1581 = vmatpush1.bf16.xpose.msra.mxu0 0
      %1582 = vmatprep.subr.bf16.mxu0 0
      %1583 = vmatpush1.bf16.xpose.msra.mxu0 0
      %1584 = vmatprep.subr.bf16.mxu0 0
      %1585 = vmatpush1.bf16.xpose.msra.mxu0 0
      %1586 = vmatprep.subr.bf16.mxu0 0
      %1587 = vmatpush1.bf16.xpose.msra.mxu0 0
      %1588 = vmatprep.subr.bf16.mxu0 0
      %1589 = vmatpush1.bf16.xpose.msra.mxu0 0
      %1590 = vmatprep.subr.bf16.mxu0 0
      %1591 = vmatpush1.bf16.xpose.msra.mxu0 0
      %1592 = vmatprep.subr.bf16.mxu0 0
      %1593 = vmatpush1.bf16.xpose.msra.mxu0 0
      %1594 = vmatprep.subr.bf16.mxu0 0
      %1595 = vmatpush1.bf16.xpose.msra.mxu0 0
      %1596 = vmatprep.subr.bf16.mxu0 0
      %1597 = vmatpush1.bf16.xpose.msra.mxu0 0
      %1598 = vmatprep.subr.bf16.mxu0 0
      %1599 = vmatpush1.bf16.xpose.msra.mxu0 0
      %1600 = vmatprep.subr.bf16.mxu0 0
      %1601 = vmatpush1.bf16.xpose.msra.mxu0 0
      %1602 = vmatprep.subr.bf16.mxu0 0
      %1603 = vmatpush1.bf16.xpose.msra.mxu0 0
      %1604 = vmatprep.mubr.bf16.mxu0 0
      %1605 = vmatmul.mubr.bf16.gmra.mrb[0].mxu0 %v1561
      %v1606 = vpop.f32.mrb[0].mxu0
      %v1607 = vadd.f32 0.0, %v1606
      %v1608 = vpop.f32.mrb[0].mxu0
      %v1609 = vpop.f32.mrb[0].mxu0
      %v1610 = vadd.f32 0.0, %v1609
      %v1611 = vpop.f32.mrb[0].mxu0
      %1612 = vmatprep.mubr.bf16.mxu0 0
      %1613 = vmatmul.mubr.bf16.gmra.mrb[0].mxu0 %v1564
      %v1614 = vpop.f32.mrb[0].mxu0
      %v1615 = vadd.f32 0.0, %v1614
      %v1616 = vpop.f32.mrb[0].mxu0
      %v1617 = vpop.f32.mrb[0].mxu0
      %v1618 = vadd.f32 0.0, %v1617
      %v1619 = vpop.f32.mrb[0].mxu0
      %1620 = vdwg.mxu0
      %1623 = vrot.lane.b32.xlu0 %v1483, 96
      %v1624 = vpop.permute.xlu0 %1623
      %1625 = vrot.lane.b32.xlu0 %v1484, 96
      %v1626 = vpop.permute.xlu0 %1625
      %v1628 = vsel %vm389, %v1483, 0
      %v1631 = vsel %vm389, %v1484, 0
      %v1634 = vsel %vm389, %v1624, 0
      %v1637 = vsel %vm389, %v1626, 0
      %1639 = vmatprep.subr.bf16.mxu0 0
      %1640 = vmatpush1.bf16.xpose.msra.mxu0 %v1634
      %1641 = vmatprep.subr.bf16.mxu0 0
      %1642 = vmatpush1.bf16.xpose.msra.mxu0 %v1637
      %1643 = vmatprep.subr.bf16.mxu0 0
      %1644 = vmatpush1.bf16.xpose.msra.mxu0 0
      %1645 = vmatprep.subr.bf16.mxu0 0
      %1646 = vmatpush1.bf16.xpose.msra.mxu0 0
      %1647 = vmatprep.subr.bf16.mxu0 0
      %1648 = vmatpush1.bf16.xpose.msra.mxu0 0
      %1649 = vmatprep.subr.bf16.mxu0 0
      %1650 = vmatpush1.bf16.xpose.msra.mxu0 0
      %1651 = vmatprep.subr.bf16.mxu0 0
      %1652 = vmatpush1.bf16.xpose.msra.mxu0 0
      %1653 = vmatprep.subr.bf16.mxu0 0
      %1654 = vmatpush1.bf16.xpose.msra.mxu0 0
      %1655 = vmatprep.subr.bf16.mxu0 0
      %1656 = vmatpush1.bf16.xpose.msra.mxu0 0
      %1657 = vmatprep.subr.bf16.mxu0 0
      %1658 = vmatpush1.bf16.xpose.msra.mxu0 0
      %1659 = vmatprep.subr.bf16.mxu0 0
      %1660 = vmatpush1.bf16.xpose.msra.mxu0 0
      %1661 = vmatprep.subr.bf16.mxu0 0
      %1662 = vmatpush1.bf16.xpose.msra.mxu0 0
      %1663 = vmatprep.subr.bf16.mxu0 0
      %1664 = vmatpush1.bf16.xpose.msra.mxu0 0
      %1665 = vmatprep.subr.bf16.mxu0 0
      %1666 = vmatpush1.bf16.xpose.msra.mxu0 0
      %1667 = vmatprep.subr.bf16.mxu0 0
      %1668 = vmatpush1.bf16.xpose.msra.mxu0 0
      %1669 = vmatprep.subr.bf16.mxu0 0
      %1670 = vmatpush1.bf16.xpose.msra.mxu0 0
      %1671 = vmatprep.mubr.bf16.mxu0 0
      %1672 = vmatmul.mubr.bf16.gmra.mrb[0].mxu0 %v1628
      %v1673 = vpop.f32.mrb[0].mxu0
      %v1674 = vadd.f32 0.0, %v1673
      %v1675 = vpop.f32.mrb[0].mxu0
      %v1676 = vpop.f32.mrb[0].mxu0
      %v1677 = vadd.f32 0.0, %v1676
      %v1678 = vpop.f32.mrb[0].mxu0
      %1679 = vmatprep.mubr.bf16.mxu0 0
      %1680 = vmatmul.mubr.bf16.gmra.mrb[0].mxu0 %v1631
      %v1681 = vpop.f32.mrb[0].mxu0
      %v1682 = vadd.f32 0.0, %v1681
      %v1683 = vpop.f32.mrb[0].mxu0
      %v1684 = vpop.f32.mrb[0].mxu0
      %v1685 = vadd.f32 0.0, %v1684
      %v1686 = vpop.f32.mrb[0].mxu0
      %1687 = vdwg.mxu0
      %1690 = vrot.lane.b32.xlu0 %v1485, 96
      %v1691 = vpop.permute.xlu0 %1690
      %1692 = vrot.lane.b32.xlu0 %v1486, 96
      %v1693 = vpop.permute.xlu0 %1692
      %v1695 = vsel %vm389, %v1485, 0
      %v1698 = vsel %vm389, %v1486, 0
      %v1701 = vsel %vm389, %v1691, 0
      %v1704 = vsel %vm389, %v1693, 0
      %1706 = vmatprep.subr.bf16.mxu0 0
      %1707 = vmatpush1.bf16.xpose.msra.mxu0 %v1701
      %1708 = vmatprep.subr.bf16.mxu0 0
      %1709 = vmatpush1.bf16.xpose.msra.mxu0 %v1704
      %1710 = vmatprep.subr.bf16.mxu0 0
      %1711 = vmatpush1.bf16.xpose.msra.mxu0 0
      %1712 = vmatprep.subr.bf16.mxu0 0
      %1713 = vmatpush1.bf16.xpose.msra.mxu0 0
      %1714 = vmatprep.subr.bf16.mxu0 0
      %1715 = vmatpush1.bf16.xpose.msra.mxu0 0
      %1716 = vmatprep.subr.bf16.mxu0 0
      %1717 = vmatpush1.bf16.xpose.msra.mxu0 0
      %1718 = vmatprep.subr.bf16.mxu0 0
      %1719 = vmatpush1.bf16.xpose.msra.mxu0 0
      %1720 = vmatprep.subr.bf16.mxu0 0
      %1721 = vmatpush1.bf16.xpose.msra.mxu0 0
      %1722 = vmatprep.subr.bf16.mxu0 0
      %1723 = vmatpush1.bf16.xpose.msra.mxu0 0
      %1724 = vmatprep.subr.bf16.mxu0 0
      %1725 = vmatpush1.bf16.xpose.msra.mxu0 0
      %1726 = vmatprep.subr.bf16.mxu0 0
      %1727 = vmatpush1.bf16.xpose.msra.mxu0 0
      %1728 = vmatprep.subr.bf16.mxu0 0
      %1729 = vmatpush1.bf16.xpose.msra.mxu0 0
      %1730 = vmatprep.subr.bf16.mxu0 0
      %1731 = vmatpush1.bf16.xpose.msra.mxu0 0
      %1732 = vmatprep.subr.bf16.mxu0 0
      %1733 = vmatpush1.bf16.xpose.msra.mxu0 0
      %1734 = vmatprep.subr.bf16.mxu0 0
      %1735 = vmatpush1.bf16.xpose.msra.mxu0 0
      %1736 = vmatprep.subr.bf16.mxu0 0
      %1737 = vmatpush1.bf16.xpose.msra.mxu0 0
      %1738 = vmatprep.mubr.bf16.mxu0 0
      %1739 = vmatmul.mubr.bf16.gmra.mrb[0].mxu0 %v1695
      %v1740 = vpop.f32.mrb[0].mxu0
      %v1741 = vadd.f32 0.0, %v1740
      %v1742 = vpop.f32.mrb[0].mxu0
      %v1743 = vpop.f32.mrb[0].mxu0
      %v1744 = vadd.f32 0.0, %v1743
      %v1745 = vpop.f32.mrb[0].mxu0
      %1746 = vmatprep.mubr.bf16.mxu0 0
      %1747 = vmatmul.mubr.bf16.gmra.mrb[0].mxu0 %v1698
      %v1748 = vpop.f32.mrb[0].mxu0
      %v1749 = vadd.f32 0.0, %v1748
      %v1750 = vpop.f32.mrb[0].mxu0
      %v1751 = vpop.f32.mrb[0].mxu0
      %v1752 = vadd.f32 0.0, %v1751
      %v1753 = vpop.f32.mrb[0].mxu0
      %1754 = vdwg.mxu0
      %v1755 = vmul.f32 %v1540, 0.17677669
      %v1756 = vmul.f32 %v1543, 0.17677669
      %v1757 = vmul.f32 %v1548, 0.17677669
      %v1758 = vmul.f32 %v1551, 0.17677669
      %v1759 = vmul.f32 %v1607, 0.17677669
      %v1760 = vmul.f32 %v1610, 0.17677669
      %v1761 = vmul.f32 %v1615, 0.17677669
      %v1762 = vmul.f32 %v1618, 0.17677669
      %v1763 = vmul.f32 %v1674, 0.17677669
      %v1764 = vmul.f32 %v1677, 0.17677669
      %v1765 = vmul.f32 %v1682, 0.17677669
      %v1766 = vmul.f32 %v1685, 0.17677669
      %v1767 = vmul.f32 %v1741, 0.17677669
      %v1768 = vmul.f32 %v1744, 0.17677669
      %v1769 = vmul.f32 %v1749, 0.17677669
      %v1770 = vmul.f32 %v1752, 0.17677669
      %v1771 = vadd.f32 %v1755, %v359
      %v1772 = vadd.f32 %v1756, %v360
      %v1773 = vadd.f32 %v1757, %v361
      %v1774 = vadd.f32 %v1758, %v362
      %v1775 = vadd.f32 %v1759, %v363
      %v1776 = vadd.f32 %v1760, %v364
      %v1777 = vadd.f32 %v1761, %v365
      %v1778 = vadd.f32 %v1762, %v366
      %v1779 = vadd.f32 %v1763, %v367
      %v1780 = vadd.f32 %v1764, %v368
      %v1781 = vadd.f32 %v1765, %v369
      %v1782 = vadd.f32 %v1766, %v370
      %v1783 = vadd.f32 %v1767, %v371
      %v1784 = vadd.f32 %v1768, %v372
      %v1785 = vadd.f32 %v1769, %v373
      %v1786 = vadd.f32 %v1770, %v374
      %v1787 = vsel %vm389, %v1771, -inf
      %1788 = vmax.xlane.f32.xlu0 %v1787
      %v1789 = vpop.xlane.xlu0 %1788
      %v1790 = vsel %vm389, %v1772, -inf
      %1791 = vmax.xlane.f32.xlu0 %v1790
      %v1792 = vpop.xlane.xlu0 %1791
      %v1793 = vsel %vm389, %v1773, -inf
      %1794 = vmax.xlane.f32.xlu0 %v1793
      %v1795 = vpop.xlane.xlu0 %1794
      %v1796 = vsel %vm389, %v1774, -inf
      %1797 = vmax.xlane.f32.xlu0 %v1796
      %v1798 = vpop.xlane.xlu0 %1797
      %v1799 = vsel %vm389, %v1775, -inf
      %1800 = vmax.xlane.f32.xlu0 %v1799
      %v1801 = vpop.xlane.xlu0 %1800
      %v1802 = vsel %vm389, %v1776, -inf
      %1803 = vmax.xlane.f32.xlu0 %v1802
      %v1804 = vpop.xlane.xlu0 %1803
      %v1805 = vsel %vm389, %v1777, -inf
      %1806 = vmax.xlane.f32.xlu0 %v1805
      %v1807 = vpop.xlane.xlu0 %1806
      %v1808 = vsel %vm389, %v1778, -inf
      %1809 = vmax.xlane.f32.xlu0 %v1808
      %v1810 = vpop.xlane.xlu0 %1809
      %v1811 = vsel %vm389, %v1779, -inf
      %1812 = vmax.xlane.f32.xlu0 %v1811
      %v1813 = vpop.xlane.xlu0 %1812
      %v1814 = vsel %vm389, %v1780, -inf
      %1815 = vmax.xlane.f32.xlu0 %v1814
      %v1816 = vpop.xlane.xlu0 %1815
      %v1817 = vsel %vm389, %v1781, -inf
      %1818 = vmax.xlane.f32.xlu0 %v1817
      %v1819 = vpop.xlane.xlu0 %1818
      %v1820 = vsel %vm389, %v1782, -inf
      %1821 = vmax.xlane.f32.xlu0 %v1820
      %v1822 = vpop.xlane.xlu0 %1821
      %v1823 = vsel %vm389, %v1783, -inf
      %1824 = vmax.xlane.f32.xlu0 %v1823
      %v1825 = vpop.xlane.xlu0 %1824
      %v1826 = vsel %vm389, %v1784, -inf
      %1827 = vmax.xlane.f32.xlu0 %v1826
      %v1828 = vpop.xlane.xlu0 %1827
      %v1829 = vsel %vm389, %v1785, -inf
      %1830 = vmax.xlane.f32.xlu0 %v1829
      %v1831 = vpop.xlane.xlu0 %1830
      %v1832 = vsel %vm389, %v1786, -inf
      %1833 = vmax.xlane.f32.xlu0 %v1832
      %v1834 = vpop.xlane.xlu0 %1833
      %v1835 = vsub.f32 %v1771, %v1789
      %v1836 = vsub.f32 %v1772, %v1792
      %v1837 = vsub.f32 %v1773, %v1795
      %v1838 = vsub.f32 %v1774, %v1798
      %v1839 = vsub.f32 %v1775, %v1801
      %v1840 = vsub.f32 %v1776, %v1804
      %v1841 = vsub.f32 %v1777, %v1807
      %v1842 = vsub.f32 %v1778, %v1810
      %v1843 = vsub.f32 %v1779, %v1813
      %v1844 = vsub.f32 %v1780, %v1816
      %v1845 = vsub.f32 %v1781, %v1819
      %v1846 = vsub.f32 %v1782, %v1822
      %v1847 = vsub.f32 %v1783, %v1825
      %v1848 = vsub.f32 %v1784, %v1828
      %v1849 = vsub.f32 %v1785, %v1831
      %v1850 = vsub.f32 %v1786, %v1834
      %v1851 = vmul.f32 %v1835, 1.442695
      %v1852 = vpow.pop %v1851
      %v1853 = vmul.f32 %v1836, 1.442695
      %v1854 = vpow.pop %v1853
      %v1855 = vmul.f32 %v1837, 1.442695
      %v1856 = vpow.pop %v1855
      %v1857 = vmul.f32 %v1838, 1.442695
      %v1858 = vpow.pop %v1857
      %v1859 = vmul.f32 %v1839, 1.442695
      %v1860 = vpow.pop %v1859
      %v1861 = vmul.f32 %v1840, 1.442695
      %v1862 = vpow.pop %v1861
      %v1863 = vmul.f32 %v1841, 1.442695
      %v1864 = vpow.pop %v1863
      %v1865 = vmul.f32 %v1842, 1.442695
      %v1866 = vpow.pop %v1865
      %v1867 = vmul.f32 %v1843, 1.442695
      %v1868 = vpow.pop %v1867
      %v1869 = vmul.f32 %v1844, 1.442695
      %v1870 = vpow.pop %v1869
      %v1871 = vmul.f32 %v1845, 1.442695
      %v1872 = vpow.pop %v1871
      %v1873 = vmul.f32 %v1846, 1.442695
      %v1874 = vpow.pop %v1873
      %v1875 = vmul.f32 %v1847, 1.442695
      %v1876 = vpow.pop %v1875
      %v1877 = vmul.f32 %v1848, 1.442695
      %v1878 = vpow.pop %v1877
      %v1879 = vmul.f32 %v1849, 1.442695
      %v1880 = vpow.pop %v1879
      %v1881 = vmul.f32 %v1850, 1.442695
      %v1882 = vpow.pop %v1881
      %v1883 = vsel %vm389, %v1852, 0.0
      %1884 = vadd.xlane.f32.xlu0 %v1883
      %v1885 = vpop.xlane.xlu0 %1884
      %v1886 = vsel %vm389, %v1854, 0.0
      %1887 = vadd.xlane.f32.xlu0 %v1886
      %v1888 = vpop.xlane.xlu0 %1887
      %v1889 = vsel %vm389, %v1856, 0.0
      %1890 = vadd.xlane.f32.xlu0 %v1889
      %v1891 = vpop.xlane.xlu0 %1890
      %v1892 = vsel %vm389, %v1858, 0.0
      %1893 = vadd.xlane.f32.xlu0 %v1892
      %v1894 = vpop.xlane.xlu0 %1893
      %v1895 = vsel %vm389, %v1860, 0.0
      %1896 = vadd.xlane.f32.xlu0 %v1895
      %v1897 = vpop.xlane.xlu0 %1896
      %v1898 = vsel %vm389, %v1862, 0.0
      %1899 = vadd.xlane.f32.xlu0 %v1898
      %v1900 = vpop.xlane.xlu0 %1899
      %v1901 = vsel %vm389, %v1864, 0.0
      %1902 = vadd.xlane.f32.xlu0 %v1901
      %v1903 = vpop.xlane.xlu0 %1902
      %v1904 = vsel %vm389, %v1866, 0.0
      %1905 = vadd.xlane.f32.xlu0 %v1904
      %v1906 = vpop.xlane.xlu0 %1905
      %v1907 = vsel %vm389, %v1868, 0.0
      %1908 = vadd.xlane.f32.xlu0 %v1907
      %v1909 = vpop.xlane.xlu0 %1908
      %v1910 = vsel %vm389, %v1870, 0.0
      %1911 = vadd.xlane.f32.xlu0 %v1910
      %v1912 = vpop.xlane.xlu0 %1911
      %v1913 = vsel %vm389, %v1872, 0.0
      %1914 = vadd.xlane.f32.xlu0 %v1913
      %v1915 = vpop.xlane.xlu0 %1914
      %v1916 = vsel %vm389, %v1874, 0.0
      %1917 = vadd.xlane.f32.xlu0 %v1916
      %v1918 = vpop.xlane.xlu0 %1917
      %v1919 = vsel %vm389, %v1876, 0.0
      %1920 = vadd.xlane.f32.xlu0 %v1919
      %v1921 = vpop.xlane.xlu0 %1920
      %v1922 = vsel %vm389, %v1878, 0.0
      %1923 = vadd.xlane.f32.xlu0 %v1922
      %v1924 = vpop.xlane.xlu0 %1923
      %v1925 = vsel %vm389, %v1880, 0.0
      %1926 = vadd.xlane.f32.xlu0 %v1925
      %v1927 = vpop.xlane.xlu0 %1926
      %v1928 = vsel %vm389, %v1882, 0.0
      %1929 = vadd.xlane.f32.xlu0 %v1928
      %v1930 = vpop.xlane.xlu0 %1929
      %v1931 = vrcp.pop %v1885
      %v1932 = vrcp.pop %v1888
      %v1933 = vrcp.pop %v1891
      %v1934 = vrcp.pop %v1894
      %v1935 = vrcp.pop %v1897
      %v1936 = vrcp.pop %v1900
      %v1937 = vrcp.pop %v1903
      %v1938 = vrcp.pop %v1906
      %v1939 = vrcp.pop %v1909
      %v1940 = vrcp.pop %v1912
      %v1941 = vrcp.pop %v1915
      %v1942 = vrcp.pop %v1918
      %v1943 = vrcp.pop %v1921
      %v1944 = vrcp.pop %v1924
      %v1945 = vrcp.pop %v1927
      %v1946 = vrcp.pop %v1930
      %v1947 = vmul.f32 %v1852, %v1931
      %v1948 = vmul.f32 %v1854, %v1932
      %v1949 = vmul.f32 %v1856, %v1933
      %v1950 = vmul.f32 %v1858, %v1934
      %v1951 = vmul.f32 %v1860, %v1935
      %v1952 = vmul.f32 %v1862, %v1936
      %v1953 = vmul.f32 %v1864, %v1937
      %v1954 = vmul.f32 %v1866, %v1938
      %v1955 = vmul.f32 %v1868, %v1939
      %v1956 = vmul.f32 %v1870, %v1940
      %v1957 = vmul.f32 %v1872, %v1941
      %v1958 = vmul.f32 %v1874, %v1942
      %v1959 = vmul.f32 %v1876, %v1943
      %v1960 = vmul.f32 %v1878, %v1944
      %v1961 = vmul.f32 %v1880, %v1945
      %v1962 = vmul.f32 %v1882, %v1946
      %v1963 = vpack.c.bf16 %v1948, %v1947
      %v1964 = vpack.c.bf16 %v1950, %v1949
      %v1965 = vpack.c.bf16 %v1952, %v1951
      %v1966 = vpack.c.bf16 %v1954, %v1953
      %v1967 = vpack.c.bf16 %v1956, %v1955
      %v1968 = vpack.c.bf16 %v1958, %v1957
      %v1969 = vpack.c.bf16 %v1960, %v1959
      %v1970 = vpack.c.bf16 %v1962, %v1961
      %1971 = vrot.lane.b32.xlu0 %v1479, 64
      %v1972 = vpop.permute.xlu0 %1971
      %1973 = vrot.lane.b32.xlu0 %v1480, 64
      %v1974 = vpop.permute.xlu0 %1973
      %v1978 = vsel %vm389, %v1963, 0
      %v1981 = vsel %vm389, %v1964, 0
      %1983 = vmatprep.subr.bf16.mxu0 0
      %1984 = vmatpush1.bf16.msra.mxu0 %v1972
      %1985 = vmatprep.subr.bf16.mxu0 0
      %1986 = vmatpush1.bf16.msra.mxu0 %v1974
      %1987 = vmatprep.subr.bf16.mxu0 0
      %1988 = vmatpush1.bf16.msra.mxu0 0
      %1989 = vmatprep.subr.bf16.mxu0 0
      %1990 = vmatpush1.bf16.msra.mxu0 0
      %1991 = vmatprep.subr.bf16.mxu0 0
      %1992 = vmatpush1.bf16.msra.mxu0 0
      %1993 = vmatprep.subr.bf16.mxu0 0
      %1994 = vmatpush1.bf16.msra.mxu0 0
      %1995 = vmatprep.subr.bf16.mxu0 0
      %1996 = vmatpush1.bf16.msra.mxu0 0
      %1997 = vmatprep.subr.bf16.mxu0 0
      %1998 = vmatpush1.bf16.msra.mxu0 0
      %1999 = vmatprep.subr.bf16.mxu0 0
      %2000 = vmatpush1.bf16.msra.mxu0 0
      %2001 = vmatprep.subr.bf16.mxu0 0
      %2002 = vmatpush1.bf16.msra.mxu0 0
      %2003 = vmatprep.subr.bf16.mxu0 0
      %2004 = vmatpush1.bf16.msra.mxu0 0
      %2005 = vmatprep.subr.bf16.mxu0 0
      %2006 = vmatpush1.bf16.msra.mxu0 0
      %2007 = vmatprep.subr.bf16.mxu0 0
      %2008 = vmatpush1.bf16.msra.mxu0 0
      %2009 = vmatprep.subr.bf16.mxu0 0
      %2010 = vmatpush1.bf16.msra.mxu0 0
      %2011 = vmatprep.subr.bf16.mxu0 0
      %2012 = vmatpush1.bf16.msra.mxu0 0
      %2013 = vmatprep.subr.bf16.mxu0 0
      %2014 = vmatpush1.bf16.msra.mxu0 0
      %2015 = vmatprep.mubr.bf16.mxu0 0
      %2016 = vmatmul.mubr.bf16.gmra.mrb[0].mxu0 %v1978
      %v2017 = vpop.f32.mrb[0].mxu0
      %v2018 = vadd.f32 0.0, %v2017
      %v2019 = vpop.f32.mrb[0].mxu0
      %v2020 = vpop.f32.mrb[0].mxu0
      %v2021 = vadd.f32 0.0, %v2020
      %v2022 = vpop.f32.mrb[0].mxu0
      %2023 = vmatprep.mubr.bf16.mxu0 0
      %2024 = vmatmul.mubr.bf16.gmra.mrb[0].mxu0 %v1981
      %v2025 = vpop.f32.mrb[0].mxu0
      %v2026 = vadd.f32 0.0, %v2025
      %v2027 = vpop.f32.mrb[0].mxu0
      %v2028 = vpop.f32.mrb[0].mxu0
      %v2029 = vadd.f32 0.0, %v2028
      %v2030 = vpop.f32.mrb[0].mxu0
      %2031 = vdwg.mxu0
      %2032 = vrot.lane.b32.xlu0 %v1481, 64
      %v2033 = vpop.permute.xlu0 %2032
      %2034 = vrot.lane.b32.xlu0 %v1482, 64
      %v2035 = vpop.permute.xlu0 %2034
      %v2039 = vsel %vm389, %v1965, 0
      %v2042 = vsel %vm389, %v1966, 0
      %2044 = vmatprep.subr.bf16.mxu0 0
      %2045 = vmatpush1.bf16.msra.mxu0 %v2033
      %2046 = vmatprep.subr.bf16.mxu0 0
      %2047 = vmatpush1.bf16.msra.mxu0 %v2035
      %2048 = vmatprep.subr.bf16.mxu0 0
      %2049 = vmatpush1.bf16.msra.mxu0 0
      %2050 = vmatprep.subr.bf16.mxu0 0
      %2051 = vmatpush1.bf16.msra.mxu0 0
      %2052 = vmatprep.subr.bf16.mxu0 0
      %2053 = vmatpush1.bf16.msra.mxu0 0
      %2054 = vmatprep.subr.bf16.mxu0 0
      %2055 = vmatpush1.bf16.msra.mxu0 0
      %2056 = vmatprep.subr.bf16.mxu0 0
      %2057 = vmatpush1.bf16.msra.mxu0 0
      %2058 = vmatprep.subr.bf16.mxu0 0
      %2059 = vmatpush1.bf16.msra.mxu0 0
      %2060 = vmatprep.subr.bf16.mxu0 0
      %2061 = vmatpush1.bf16.msra.mxu0 0
      %2062 = vmatprep.subr.bf16.mxu0 0
      %2063 = vmatpush1.bf16.msra.mxu0 0
      %2064 = vmatprep.subr.bf16.mxu0 0
      %2065 = vmatpush1.bf16.msra.mxu0 0
      %2066 = vmatprep.subr.bf16.mxu0 0
      %2067 = vmatpush1.bf16.msra.mxu0 0
      %2068 = vmatprep.subr.bf16.mxu0 0
      %2069 = vmatpush1.bf16.msra.mxu0 0
      %2070 = vmatprep.subr.bf16.mxu0 0
      %2071 = vmatpush1.bf16.msra.mxu0 0
      %2072 = vmatprep.subr.bf16.mxu0 0
      %2073 = vmatpush1.bf16.msra.mxu0 0
      %2074 = vmatprep.subr.bf16.mxu0 0
      %2075 = vmatpush1.bf16.msra.mxu0 0
      %2076 = vmatprep.mubr.bf16.mxu0 0
      %2077 = vmatmul.mubr.bf16.gmra.mrb[0].mxu0 %v2039
      %v2078 = vpop.f32.mrb[0].mxu0
      %v2079 = vadd.f32 0.0, %v2078
      %v2080 = vpop.f32.mrb[0].mxu0
      %v2081 = vpop.f32.mrb[0].mxu0
      %v2082 = vadd.f32 0.0, %v2081
      %v2083 = vpop.f32.mrb[0].mxu0
      %2084 = vmatprep.mubr.bf16.mxu0 0
      %2085 = vmatmul.mubr.bf16.gmra.mrb[0].mxu0 %v2042
      %v2086 = vpop.f32.mrb[0].mxu0
      %v2087 = vadd.f32 0.0, %v2086
      %v2088 = vpop.f32.mrb[0].mxu0
      %v2089 = vpop.f32.mrb[0].mxu0
      %v2090 = vadd.f32 0.0, %v2089
      %v2091 = vpop.f32.mrb[0].mxu0
      %2092 = vdwg.mxu0
      %2093 = vrot.lane.b32.xlu0 %v1483, 64
      %v2094 = vpop.permute.xlu0 %2093
      %2095 = vrot.lane.b32.xlu0 %v1484, 64
      %v2096 = vpop.permute.xlu0 %2095
      %v2100 = vsel %vm389, %v1967, 0
      %v2103 = vsel %vm389, %v1968, 0
      %2105 = vmatprep.subr.bf16.mxu0 0
      %2106 = vmatpush1.bf16.msra.mxu0 %v2094
      %2107 = vmatprep.subr.bf16.mxu0 0
      %2108 = vmatpush1.bf16.msra.mxu0 %v2096
      %2109 = vmatprep.subr.bf16.mxu0 0
      %2110 = vmatpush1.bf16.msra.mxu0 0
      %2111 = vmatprep.subr.bf16.mxu0 0
      %2112 = vmatpush1.bf16.msra.mxu0 0
      %2113 = vmatprep.subr.bf16.mxu0 0
      %2114 = vmatpush1.bf16.msra.mxu0 0
      %2115 = vmatprep.subr.bf16.mxu0 0
      %2116 = vmatpush1.bf16.msra.mxu0 0
      %2117 = vmatprep.subr.bf16.mxu0 0
      %2118 = vmatpush1.bf16.msra.mxu0 0
      %2119 = vmatprep.subr.bf16.mxu0 0
      %2120 = vmatpush1.bf16.msra.mxu0 0
      %2121 = vmatprep.subr.bf16.mxu0 0
      %2122 = vmatpush1.bf16.msra.mxu0 0
      %2123 = vmatprep.subr.bf16.mxu0 0
      %2124 = vmatpush1.bf16.msra.mxu0 0
      %2125 = vmatprep.subr.bf16.mxu0 0
      %2126 = vmatpush1.bf16.msra.mxu0 0
      %2127 = vmatprep.subr.bf16.mxu0 0
      %2128 = vmatpush1.bf16.msra.mxu0 0
      %2129 = vmatprep.subr.bf16.mxu0 0
      %2130 = vmatpush1.bf16.msra.mxu0 0
      %2131 = vmatprep.subr.bf16.mxu0 0
      %2132 = vmatpush1.bf16.msra.mxu0 0
      %2133 = vmatprep.subr.bf16.mxu0 0
      %2134 = vmatpush1.bf16.msra.mxu0 0
      %2135 = vmatprep.subr.bf16.mxu0 0
      %2136 = vmatpush1.bf16.msra.mxu0 0
      %2137 = vmatprep.mubr.bf16.mxu0 0
      %2138 = vmatmul.mubr.bf16.gmra.mrb[0].mxu0 %v2100
      %v2139 = vpop.f32.mrb[0].mxu0
      %v2140 = vadd.f32 0.0, %v2139
      %v2141 = vpop.f32.mrb[0].mxu0
      %v2142 = vpop.f32.mrb[0].mxu0
      %v2143 = vadd.f32 0.0, %v2142
      %v2144 = vpop.f32.mrb[0].mxu0
      %2145 = vmatprep.mubr.bf16.mxu0 0
      %2146 = vmatmul.mubr.bf16.gmra.mrb[0].mxu0 %v2103
      %v2147 = vpop.f32.mrb[0].mxu0
      %v2148 = vadd.f32 0.0, %v2147
      %v2149 = vpop.f32.mrb[0].mxu0
      %v2150 = vpop.f32.mrb[0].mxu0
      %v2151 = vadd.f32 0.0, %v2150
      %v2152 = vpop.f32.mrb[0].mxu0
      %2153 = vdwg.mxu0
      %2154 = vrot.lane.b32.xlu0 %v1485, 64
      %v2155 = vpop.permute.xlu0 %2154
      %2156 = vrot.lane.b32.xlu0 %v1486, 64
      %v2157 = vpop.permute.xlu0 %2156
      %v2161 = vsel %vm389, %v1969, 0
      %v2164 = vsel %vm389, %v1970, 0
      %2166 = vmatprep.subr.bf16.mxu0 0
      %2167 = vmatpush1.bf16.msra.mxu0 %v2155
      %2168 = vmatprep.subr.bf16.mxu0 0
      %2169 = vmatpush1.bf16.msra.mxu0 %v2157
      %2170 = vmatprep.subr.bf16.mxu0 0
      %2171 = vmatpush1.bf16.msra.mxu0 0
      %2172 = vmatprep.subr.bf16.mxu0 0
      %2173 = vmatpush1.bf16.msra.mxu0 0
      %2174 = vmatprep.subr.bf16.mxu0 0
      %2175 = vmatpush1.bf16.msra.mxu0 0
      %2176 = vmatprep.subr.bf16.mxu0 0
      %2177 = vmatpush1.bf16.msra.mxu0 0
      %2178 = vmatprep.subr.bf16.mxu0 0
      %2179 = vmatpush1.bf16.msra.mxu0 0
      %2180 = vmatprep.subr.bf16.mxu0 0
      %2181 = vmatpush1.bf16.msra.mxu0 0
      %2182 = vmatprep.subr.bf16.mxu0 0
      %2183 = vmatpush1.bf16.msra.mxu0 0
      %2184 = vmatprep.subr.bf16.mxu0 0
      %2185 = vmatpush1.bf16.msra.mxu0 0
      %2186 = vmatprep.subr.bf16.mxu0 0
      %2187 = vmatpush1.bf16.msra.mxu0 0
      %2188 = vmatprep.subr.bf16.mxu0 0
      %2189 = vmatpush1.bf16.msra.mxu0 0
      %2190 = vmatprep.subr.bf16.mxu0 0
      %2191 = vmatpush1.bf16.msra.mxu0 0
      %2192 = vmatprep.subr.bf16.mxu0 0
      %2193 = vmatpush1.bf16.msra.mxu0 0
      %2194 = vmatprep.subr.bf16.mxu0 0
      %2195 = vmatpush1.bf16.msra.mxu0 0
      %2196 = vmatprep.subr.bf16.mxu0 0
      %2197 = vmatpush1.bf16.msra.mxu0 0
      %2198 = vmatprep.mubr.bf16.mxu0 0
      %2199 = vmatmul.mubr.bf16.gmra.mrb[0].mxu0 %v2161
      %v2200 = vpop.f32.mrb[0].mxu0
      %v2201 = vadd.f32 0.0, %v2200
      %v2202 = vpop.f32.mrb[0].mxu0
      %v2203 = vpop.f32.mrb[0].mxu0
      %v2204 = vadd.f32 0.0, %v2203
      %v2205 = vpop.f32.mrb[0].mxu0
      %2206 = vmatprep.mubr.bf16.mxu0 0
      %2207 = vmatmul.mubr.bf16.gmra.mrb[0].mxu0 %v2164
      %v2208 = vpop.f32.mrb[0].mxu0
      %v2209 = vadd.f32 0.0, %v2208
      %v2210 = vpop.f32.mrb[0].mxu0
      %v2211 = vpop.f32.mrb[0].mxu0
      %v2212 = vadd.f32 0.0, %v2211
      %v2213 = vpop.f32.mrb[0].mxu0
      %2214 = vdwg.mxu0
      %2231 = vrot.lane.b32.xlu0 %v1417, 32
      %v2232 = vpop.permute.xlu0 %2231
      %2233 = vrot.lane.b32.xlu0 %v1420, 32
      %v2234 = vpop.permute.xlu0 %2233
      %2235 = vrot.lane.b32.xlu0 %v1425, 32
      %v2236 = vpop.permute.xlu0 %2235
      %2237 = vrot.lane.b32.xlu0 %v1428, 32
      %v2238 = vpop.permute.xlu0 %2237
      %2239 = vrot.lane.b32.xlu0 %v1433, 32
      %v2240 = vpop.permute.xlu0 %2239
      %2241 = vrot.lane.b32.xlu0 %v1436, 32
      %v2242 = vpop.permute.xlu0 %2241
      %2243 = vrot.lane.b32.xlu0 %v1441, 32
      %v2244 = vpop.permute.xlu0 %2243
      %2245 = vrot.lane.b32.xlu0 %v1444, 32
      %v2246 = vpop.permute.xlu0 %2245
      %2247 = vrot.lane.b32.xlu0 %v1449, 32
      %v2248 = vpop.permute.xlu0 %2247
      %2249 = vrot.lane.b32.xlu0 %v1452, 32
      %v2250 = vpop.permute.xlu0 %2249
      %2251 = vrot.lane.b32.xlu0 %v1457, 32
      %v2252 = vpop.permute.xlu0 %2251
      %2253 = vrot.lane.b32.xlu0 %v1460, 32
      %v2254 = vpop.permute.xlu0 %2253
      %2255 = vrot.lane.b32.xlu0 %v1465, 32
      %v2256 = vpop.permute.xlu0 %2255
      %2257 = vrot.lane.b32.xlu0 %v1468, 32
      %v2258 = vpop.permute.xlu0 %2257
      %2259 = vrot.lane.b32.xlu0 %v1473, 32
      %v2260 = vpop.permute.xlu0 %2259
      %2261 = vrot.lane.b32.xlu0 %v1476, 32
      %v2262 = vpop.permute.xlu0 %2261
      %v2279 = vadd.f32 %v2018, %v2232
      %v2280 = vadd.f32 %v2021, %v2234
      %v2281 = vadd.f32 %v2026, %v2236
      %v2282 = vadd.f32 %v2029, %v2238
      %v2283 = vadd.f32 %v2079, %v2240
      %v2284 = vadd.f32 %v2082, %v2242
      %v2285 = vadd.f32 %v2087, %v2244
      %v2286 = vadd.f32 %v2090, %v2246
      %v2287 = vadd.f32 %v2140, %v2248
      %v2288 = vadd.f32 %v2143, %v2250
      %v2289 = vadd.f32 %v2148, %v2252
      %v2290 = vadd.f32 %v2151, %v2254
      %v2291 = vadd.f32 %v2201, %v2256
      %v2292 = vadd.f32 %v2204, %v2258
      %v2293 = vadd.f32 %v2209, %v2260
      %v2294 = vadd.f32 %v2212, %v2262
      %v2295 = vmax.f32 %v2279, 0.0
      %v2296 = vmax.f32 %v2280, 0.0
      %v2297 = vmax.f32 %v2281, 0.0
      %v2298 = vmax.f32 %v2282, 0.0
      %v2299 = vmax.f32 %v2283, 0.0
      %v2300 = vmax.f32 %v2284, 0.0
      %v2301 = vmax.f32 %v2285, 0.0
      %v2302 = vmax.f32 %v2286, 0.0
      %v2303 = vmax.f32 %v2287, 0.0
      %v2304 = vmax.f32 %v2288, 0.0
      %v2305 = vmax.f32 %v2289, 0.0
      %v2306 = vmax.f32 %v2290, 0.0
      %v2307 = vmax.f32 %v2291, 0.0
      %v2308 = vmax.f32 %v2292, 0.0
      %v2309 = vmax.f32 %v2293, 0.0
      %v2310 = vmax.f32 %v2294, 0.0
      %v2311 = vpack.c.bf16 %v2296, %v2295
      %v2312 = vpack.c.bf16 %v2298, %v2297
      %v2313 = vpack.c.bf16 %v2300, %v2299
      %v2314 = vpack.c.bf16 %v2302, %v2301
      %v2315 = vpack.c.bf16 %v2304, %v2303
      %v2316 = vpack.c.bf16 %v2306, %v2305
      %v2317 = vpack.c.bf16 %v2308, %v2307
      %v2318 = vpack.c.bf16 %v2310, %v2309
      %v2319 = vld [vmem:[%s4] sm:$0xff]
      %v2320 = vld [vmem:[%s4 + $0x8] sm:$0xff]
      %v2321 = vld [vmem:[%s4 + $0x10] sm:$0xff]
      %v2322 = vld [vmem:[%s4 + $0x18] sm:$0xff]
      %v2323 = vpack.c.bf16 %v2320, %v2319
      %v2324 = vpack.c.bf16 %v2322, %v2321
      %v2325 = vld [vmem:[%s5] sm:$0x1]
      %v2327 = vlaneseq
      %v2328 = vshrl.u32 %v2327, 7
      %v2329 = vsub.s32 0, %v2328
      %v2330 = vrot.slane %v2325, %v2329
      %v2333 = vsel %vm389, %v2311, 0
      %v2336 = vsel %vm389, %v2312, 0
      %v2339 = vsel %vm389, %v2313, 0
      %v2342 = vsel %vm389, %v2314, 0
      %v2345 = vsel %vm389, %v2315, 0
      %v2348 = vsel %vm389, %v2316, 0
      %v2351 = vsel %vm389, %v2317, 0
      %v2354 = vsel %vm389, %v2318, 0
      %2356 = vmatprep.subr.bf16.mxu0 0
      %2357 = vmatpush1.bf16.msra.mxu0 %v2323
      %2358 = vmatprep.subr.bf16.mxu0 0
      %2359 = vmatpush1.bf16.msra.mxu0 %v2324
      %2360 = vmatprep.subr.bf16.mxu0 0
      %2361 = vmatpush1.bf16.msra.mxu0 0
      %2362 = vmatprep.subr.bf16.mxu0 0
      %2363 = vmatpush1.bf16.msra.mxu0 0
      %2364 = vmatprep.subr.bf16.mxu0 0
      %2365 = vmatpush1.bf16.msra.mxu0 0
      %2366 = vmatprep.subr.bf16.mxu0 0
      %2367 = vmatpush1.bf16.msra.mxu0 0
      %2368 = vmatprep.subr.bf16.mxu0 0
      %2369 = vmatpush1.bf16.msra.mxu0 0
      %2370 = vmatprep.subr.bf16.mxu0 0
      %2371 = vmatpush1.bf16.msra.mxu0 0
      %2372 = vmatprep.subr.bf16.mxu0 0
      %2373 = vmatpush1.bf16.msra.mxu0 0
      %2374 = vmatprep.subr.bf16.mxu0 0
      %2375 = vmatpush1.bf16.msra.mxu0 0
      %2376 = vmatprep.subr.bf16.mxu0 0
      %2377 = vmatpush1.bf16.msra.mxu0 0
      %2378 = vmatprep.subr.bf16.mxu0 0
      %2379 = vmatpush1.bf16.msra.mxu0 0
      %2380 = vmatprep.subr.bf16.mxu0 0
      %2381 = vmatpush1.bf16.msra.mxu0 0
      %2382 = vmatprep.subr.bf16.mxu0 0
      %2383 = vmatpush1.bf16.msra.mxu0 0
      %2384 = vmatprep.subr.bf16.mxu0 0
      %2385 = vmatpush1.bf16.msra.mxu0 0
      %2386 = vmatprep.subr.bf16.mxu0 0
      %2387 = vmatpush1.bf16.msra.mxu0 0
      %2388 = vmatprep.mubr.bf16.mxu0 0
      %2389 = vmatmul.mubr.bf16.gmra.mrb[0].mxu0 %v2333
      %v2390 = vpop.f32.mrb[0].mxu0
      %v2391 = vadd.f32 %v2330, %v2390
      %v2392 = vpop.f32.mrb[0].mxu0
      %v2393 = vpop.f32.mrb[0].mxu0
      %v2394 = vadd.f32 %v2330, %v2393
      %v2395 = vpop.f32.mrb[0].mxu0
      %2396 = vmatprep.mubr.bf16.mxu0 0
      %2397 = vmatmul.mubr.bf16.gmra.mrb[0].mxu0 %v2336
      %v2398 = vpop.f32.mrb[0].mxu0
      %v2399 = vadd.f32 %v2330, %v2398
      %v2400 = vpop.f32.mrb[0].mxu0
      %v2401 = vpop.f32.mrb[0].mxu0
      %v2402 = vadd.f32 %v2330, %v2401
      %v2403 = vpop.f32.mrb[0].mxu0
      %2404 = vmatprep.mubr.bf16.mxu0 0
      %2405 = vmatmul.mubr.bf16.gmra.mrb[0].mxu0 %v2339
      %v2406 = vpop.f32.mrb[0].mxu0
      %v2407 = vadd.f32 %v2330, %v2406
      %v2408 = vpop.f32.mrb[0].mxu0
      %v2409 = vpop.f32.mrb[0].mxu0
      %v2410 = vadd.f32 %v2330, %v2409
      %v2411 = vpop.f32.mrb[0].mxu0
      %2412 = vmatprep.mubr.bf16.mxu0 0
      %2413 = vmatmul.mubr.bf16.gmra.mrb[0].mxu0 %v2342
      %v2414 = vpop.f32.mrb[0].mxu0
      %v2415 = vadd.f32 %v2330, %v2414
      %v2416 = vpop.f32.mrb[0].mxu0
      %v2417 = vpop.f32.mrb[0].mxu0
      %v2418 = vadd.f32 %v2330, %v2417
      %v2419 = vpop.f32.mrb[0].mxu0
      %2420 = vmatprep.mubr.bf16.mxu0 0
      %2421 = vmatmul.mubr.bf16.gmra.mrb[0].mxu0 %v2345
      %v2422 = vpop.f32.mrb[0].mxu0
      %v2423 = vadd.f32 %v2330, %v2422
      %v2424 = vpop.f32.mrb[0].mxu0
      %v2425 = vpop.f32.mrb[0].mxu0
      %v2426 = vadd.f32 %v2330, %v2425
      %v2427 = vpop.f32.mrb[0].mxu0
      %2428 = vmatprep.mubr.bf16.mxu0 0
      %2429 = vmatmul.mubr.bf16.gmra.mrb[0].mxu0 %v2348
      %v2430 = vpop.f32.mrb[0].mxu0
      %v2431 = vadd.f32 %v2330, %v2430
      %v2432 = vpop.f32.mrb[0].mxu0
      %v2433 = vpop.f32.mrb[0].mxu0
      %v2434 = vadd.f32 %v2330, %v2433
      %v2435 = vpop.f32.mrb[0].mxu0
      %2436 = vmatprep.mubr.bf16.mxu0 0
      %2437 = vmatmul.mubr.bf16.gmra.mrb[0].mxu0 %v2351
      %v2438 = vpop.f32.mrb[0].mxu0
      %v2439 = vadd.f32 %v2330, %v2438
      %v2440 = vpop.f32.mrb[0].mxu0
      %v2441 = vpop.f32.mrb[0].mxu0
      %v2442 = vadd.f32 %v2330, %v2441
      %v2443 = vpop.f32.mrb[0].mxu0
      %2444 = vmatprep.mubr.bf16.mxu0 0
      %2445 = vmatmul.mubr.bf16.gmra.mrb[0].mxu0 %v2354
      %v2446 = vpop.f32.mrb[0].mxu0
      %v2447 = vadd.f32 %v2330, %v2446
      %v2448 = vpop.f32.mrb[0].mxu0
      %v2449 = vpop.f32.mrb[0].mxu0
      %v2450 = vadd.f32 %v2330, %v2449
      %v2451 = vpop.f32.mrb[0].mxu0
      %2452 = vdwg.mxu0
      %v2453 = vlaneseq
      %v2454 = vand.u32 %v2453, 127
      %vm2455 = vcmp.lt.s32.totalorder %v2454, 2
      %v2456 = vtanh.pop %v2391
      %v2457 = vtanh.pop %v2394
      %v2458 = vtanh.pop %v2399
      %v2459 = vtanh.pop %v2402
      %v2460 = vtanh.pop %v2407
      %v2461 = vtanh.pop %v2410
      %v2462 = vtanh.pop %v2415
      %v2463 = vtanh.pop %v2418
      %v2464 = vtanh.pop %v2423
      %v2465 = vtanh.pop %v2426
      %v2466 = vtanh.pop %v2431
      %v2467 = vtanh.pop %v2434
      %v2468 = vtanh.pop %v2439
      %v2469 = vtanh.pop %v2442
      %v2470 = vtanh.pop %v2447
      %v2471 = vtanh.pop %v2450
      %v2472 = vmax.f32 %v2391, 0.0
      %v2473 = vmax.f32 %v2394, 0.0
      %v2474 = vmax.f32 %v2399, 0.0
      %v2475 = vmax.f32 %v2402, 0.0
      %v2476 = vmax.f32 %v2407, 0.0
      %v2477 = vmax.f32 %v2410, 0.0
      %v2478 = vmax.f32 %v2415, 0.0
      %v2479 = vmax.f32 %v2418, 0.0
      %v2480 = vmax.f32 %v2423, 0.0
      %v2481 = vmax.f32 %v2426, 0.0
      %v2482 = vmax.f32 %v2431, 0.0
      %v2483 = vmax.f32 %v2434, 0.0
      %v2484 = vmax.f32 %v2439, 0.0
      %v2485 = vmax.f32 %v2442, 0.0
      %v2486 = vmax.f32 %v2447, 0.0
      %v2487 = vmax.f32 %v2450, 0.0
      %v2488 = vsel %vm2455, %v2456, %v2472
      %v2489 = vsel %vm2455, %v2457, %v2473
      %v2490 = vsel %vm2455, %v2458, %v2474
      %v2491 = vsel %vm2455, %v2459, %v2475
      %v2492 = vsel %vm2455, %v2460, %v2476
      %v2493 = vsel %vm2455, %v2461, %v2477
      %v2494 = vsel %vm2455, %v2462, %v2478
      %v2495 = vsel %vm2455, %v2463, %v2479
      %v2496 = vsel %vm2455, %v2464, %v2480
      %v2497 = vsel %vm2455, %v2465, %v2481
      %v2498 = vsel %vm2455, %v2466, %v2482
      %v2499 = vsel %vm2455, %v2467, %v2483
      %v2500 = vsel %vm2455, %v2468, %v2484
      %v2501 = vsel %vm2455, %v2469, %v2485
      %v2502 = vsel %vm2455, %v2470, %v2486
      %v2503 = vsel %vm2455, %v2471, %v2487
      %2505 = vset.pattern.permute.xlu0 0
      %2506 = vperm.xlu0 %2505, %v327
      %v2507 = vpop.permute.xlu0 %2506
      %2510 = vset.pattern.permute.xlu0 0
      %2511 = vperm.xlu0 %2510, %v328
      %v2512 = vpop.permute.xlu0 %2511
      %2515 = vset.pattern.permute.xlu0 0
      %2516 = vperm.xlu0 %2515, %v329
      %v2517 = vpop.permute.xlu0 %2516
      %2520 = vset.pattern.permute.xlu0 0
      %2521 = vperm.xlu0 %2520, %v330
      %v2522 = vpop.permute.xlu0 %2521
      %2525 = vset.pattern.permute.xlu0 0
      %2526 = vperm.xlu0 %2525, %v331
      %v2527 = vpop.permute.xlu0 %2526
      %2530 = vset.pattern.permute.xlu0 0
      %2531 = vperm.xlu0 %2530, %v332
      %v2532 = vpop.permute.xlu0 %2531
      %2535 = vset.pattern.permute.xlu0 0
      %2536 = vperm.xlu0 %2535, %v333
      %v2537 = vpop.permute.xlu0 %2536
      %2540 = vset.pattern.permute.xlu0 0
      %2541 = vperm.xlu0 %2540, %v334
      %v2542 = vpop.permute.xlu0 %2541
      %2545 = vset.pattern.permute.xlu0 0
      %2546 = vperm.xlu0 %2545, %v335
      %v2547 = vpop.permute.xlu0 %2546
      %2550 = vset.pattern.permute.xlu0 0
      %2551 = vperm.xlu0 %2550, %v336
      %v2552 = vpop.permute.xlu0 %2551
      %2555 = vset.pattern.permute.xlu0 0
      %2556 = vperm.xlu0 %2555, %v337
      %v2557 = vpop.permute.xlu0 %2556
      %2560 = vset.pattern.permute.xlu0 0
      %2561 = vperm.xlu0 %2560, %v338
      %v2562 = vpop.permute.xlu0 %2561
      %2565 = vset.pattern.permute.xlu0 0
      %2566 = vperm.xlu0 %2565, %v339
      %v2567 = vpop.permute.xlu0 %2566
      %2570 = vset.pattern.permute.xlu0 0
      %2571 = vperm.xlu0 %2570, %v340
      %v2572 = vpop.permute.xlu0 %2571
      %2575 = vset.pattern.permute.xlu0 0
      %2576 = vperm.xlu0 %2575, %v341
      %v2577 = vpop.permute.xlu0 %2576
      %2580 = vset.pattern.permute.xlu0 0
      %2581 = vperm.xlu0 %2580, %v342
      %v2582 = vpop.permute.xlu0 %2581
      %v2584 = vmul.f32 %v2391, %v2507
      %v2585 = vmul.f32 %v2394, %v2512
      %v2586 = vmul.f32 %v2399, %v2517
      %v2587 = vmul.f32 %v2402, %v2522
      %v2588 = vmul.f32 %v2407, %v2527
      %v2589 = vmul.f32 %v2410, %v2532
      %v2590 = vmul.f32 %v2415, %v2537
      %v2591 = vmul.f32 %v2418, %v2542
      %v2592 = vmul.f32 %v2423, %v2547
      %v2593 = vmul.f32 %v2426, %v2552
      %v2594 = vmul.f32 %v2431, %v2557
      %v2595 = vmul.f32 %v2434, %v2562
      %v2596 = vmul.f32 %v2439, %v2567
      %v2597 = vmul.f32 %v2442, %v2572
      %v2598 = vmul.f32 %v2447, %v2577
      %v2599 = vmul.f32 %v2450, %v2582
      %2600 = vset.pattern.permute.xlu0 1
      %2601 = vperm.xlu0 %2600, %v327
      %v2602 = vpop.permute.xlu0 %2601
      %2604 = vset.pattern.permute.xlu0 1
      %2605 = vperm.xlu0 %2604, %v328
      %v2606 = vpop.permute.xlu0 %2605
      %2608 = vset.pattern.permute.xlu0 1
      %2609 = vperm.xlu0 %2608, %v329
      %v2610 = vpop.permute.xlu0 %2609
      %2612 = vset.pattern.permute.xlu0 1
      %2613 = vperm.xlu0 %2612, %v330
      %v2614 = vpop.permute.xlu0 %2613
      %2616 = vset.pattern.permute.xlu0 1
      %2617 = vperm.xlu0 %2616, %v331
      %v2618 = vpop.permute.xlu0 %2617
      %2620 = vset.pattern.permute.xlu0 1
      %2621 = vperm.xlu0 %2620, %v332
      %v2622 = vpop.permute.xlu0 %2621
      %2624 = vset.pattern.permute.xlu0 1
      %2625 = vperm.xlu0 %2624, %v333
      %v2626 = vpop.permute.xlu0 %2625
      %2628 = vset.pattern.permute.xlu0 1
      %2629 = vperm.xlu0 %2628, %v334
      %v2630 = vpop.permute.xlu0 %2629
      %2632 = vset.pattern.permute.xlu0 1
      %2633 = vperm.xlu0 %2632, %v335
      %v2634 = vpop.permute.xlu0 %2633
      %2636 = vset.pattern.permute.xlu0 1
      %2637 = vperm.xlu0 %2636, %v336
      %v2638 = vpop.permute.xlu0 %2637
      %2640 = vset.pattern.permute.xlu0 1
      %2641 = vperm.xlu0 %2640, %v337
      %v2642 = vpop.permute.xlu0 %2641
      %2644 = vset.pattern.permute.xlu0 1
      %2645 = vperm.xlu0 %2644, %v338
      %v2646 = vpop.permute.xlu0 %2645
      %2648 = vset.pattern.permute.xlu0 1
      %2649 = vperm.xlu0 %2648, %v339
      %v2650 = vpop.permute.xlu0 %2649
      %2652 = vset.pattern.permute.xlu0 1
      %2653 = vperm.xlu0 %2652, %v340
      %v2654 = vpop.permute.xlu0 %2653
      %2656 = vset.pattern.permute.xlu0 1
      %2657 = vperm.xlu0 %2656, %v341
      %v2658 = vpop.permute.xlu0 %2657
      %2660 = vset.pattern.permute.xlu0 1
      %2661 = vperm.xlu0 %2660, %v342
      %v2662 = vpop.permute.xlu0 %2661
      %v2664 = vmul.f32 %v2391, %v2602
      %v2665 = vmul.f32 %v2394, %v2606
      %v2666 = vmul.f32 %v2399, %v2610
      %v2667 = vmul.f32 %v2402, %v2614
      %v2668 = vmul.f32 %v2407, %v2618
      %v2669 = vmul.f32 %v2410, %v2622
      %v2670 = vmul.f32 %v2415, %v2626
      %v2671 = vmul.f32 %v2418, %v2630
      %v2672 = vmul.f32 %v2423, %v2634
      %v2673 = vmul.f32 %v2426, %v2638
      %v2674 = vmul.f32 %v2431, %v2642
      %v2675 = vmul.f32 %v2434, %v2646
      %v2676 = vmul.f32 %v2439, %v2650
      %v2677 = vmul.f32 %v2442, %v2654
      %v2678 = vmul.f32 %v2447, %v2658
      %v2679 = vmul.f32 %v2450, %v2662
      %2680 = vset.pattern.permute.xlu0 2
      %2681 = vperm.xlu0 %2680, %v327
      %v2682 = vpop.permute.xlu0 %2681
      %2684 = vset.pattern.permute.xlu0 2
      %2685 = vperm.xlu0 %2684, %v328
      %v2686 = vpop.permute.xlu0 %2685
      %2688 = vset.pattern.permute.xlu0 2
      %2689 = vperm.xlu0 %2688, %v329
      %v2690 = vpop.permute.xlu0 %2689
      %2692 = vset.pattern.permute.xlu0 2
      %2693 = vperm.xlu0 %2692, %v330
      %v2694 = vpop.permute.xlu0 %2693
      %2696 = vset.pattern.permute.xlu0 2
      %2697 = vperm.xlu0 %2696, %v331
      %v2698 = vpop.permute.xlu0 %2697
      %2700 = vset.pattern.permute.xlu0 2
      %2701 = vperm.xlu0 %2700, %v332
      %v2702 = vpop.permute.xlu0 %2701
      %2704 = vset.pattern.permute.xlu0 2
      %2705 = vperm.xlu0 %2704, %v333
      %v2706 = vpop.permute.xlu0 %2705
      %2708 = vset.pattern.permute.xlu0 2
      %2709 = vperm.xlu0 %2708, %v334
      %v2710 = vpop.permute.xlu0 %2709
      %2712 = vset.pattern.permute.xlu0 2
      %2713 = vperm.xlu0 %2712, %v335
      %v2714 = vpop.permute.xlu0 %2713
      %2716 = vset.pattern.permute.xlu0 2
      %2717 = vperm.xlu0 %2716, %v336
      %v2718 = vpop.permute.xlu0 %2717
      %2720 = vset.pattern.permute.xlu0 2
      %2721 = vperm.xlu0 %2720, %v337
      %v2722 = vpop.permute.xlu0 %2721
      %2724 = vset.pattern.permute.xlu0 2
      %2725 = vperm.xlu0 %2724, %v338
      %v2726 = vpop.permute.xlu0 %2725
      %2728 = vset.pattern.permute.xlu0 2
      %2729 = vperm.xlu0 %2728, %v339
      %v2730 = vpop.permute.xlu0 %2729
      %2732 = vset.pattern.permute.xlu0 2
      %2733 = vperm.xlu0 %2732, %v340
      %v2734 = vpop.permute.xlu0 %2733
      %2736 = vset.pattern.permute.xlu0 2
      %2737 = vperm.xlu0 %2736, %v341
      %v2738 = vpop.permute.xlu0 %2737
      %2740 = vset.pattern.permute.xlu0 2
      %2741 = vperm.xlu0 %2740, %v342
      %v2742 = vpop.permute.xlu0 %2741
      %v2744 = vmul.f32 %v2391, %v2682
      %v2745 = vmul.f32 %v2394, %v2686
      %v2746 = vmul.f32 %v2399, %v2690
      %v2747 = vmul.f32 %v2402, %v2694
      %v2748 = vmul.f32 %v2407, %v2698
      %v2749 = vmul.f32 %v2410, %v2702
      %v2750 = vmul.f32 %v2415, %v2706
      %v2751 = vmul.f32 %v2418, %v2710
      %v2752 = vmul.f32 %v2423, %v2714
      %v2753 = vmul.f32 %v2426, %v2718
      %v2754 = vmul.f32 %v2431, %v2722
      %v2755 = vmul.f32 %v2434, %v2726
      %v2756 = vmul.f32 %v2439, %v2730
      %v2757 = vmul.f32 %v2442, %v2734
      %v2758 = vmul.f32 %v2447, %v2738
      %v2759 = vmul.f32 %v2450, %v2742
      %2776 = vrot.lane.b32.xlu0 %v2391, 101
      %v2777 = vpop.permute.xlu0 %2776
      %2778 = vrot.lane.b32.xlu0 %v2394, 101
      %v2779 = vpop.permute.xlu0 %2778
      %2780 = vrot.lane.b32.xlu0 %v2399, 101
      %v2781 = vpop.permute.xlu0 %2780
      %2782 = vrot.lane.b32.xlu0 %v2402, 101
      %v2783 = vpop.permute.xlu0 %2782
      %2784 = vrot.lane.b32.xlu0 %v2407, 101
      %v2785 = vpop.permute.xlu0 %2784
      %2786 = vrot.lane.b32.xlu0 %v2410, 101
      %v2787 = vpop.permute.xlu0 %2786
      %2788 = vrot.lane.b32.xlu0 %v2415, 101
      %v2789 = vpop.permute.xlu0 %2788
      %2790 = vrot.lane.b32.xlu0 %v2418, 101
      %v2791 = vpop.permute.xlu0 %2790
      %2792 = vrot.lane.b32.xlu0 %v2423, 101
      %v2793 = vpop.permute.xlu0 %2792
      %2794 = vrot.lane.b32.xlu0 %v2426, 101
      %v2795 = vpop.permute.xlu0 %2794
      %2796 = vrot.lane.b32.xlu0 %v2431, 101
      %v2797 = vpop.permute.xlu0 %2796
      %2798 = vrot.lane.b32.xlu0 %v2434, 101
      %v2799 = vpop.permute.xlu0 %2798
      %2800 = vrot.lane.b32.xlu0 %v2439, 101
      %v2801 = vpop.permute.xlu0 %2800
      %2802 = vrot.lane.b32.xlu0 %v2442, 101
      %v2803 = vpop.permute.xlu0 %2802
      %2804 = vrot.lane.b32.xlu0 %v2447, 101
      %v2805 = vpop.permute.xlu0 %2804
      %2806 = vrot.lane.b32.xlu0 %v2450, 101
      %v2807 = vpop.permute.xlu0 %2806
      %2840 = vrot.lane.b32.xlu0 %v2584, 103
      %v2841 = vpop.permute.xlu0 %2840
      %2842 = vrot.lane.b32.xlu0 %v2585, 103
      %v2843 = vpop.permute.xlu0 %2842
      %2844 = vrot.lane.b32.xlu0 %v2586, 103
      %v2845 = vpop.permute.xlu0 %2844
      %2846 = vrot.lane.b32.xlu0 %v2587, 103
      %v2847 = vpop.permute.xlu0 %2846
      %2848 = vrot.lane.b32.xlu0 %v2588, 103
      %v2849 = vpop.permute.xlu0 %2848
      %2850 = vrot.lane.b32.xlu0 %v2589, 103
      %v2851 = vpop.permute.xlu0 %2850
      %2852 = vrot.lane.b32.xlu0 %v2590, 103
      %v2853 = vpop.permute.xlu0 %2852
      %2854 = vrot.lane.b32.xlu0 %v2591, 103
      %v2855 = vpop.permute.xlu0 %2854
      %2856 = vrot.lane.b32.xlu0 %v2592, 103
      %v2857 = vpop.permute.xlu0 %2856
      %2858 = vrot.lane.b32.xlu0 %v2593, 103
      %v2859 = vpop.permute.xlu0 %2858
      %2860 = vrot.lane.b32.xlu0 %v2594, 103
      %v2861 = vpop.permute.xlu0 %2860
      %2862 = vrot.lane.b32.xlu0 %v2595, 103
      %v2863 = vpop.permute.xlu0 %2862
      %2864 = vrot.lane.b32.xlu0 %v2596, 103
      %v2865 = vpop.permute.xlu0 %2864
      %2866 = vrot.lane.b32.xlu0 %v2597, 103
      %v2867 = vpop.permute.xlu0 %2866
      %2868 = vrot.lane.b32.xlu0 %v2598, 103
      %v2869 = vpop.permute.xlu0 %2868
      %2870 = vrot.lane.b32.xlu0 %v2599, 103
      %v2871 = vpop.permute.xlu0 %2870
      %2904 = vrot.lane.b32.xlu0 %v2664, 105
      %v2905 = vpop.permute.xlu0 %2904
      %2906 = vrot.lane.b32.xlu0 %v2665, 105
      %v2907 = vpop.permute.xlu0 %2906
      %2908 = vrot.lane.b32.xlu0 %v2666, 105
      %v2909 = vpop.permute.xlu0 %2908
      %2910 = vrot.lane.b32.xlu0 %v2667, 105
      %v2911 = vpop.permute.xlu0 %2910
      %2912 = vrot.lane.b32.xlu0 %v2668, 105
      %v2913 = vpop.permute.xlu0 %2912
      %2914 = vrot.lane.b32.xlu0 %v2669, 105
      %v2915 = vpop.permute.xlu0 %2914
      %2916 = vrot.lane.b32.xlu0 %v2670, 105
      %v2917 = vpop.permute.xlu0 %2916
      %2918 = vrot.lane.b32.xlu0 %v2671, 105
      %v2919 = vpop.permute.xlu0 %2918
      %2920 = vrot.lane.b32.xlu0 %v2672, 105
      %v2921 = vpop.permute.xlu0 %2920
      %2922 = vrot.lane.b32.xlu0 %v2673, 105
      %v2923 = vpop.permute.xlu0 %2922
      %2924 = vrot.lane.b32.xlu0 %v2674, 105
      %v2925 = vpop.permute.xlu0 %2924
      %2926 = vrot.lane.b32.xlu0 %v2675, 105
      %v2927 = vpop.permute.xlu0 %2926
      %2928 = vrot.lane.b32.xlu0 %v2676, 105
      %v2929 = vpop.permute.xlu0 %2928
      %2930 = vrot.lane.b32.xlu0 %v2677, 105
      %v2931 = vpop.permute.xlu0 %2930
      %2932 = vrot.lane.b32.xlu0 %v2678, 105
      %v2933 = vpop.permute.xlu0 %2932
      %2934 = vrot.lane.b32.xlu0 %v2679, 105
      %v2935 = vpop.permute.xlu0 %2934
      %2968 = vrot.lane.b32.xlu0 %v2744, 107
      %v2969 = vpop.permute.xlu0 %2968
      %2970 = vrot.lane.b32.xlu0 %v2745, 107
      %v2971 = vpop.permute.xlu0 %2970
      %2972 = vrot.lane.b32.xlu0 %v2746, 107
      %v2973 = vpop.permute.xlu0 %2972
      %2974 = vrot.lane.b32.xlu0 %v2747, 107
      %v2975 = vpop.permute.xlu0 %2974
      %2976 = vrot.lane.b32.xlu0 %v2748, 107
      %v2977 = vpop.permute.xlu0 %2976
      %2978 = vrot.lane.b32.xlu0 %v2749, 107
      %v2979 = vpop.permute.xlu0 %2978
      %2980 = vrot.lane.b32.xlu0 %v2750, 107
      %v2981 = vpop.permute.xlu0 %2980
      %2982 = vrot.lane.b32.xlu0 %v2751, 107
      %v2983 = vpop.permute.xlu0 %2982
      %2984 = vrot.lane.b32.xlu0 %v2752, 107
      %v2985 = vpop.permute.xlu0 %2984
      %2986 = vrot.lane.b32.xlu0 %v2753, 107
      %v2987 = vpop.permute.xlu0 %2986
      %2988 = vrot.lane.b32.xlu0 %v2754, 107
      %v2989 = vpop.permute.xlu0 %2988
      %2990 = vrot.lane.b32.xlu0 %v2755, 107
      %v2991 = vpop.permute.xlu0 %2990
      %2992 = vrot.lane.b32.xlu0 %v2756, 107
      %v2993 = vpop.permute.xlu0 %2992
      %2994 = vrot.lane.b32.xlu0 %v2757, 107
      %v2995 = vpop.permute.xlu0 %2994
      %2996 = vrot.lane.b32.xlu0 %v2758, 107
      %v2997 = vpop.permute.xlu0 %2996
      %2998 = vrot.lane.b32.xlu0 %v2759, 107
      %v2999 = vpop.permute.xlu0 %2998
      %vm3016 = vcmask 15360
      %v3017 = vsel %vm3016, %v2777, %v2841
      %v3018 = vsel %vm3016, %v2779, %v2843
      %v3019 = vsel %vm3016, %v2781, %v2845
      %v3020 = vsel %vm3016, %v2783, %v2847
      %v3021 = vsel %vm3016, %v2785, %v2849
      %v3022 = vsel %vm3016, %v2787, %v2851
      %v3023 = vsel %vm3016, %v2789, %v2853
      %v3024 = vsel %vm3016, %v2791, %v2855
      %v3025 = vsel %vm3016, %v2793, %v2857
      %v3026 = vsel %vm3016, %v2795, %v2859
      %v3027 = vsel %vm3016, %v2797, %v2861
      %v3028 = vsel %vm3016, %v2799, %v2863
      %v3029 = vsel %vm3016, %v2801, %v2865
      %v3030 = vsel %vm3016, %v2803, %v2867
      %v3031 = vsel %vm3016, %v2805, %v2869
      %v3032 = vsel %vm3016, %v2807, %v2871
      %vm3033 = vcmask 31744
      %v3034 = vsel %vm3033, %v3017, %v2905
      %v3035 = vsel %vm3033, %v3018, %v2907
      %v3036 = vsel %vm3033, %v3019, %v2909
      %v3037 = vsel %vm3033, %v3020, %v2911
      %v3038 = vsel %vm3033, %v3021, %v2913
      %v3039 = vsel %vm3033, %v3022, %v2915
      %v3040 = vsel %vm3033, %v3023, %v2917
      %v3041 = vsel %vm3033, %v3024, %v2919
      %v3042 = vsel %vm3033, %v3025, %v2921
      %v3043 = vsel %vm3033, %v3026, %v2923
      %v3044 = vsel %vm3033, %v3027, %v2925
      %v3045 = vsel %vm3033, %v3028, %v2927
      %v3046 = vsel %vm3033, %v3029, %v2929
      %v3047 = vsel %vm3033, %v3030, %v2931
      %v3048 = vsel %vm3033, %v3031, %v2933
      %v3049 = vsel %vm3033, %v3032, %v2935
      %vm3050 = vcmask 48128
      %v3051 = vsel %vm3050, %v3034, %v2969
      %v3052 = vsel %vm3050, %v3035, %v2971
      %v3053 = vsel %vm3050, %v3036, %v2973
      %v3054 = vsel %vm3050, %v3037, %v2975
      %v3055 = vsel %vm3050, %v3038, %v2977
      %v3056 = vsel %vm3050, %v3039, %v2979
      %v3057 = vsel %vm3050, %v3040, %v2981
      %v3058 = vsel %vm3050, %v3041, %v2983
      %v3059 = vsel %vm3050, %v3042, %v2985
      %v3060 = vsel %vm3050, %v3043, %v2987
      %v3061 = vsel %vm3050, %v3044, %v2989
      %v3062 = vsel %vm3050, %v3045, %v2991
      %v3063 = vsel %vm3050, %v3046, %v2993
      %v3064 = vsel %vm3050, %v3047, %v2995
      %v3065 = vsel %vm3050, %v3048, %v2997
      %v3066 = vsel %vm3050, %v3049, %v2999
      %v3067 = vpack.c.bf16 %v3052, %v3051
      %v3068 = vpack.c.bf16 %v3054, %v3053
      %v3069 = vpack.c.bf16 %v3056, %v3055
      %v3070 = vpack.c.bf16 %v3058, %v3057
      %v3071 = vpack.c.bf16 %v3060, %v3059
      %v3072 = vpack.c.bf16 %v3062, %v3061
      %v3073 = vpack.c.bf16 %v3064, %v3063
      %v3074 = vpack.c.bf16 %v3066, %v3065
      %3075 = vmatprep.subr.bf16.mxu0 0
      %3076 = vmatpush1.bf16.msra.mxu0 %v3067
      %3077 = vmatprep.subr.bf16.mxu0 0
      %3078 = vmatpush1.bf16.msra.mxu0 %v3068
      %3079 = vmatprep.subr.bf16.mxu0 0
      %3080 = vmatpush1.bf16.msra.mxu0 0
      %3081 = vmatprep.subr.bf16.mxu0 0
      %3082 = vmatpush1.bf16.msra.mxu0 0
      %3083 = vmatprep.subr.bf16.mxu0 0
      %3084 = vmatpush1.bf16.msra.mxu0 0
      %3085 = vmatprep.subr.bf16.mxu0 0
      %3086 = vmatpush1.bf16.msra.mxu0 0
      %3087 = vmatprep.subr.bf16.mxu0 0
      %3088 = vmatpush1.bf16.msra.mxu0 0
      %3089 = vmatprep.subr.bf16.mxu0 0
      %3090 = vmatpush1.bf16.msra.mxu0 0
      %3091 = vmatprep.subr.bf16.mxu0 0
      %3092 = vmatpush1.bf16.msra.mxu0 0
      %3093 = vmatprep.subr.bf16.mxu0 0
      %3094 = vmatpush1.bf16.msra.mxu0 0
      %3095 = vmatprep.subr.bf16.mxu0 0
      %3096 = vmatpush1.bf16.msra.mxu0 0
      %3097 = vmatprep.subr.bf16.mxu0 0
      %3098 = vmatpush1.bf16.msra.mxu0 0
      %3099 = vmatprep.subr.bf16.mxu0 0
      %3100 = vmatpush1.bf16.msra.mxu0 0
      %3101 = vmatprep.subr.bf16.mxu0 0
      %3102 = vmatpush1.bf16.msra.mxu0 0
      %3103 = vmatprep.subr.bf16.mxu0 0
      %3104 = vmatpush1.bf16.msra.mxu0 0
      %3105 = vmatprep.subr.bf16.mxu0 0
      %3106 = vmatpush1.bf16.msra.mxu0 0
      %3107 = vmatprep.mubr.bf16.mxu0 0
      %3108 = vmatmul.mubr.bf16.gmra.mrb[0].mxu0 %v1978
      %v3109 = vpop.f32.mrb[0].mxu0
      %v3110 = vadd.f32 0.0, %v3109
      %v3111 = vpop.f32.mrb[0].mxu0
      %v3112 = vpop.f32.mrb[0].mxu0
      %v3113 = vadd.f32 0.0, %v3112
      %v3114 = vpop.f32.mrb[0].mxu0
      %3115 = vmatprep.mubr.bf16.mxu0 0
      %3116 = vmatmul.mubr.bf16.gmra.mrb[0].mxu0 %v1981
      %v3117 = vpop.f32.mrb[0].mxu0
      %v3118 = vadd.f32 0.0, %v3117
      %v3119 = vpop.f32.mrb[0].mxu0
      %v3120 = vpop.f32.mrb[0].mxu0
      %v3121 = vadd.f32 0.0, %v3120
      %v3122 = vpop.f32.mrb[0].mxu0
      %3123 = vdwg.mxu0
      %3124 = vmatprep.subr.bf16.mxu0 0
      %3125 = vmatpush1.bf16.msra.mxu0 %v3069
      %3126 = vmatprep.subr.bf16.mxu0 0
      %3127 = vmatpush1.bf16.msra.mxu0 %v3070
      %3128 = vmatprep.subr.bf16.mxu0 0
      %3129 = vmatpush1.bf16.msra.mxu0 0
      %3130 = vmatprep.subr.bf16.mxu0 0
      %3131 = vmatpush1.bf16.msra.mxu0 0
      %3132 = vmatprep.subr.bf16.mxu0 0
      %3133 = vmatpush1.bf16.msra.mxu0 0
      %3134 = vmatprep.subr.bf16.mxu0 0
      %3135 = vmatpush1.bf16.msra.mxu0 0
      %3136 = vmatprep.subr.bf16.mxu0 0
      %3137 = vmatpush1.bf16.msra.mxu0 0
      %3138 = vmatprep.subr.bf16.mxu0 0
      %3139 = vmatpush1.bf16.msra.mxu0 0
      %3140 = vmatprep.subr.bf16.mxu0 0
      %3141 = vmatpush1.bf16.msra.mxu0 0
      %3142 = vmatprep.subr.bf16.mxu0 0
      %3143 = vmatpush1.bf16.msra.mxu0 0
      %3144 = vmatprep.subr.bf16.mxu0 0
      %3145 = vmatpush1.bf16.msra.mxu0 0
      %3146 = vmatprep.subr.bf16.mxu0 0
      %3147 = vmatpush1.bf16.msra.mxu0 0
      %3148 = vmatprep.subr.bf16.mxu0 0
      %3149 = vmatpush1.bf16.msra.mxu0 0
      %3150 = vmatprep.subr.bf16.mxu0 0
      %3151 = vmatpush1.bf16.msra.mxu0 0
      %3152 = vmatprep.subr.bf16.mxu0 0
      %3153 = vmatpush1.bf16.msra.mxu0 0
      %3154 = vmatprep.subr.bf16.mxu0 0
      %3155 = vmatpush1.bf16.msra.mxu0 0
      %3156 = vmatprep.mubr.bf16.mxu0 0
      %3157 = vmatmul.mubr.bf16.gmra.mrb[0].mxu0 %v2039
      %v3158 = vpop.f32.mrb[0].mxu0
      %v3159 = vadd.f32 0.0, %v3158
      %v3160 = vpop.f32.mrb[0].mxu0
      %v3161 = vpop.f32.mrb[0].mxu0
      %v3162 = vadd.f32 0.0, %v3161
      %v3163 = vpop.f32.mrb[0].mxu0
      %3164 = vmatprep.mubr.bf16.mxu0 0
      %3165 = vmatmul.mubr.bf16.gmra.mrb[0].mxu0 %v2042
      %v3166 = vpop.f32.mrb[0].mxu0
      %v3167 = vadd.f32 0.0, %v3166
      %v3168 = vpop.f32.mrb[0].mxu0
      %v3169 = vpop.f32.mrb[0].mxu0
      %v3170 = vadd.f32 0.0, %v3169
      %v3171 = vpop.f32.mrb[0].mxu0
      %3172 = vdwg.mxu0
      %3173 = vmatprep.subr.bf16.mxu0 0
      %3174 = vmatpush1.bf16.msra.mxu0 %v3071
      %3175 = vmatprep.subr.bf16.mxu0 0
      %3176 = vmatpush1.bf16.msra.mxu0 %v3072
      %3177 = vmatprep.subr.bf16.mxu0 0
      %3178 = vmatpush1.bf16.msra.mxu0 0
      %3179 = vmatprep.subr.bf16.mxu0 0
      %3180 = vmatpush1.bf16.msra.mxu0 0
      %3181 = vmatprep.subr.bf16.mxu0 0
      %3182 = vmatpush1.bf16.msra.mxu0 0
      %3183 = vmatprep.subr.bf16.mxu0 0
      %3184 = vmatpush1.bf16.msra.mxu0 0
      %3185 = vmatprep.subr.bf16.mxu0 0
      %3186 = vmatpush1.bf16.msra.mxu0 0
      %3187 = vmatprep.subr.bf16.mxu0 0
      %3188 = vmatpush1.bf16.msra.mxu0 0
      %3189 = vmatprep.subr.bf16.mxu0 0
      %3190 = vmatpush1.bf16.msra.mxu0 0
      %3191 = vmatprep.subr.bf16.mxu0 0
      %3192 = vmatpush1.bf16.msra.mxu0 0
      %3193 = vmatprep.subr.bf16.mxu0 0
      %3194 = vmatpush1.bf16.msra.mxu0 0
      %3195 = vmatprep.subr.bf16.mxu0 0
      %3196 = vmatpush1.bf16.msra.mxu0 0
      %3197 = vmatprep.subr.bf16.mxu0 0
      %3198 = vmatpush1.bf16.msra.mxu0 0
      %3199 = vmatprep.subr.bf16.mxu0 0
      %3200 = vmatpush1.bf16.msra.mxu0 0
      %3201 = vmatprep.subr.bf16.mxu0 0
      %3202 = vmatpush1.bf16.msra.mxu0 0
      %3203 = vmatprep.subr.bf16.mxu0 0
      %3204 = vmatpush1.bf16.msra.mxu0 0
      %3205 = vmatprep.mubr.bf16.mxu0 0
      %3206 = vmatmul.mubr.bf16.gmra.mrb[0].mxu0 %v2100
      %v3207 = vpop.f32.mrb[0].mxu0
      %v3208 = vadd.f32 0.0, %v3207
      %v3209 = vpop.f32.mrb[0].mxu0
      %v3210 = vpop.f32.mrb[0].mxu0
      %v3211 = vadd.f32 0.0, %v3210
      %v3212 = vpop.f32.mrb[0].mxu0
      %3213 = vmatprep.mubr.bf16.mxu0 0
      %3214 = vmatmul.mubr.bf16.gmra.mrb[0].mxu0 %v2103
      %v3215 = vpop.f32.mrb[0].mxu0
      %v3216 = vadd.f32 0.0, %v3215
      %v3217 = vpop.f32.mrb[0].mxu0
      %v3218 = vpop.f32.mrb[0].mxu0
      %v3219 = vadd.f32 0.0, %v3218
      %v3220 = vpop.f32.mrb[0].mxu0
      %3221 = vdwg.mxu0
      %3222 = vmatprep.subr.bf16.mxu0 0
      %3223 = vmatpush1.bf16.msra.mxu0 %v3073
      %3224 = vmatprep.subr.bf16.mxu0 0
      %3225 = vmatpush1.bf16.msra.mxu0 %v3074
      %3226 = vmatprep.subr.bf16.mxu0 0
      %3227 = vmatpush1.bf16.msra.mxu0 0
      %3228 = vmatprep.subr.bf16.mxu0 0
      %3229 = vmatpush1.bf16.msra.mxu0 0
      %3230 = vmatprep.subr.bf16.mxu0 0
      %3231 = vmatpush1.bf16.msra.mxu0 0
      %3232 = vmatprep.subr.bf16.mxu0 0
      %3233 = vmatpush1.bf16.msra.mxu0 0
      %3234 = vmatprep.subr.bf16.mxu0 0
      %3235 = vmatpush1.bf16.msra.mxu0 0
      %3236 = vmatprep.subr.bf16.mxu0 0
      %3237 = vmatpush1.bf16.msra.mxu0 0
      %3238 = vmatprep.subr.bf16.mxu0 0
      %3239 = vmatpush1.bf16.msra.mxu0 0
      %3240 = vmatprep.subr.bf16.mxu0 0
      %3241 = vmatpush1.bf16.msra.mxu0 0
      %3242 = vmatprep.subr.bf16.mxu0 0
      %3243 = vmatpush1.bf16.msra.mxu0 0
      %3244 = vmatprep.subr.bf16.mxu0 0
      %3245 = vmatpush1.bf16.msra.mxu0 0
      %3246 = vmatprep.subr.bf16.mxu0 0
      %3247 = vmatpush1.bf16.msra.mxu0 0
      %3248 = vmatprep.subr.bf16.mxu0 0
      %3249 = vmatpush1.bf16.msra.mxu0 0
      %3250 = vmatprep.subr.bf16.mxu0 0
      %3251 = vmatpush1.bf16.msra.mxu0 0
      %3252 = vmatprep.subr.bf16.mxu0 0
      %3253 = vmatpush1.bf16.msra.mxu0 0
      %3254 = vmatprep.mubr.bf16.mxu0 0
      %3255 = vmatmul.mubr.bf16.gmra.mrb[0].mxu0 %v2161
      %v3256 = vpop.f32.mrb[0].mxu0
      %v3257 = vadd.f32 0.0, %v3256
      %v3258 = vpop.f32.mrb[0].mxu0
      %v3259 = vpop.f32.mrb[0].mxu0
      %v3260 = vadd.f32 0.0, %v3259
      %v3261 = vpop.f32.mrb[0].mxu0
      %3262 = vmatprep.mubr.bf16.mxu0 0
      %3263 = vmatmul.mubr.bf16.gmra.mrb[0].mxu0 %v2164
      %v3264 = vpop.f32.mrb[0].mxu0
      %v3265 = vadd.f32 0.0, %v3264
      %v3266 = vpop.f32.mrb[0].mxu0
      %v3267 = vpop.f32.mrb[0].mxu0
      %v3268 = vadd.f32 0.0, %v3267
      %v3269 = vpop.f32.mrb[0].mxu0
      %3270 = vdwg.mxu0
      %v3271 = vmul.f32 %v2507, %v3110
      %v3272 = vmul.f32 %v2512, %v3113
      %v3273 = vmul.f32 %v2517, %v3118
      %v3274 = vmul.f32 %v2522, %v3121
      %v3275 = vmul.f32 %v2527, %v3159
      %v3276 = vmul.f32 %v2532, %v3162
      %v3277 = vmul.f32 %v2537, %v3167
      %v3278 = vmul.f32 %v2542, %v3170
      %v3279 = vmul.f32 %v2547, %v3208
      %v3280 = vmul.f32 %v2552, %v3211
      %v3281 = vmul.f32 %v2557, %v3216
      %v3282 = vmul.f32 %v2562, %v3219
      %v3283 = vmul.f32 %v2567, %v3257
      %v3284 = vmul.f32 %v2572, %v3260
      %v3285 = vmul.f32 %v2577, %v3265
      %v3286 = vmul.f32 %v2582, %v3268
      %3303 = vrot.lane.b32.xlu0 %v3271, 2
      %v3304 = vpop.permute.xlu0 %3303
      %3305 = vrot.lane.b32.xlu0 %v3272, 2
      %v3306 = vpop.permute.xlu0 %3305
      %3307 = vrot.lane.b32.xlu0 %v3273, 2
      %v3308 = vpop.permute.xlu0 %3307
      %3309 = vrot.lane.b32.xlu0 %v3274, 2
      %v3310 = vpop.permute.xlu0 %3309
      %3311 = vrot.lane.b32.xlu0 %v3275, 2
      %v3312 = vpop.permute.xlu0 %3311
      %3313 = vrot.lane.b32.xlu0 %v3276, 2
      %v3314 = vpop.permute.xlu0 %3313
      %3315 = vrot.lane.b32.xlu0 %v3277, 2
      %v3316 = vpop.permute.xlu0 %3315
      %3317 = vrot.lane.b32.xlu0 %v3278, 2
      %v3318 = vpop.permute.xlu0 %3317
      %3319 = vrot.lane.b32.xlu0 %v3279, 2
      %v3320 = vpop.permute.xlu0 %3319
      %3321 = vrot.lane.b32.xlu0 %v3280, 2
      %v3322 = vpop.permute.xlu0 %3321
      %3323 = vrot.lane.b32.xlu0 %v3281, 2
      %v3324 = vpop.permute.xlu0 %3323
      %3325 = vrot.lane.b32.xlu0 %v3282, 2
      %v3326 = vpop.permute.xlu0 %3325
      %3327 = vrot.lane.b32.xlu0 %v3283, 2
      %v3328 = vpop.permute.xlu0 %3327
      %3329 = vrot.lane.b32.xlu0 %v3284, 2
      %v3330 = vpop.permute.xlu0 %3329
      %3331 = vrot.lane.b32.xlu0 %v3285, 2
      %v3332 = vpop.permute.xlu0 %3331
      %3333 = vrot.lane.b32.xlu0 %v3286, 2
      %v3334 = vpop.permute.xlu0 %3333
      %v3351 = vsub.f32 %v3110, %v3304
      %v3352 = vsub.f32 %v3113, %v3306
      %v3353 = vsub.f32 %v3118, %v3308
      %v3354 = vsub.f32 %v3121, %v3310
      %v3355 = vsub.f32 %v3159, %v3312
      %v3356 = vsub.f32 %v3162, %v3314
      %v3357 = vsub.f32 %v3167, %v3316
      %v3358 = vsub.f32 %v3170, %v3318
      %v3359 = vsub.f32 %v3208, %v3320
      %v3360 = vsub.f32 %v3211, %v3322
      %v3361 = vsub.f32 %v3216, %v3324
      %v3362 = vsub.f32 %v3219, %v3326
      %v3363 = vsub.f32 %v3257, %v3328
      %v3364 = vsub.f32 %v3260, %v3330
      %v3365 = vsub.f32 %v3265, %v3332
      %v3366 = vsub.f32 %v3268, %v3334
      %v3367 = vmul.f32 %v2602, %v3110
      %v3368 = vmul.f32 %v2606, %v3113
      %v3369 = vmul.f32 %v2610, %v3118
      %v3370 = vmul.f32 %v2614, %v3121
      %v3371 = vmul.f32 %v2618, %v3159
      %v3372 = vmul.f32 %v2622, %v3162
      %v3373 = vmul.f32 %v2626, %v3167
      %v3374 = vmul.f32 %v2630, %v3170
      %v3375 = vmul.f32 %v2634, %v3208
      %v3376 = vmul.f32 %v2638, %v3211
      %v3377 = vmul.f32 %v2642, %v3216
      %v3378 = vmul.f32 %v2646, %v3219
      %v3379 = vmul.f32 %v2650, %v3257
      %v3380 = vmul.f32 %v2654, %v3260
      %v3381 = vmul.f32 %v2658, %v3265
      %v3382 = vmul.f32 %v2662, %v3268
      %3399 = vrot.lane.b32.xlu0 %v3367, 4
      %v3400 = vpop.permute.xlu0 %3399
      %3401 = vrot.lane.b32.xlu0 %v3368, 4
      %v3402 = vpop.permute.xlu0 %3401
      %3403 = vrot.lane.b32.xlu0 %v3369, 4
      %v3404 = vpop.permute.xlu0 %3403
      %3405 = vrot.lane.b32.xlu0 %v3370, 4
      %v3406 = vpop.permute.xlu0 %3405
      %3407 = vrot.lane.b32.xlu0 %v3371, 4
      %v3408 = vpop.permute.xlu0 %3407
      %3409 = vrot.lane.b32.xlu0 %v3372, 4
      %v3410 = vpop.permute.xlu0 %3409
      %3411 = vrot.lane.b32.xlu0 %v3373, 4
      %v3412 = vpop.permute.xlu0 %3411
      %3413 = vrot.lane.b32.xlu0 %v3374, 4
      %v3414 = vpop.permute.xlu0 %3413
      %3415 = vrot.lane.b32.xlu0 %v3375, 4
      %v3416 = vpop.permute.xlu0 %3415
      %3417 = vrot.lane.b32.xlu0 %v3376, 4
      %v3418 = vpop.permute.xlu0 %3417
      %3419 = vrot.lane.b32.xlu0 %v3377, 4
      %v3420 = vpop.permute.xlu0 %3419
      %3421 = vrot.lane.b32.xlu0 %v3378, 4
      %v3422 = vpop.permute.xlu0 %3421
      %3423 = vrot.lane.b32.xlu0 %v3379, 4
      %v3424 = vpop.permute.xlu0 %3423
      %3425 = vrot.lane.b32.xlu0 %v3380, 4
      %v3426 = vpop.permute.xlu0 %3425
      %3427 = vrot.lane.b32.xlu0 %v3381, 4
      %v3428 = vpop.permute.xlu0 %3427
      %3429 = vrot.lane.b32.xlu0 %v3382, 4
      %v3430 = vpop.permute.xlu0 %3429
      %v3447 = vsub.f32 %v3110, %v3400
      %v3448 = vsub.f32 %v3113, %v3402
      %v3449 = vsub.f32 %v3118, %v3404
      %v3450 = vsub.f32 %v3121, %v3406
      %v3451 = vsub.f32 %v3159, %v3408
      %v3452 = vsub.f32 %v3162, %v3410
      %v3453 = vsub.f32 %v3167, %v3412
      %v3454 = vsub.f32 %v3170, %v3414
      %v3455 = vsub.f32 %v3208, %v3416
      %v3456 = vsub.f32 %v3211, %v3418
      %v3457 = vsub.f32 %v3216, %v3420
      %v3458 = vsub.f32 %v3219, %v3422
      %v3459 = vsub.f32 %v3257, %v3424
      %v3460 = vsub.f32 %v3260, %v3426
      %v3461 = vsub.f32 %v3265, %v3428
      %v3462 = vsub.f32 %v3268, %v3430
      %v3463 = vmul.f32 %v2682, %v3110
      %v3464 = vmul.f32 %v2686, %v3113
      %v3465 = vmul.f32 %v2690, %v3118
      %v3466 = vmul.f32 %v2694, %v3121
      %v3467 = vmul.f32 %v2698, %v3159
      %v3468 = vmul.f32 %v2702, %v3162
      %v3469 = vmul.f32 %v2706, %v3167
      %v3470 = vmul.f32 %v2710, %v3170
      %v3471 = vmul.f32 %v2714, %v3208
      %v3472 = vmul.f32 %v2718, %v3211
      %v3473 = vmul.f32 %v2722, %v3216
      %v3474 = vmul.f32 %v2726, %v3219
      %v3475 = vmul.f32 %v2730, %v3257
      %v3476 = vmul.f32 %v2734, %v3260
      %v3477 = vmul.f32 %v2738, %v3265
      %v3478 = vmul.f32 %v2742, %v3268
      %3495 = vrot.lane.b32.xlu0 %v3463, 6
      %v3496 = vpop.permute.xlu0 %3495
      %3497 = vrot.lane.b32.xlu0 %v3464, 6
      %v3498 = vpop.permute.xlu0 %3497
      %3499 = vrot.lane.b32.xlu0 %v3465, 6
      %v3500 = vpop.permute.xlu0 %3499
      %3501 = vrot.lane.b32.xlu0 %v3466, 6
      %v3502 = vpop.permute.xlu0 %3501
      %3503 = vrot.lane.b32.xlu0 %v3467, 6
      %v3504 = vpop.permute.xlu0 %3503
      %3505 = vrot.lane.b32.xlu0 %v3468, 6
      %v3506 = vpop.permute.xlu0 %3505
      %3507 = vrot.lane.b32.xlu0 %v3469, 6
      %v3508 = vpop.permute.xlu0 %3507
      %3509 = vrot.lane.b32.xlu0 %v3470, 6
      %v3510 = vpop.permute.xlu0 %3509
      %3511 = vrot.lane.b32.xlu0 %v3471, 6
      %v3512 = vpop.permute.xlu0 %3511
      %3513 = vrot.lane.b32.xlu0 %v3472, 6
      %v3514 = vpop.permute.xlu0 %3513
      %3515 = vrot.lane.b32.xlu0 %v3473, 6
      %v3516 = vpop.permute.xlu0 %3515
      %3517 = vrot.lane.b32.xlu0 %v3474, 6
      %v3518 = vpop.permute.xlu0 %3517
      %3519 = vrot.lane.b32.xlu0 %v3475, 6
      %v3520 = vpop.permute.xlu0 %3519
      %3521 = vrot.lane.b32.xlu0 %v3476, 6
      %v3522 = vpop.permute.xlu0 %3521
      %3523 = vrot.lane.b32.xlu0 %v3477, 6
      %v3524 = vpop.permute.xlu0 %3523
      %3525 = vrot.lane.b32.xlu0 %v3478, 6
      %v3526 = vpop.permute.xlu0 %3525
      %v3543 = vsub.f32 %v3110, %v3496
      %v3544 = vsub.f32 %v3113, %v3498
      %v3545 = vsub.f32 %v3118, %v3500
      %v3546 = vsub.f32 %v3121, %v3502
      %v3547 = vsub.f32 %v3159, %v3504
      %v3548 = vsub.f32 %v3162, %v3506
      %v3549 = vsub.f32 %v3167, %v3508
      %v3550 = vsub.f32 %v3170, %v3510
      %v3551 = vsub.f32 %v3208, %v3512
      %v3552 = vsub.f32 %v3211, %v3514
      %v3553 = vsub.f32 %v3216, %v3516
      %v3554 = vsub.f32 %v3219, %v3518
      %v3555 = vsub.f32 %v3257, %v3520
      %v3556 = vsub.f32 %v3260, %v3522
      %v3557 = vsub.f32 %v3265, %v3524
      %v3558 = vsub.f32 %v3268, %v3526
      %3575 = vrot.lane.b32.xlu0 %v3351, 126
      %v3576 = vpop.permute.xlu0 %3575
      %3577 = vrot.lane.b32.xlu0 %v3352, 126
      %v3578 = vpop.permute.xlu0 %3577
      %3579 = vrot.lane.b32.xlu0 %v3353, 126
      %v3580 = vpop.permute.xlu0 %3579
      %3581 = vrot.lane.b32.xlu0 %v3354, 126
      %v3582 = vpop.permute.xlu0 %3581
      %3583 = vrot.lane.b32.xlu0 %v3355, 126
      %v3584 = vpop.permute.xlu0 %3583
      %3585 = vrot.lane.b32.xlu0 %v3356, 126
      %v3586 = vpop.permute.xlu0 %3585
      %3587 = vrot.lane.b32.xlu0 %v3357, 126
      %v3588 = vpop.permute.xlu0 %3587
      %3589 = vrot.lane.b32.xlu0 %v3358, 126
      %v3590 = vpop.permute.xlu0 %3589
      %3591 = vrot.lane.b32.xlu0 %v3359, 126
      %v3592 = vpop.permute.xlu0 %3591
      %3593 = vrot.lane.b32.xlu0 %v3360, 126
      %v3594 = vpop.permute.xlu0 %3593
      %3595 = vrot.lane.b32.xlu0 %v3361, 126
      %v3596 = vpop.permute.xlu0 %3595
      %3597 = vrot.lane.b32.xlu0 %v3362, 126
      %v3598 = vpop.permute.xlu0 %3597
      %3599 = vrot.lane.b32.xlu0 %v3363, 126
      %v3600 = vpop.permute.xlu0 %3599
      %3601 = vrot.lane.b32.xlu0 %v3364, 126
      %v3602 = vpop.permute.xlu0 %3601
      %3603 = vrot.lane.b32.xlu0 %v3365, 126
      %v3604 = vpop.permute.xlu0 %3603
      %3605 = vrot.lane.b32.xlu0 %v3366, 126
      %v3606 = vpop.permute.xlu0 %3605
      %3639 = vrot.lane.b32.xlu0 %v3447, 126
      %v3640 = vpop.permute.xlu0 %3639
      %3641 = vrot.lane.b32.xlu0 %v3448, 126
      %v3642 = vpop.permute.xlu0 %3641
      %3643 = vrot.lane.b32.xlu0 %v3449, 126
      %v3644 = vpop.permute.xlu0 %3643
      %3645 = vrot.lane.b32.xlu0 %v3450, 126
      %v3646 = vpop.permute.xlu0 %3645
      %3647 = vrot.lane.b32.xlu0 %v3451, 126
      %v3648 = vpop.permute.xlu0 %3647
      %3649 = vrot.lane.b32.xlu0 %v3452, 126
      %v3650 = vpop.permute.xlu0 %3649
      %3651 = vrot.lane.b32.xlu0 %v3453, 126
      %v3652 = vpop.permute.xlu0 %3651
      %3653 = vrot.lane.b32.xlu0 %v3454, 126
      %v3654 = vpop.permute.xlu0 %3653
      %3655 = vrot.lane.b32.xlu0 %v3455, 126
      %v3656 = vpop.permute.xlu0 %3655
      %3657 = vrot.lane.b32.xlu0 %v3456, 126
      %v3658 = vpop.permute.xlu0 %3657
      %3659 = vrot.lane.b32.xlu0 %v3457, 126
      %v3660 = vpop.permute.xlu0 %3659
      %3661 = vrot.lane.b32.xlu0 %v3458, 126
      %v3662 = vpop.permute.xlu0 %3661
      %3663 = vrot.lane.b32.xlu0 %v3459, 126
      %v3664 = vpop.permute.xlu0 %3663
      %3665 = vrot.lane.b32.xlu0 %v3460, 126
      %v3666 = vpop.permute.xlu0 %3665
      %3667 = vrot.lane.b32.xlu0 %v3461, 126
      %v3668 = vpop.permute.xlu0 %3667
      %3669 = vrot.lane.b32.xlu0 %v3462, 126
      %v3670 = vpop.permute.xlu0 %3669
      %3703 = vrot.lane.b32.xlu0 %v3543, 126
      %v3704 = vpop.permute.xlu0 %3703
      %3705 = vrot.lane.b32.xlu0 %v3544, 126
      %v3706 = vpop.permute.xlu0 %3705
      %3707 = vrot.lane.b32.xlu0 %v3545, 126
      %v3708 = vpop.permute.xlu0 %3707
      %3709 = vrot.lane.b32.xlu0 %v3546, 126
      %v3710 = vpop.permute.xlu0 %3709
      %3711 = vrot.lane.b32.xlu0 %v3547, 126
      %v3712 = vpop.permute.xlu0 %3711
      %3713 = vrot.lane.b32.xlu0 %v3548, 126
      %v3714 = vpop.permute.xlu0 %3713
      %3715 = vrot.lane.b32.xlu0 %v3549, 126
      %v3716 = vpop.permute.xlu0 %3715
      %3717 = vrot.lane.b32.xlu0 %v3550, 126
      %v3718 = vpop.permute.xlu0 %3717
      %3719 = vrot.lane.b32.xlu0 %v3551, 126
      %v3720 = vpop.permute.xlu0 %3719
      %3721 = vrot.lane.b32.xlu0 %v3552, 126
      %v3722 = vpop.permute.xlu0 %3721
      %3723 = vrot.lane.b32.xlu0 %v3553, 126
      %v3724 = vpop.permute.xlu0 %3723
      %3725 = vrot.lane.b32.xlu0 %v3554, 126
      %v3726 = vpop.permute.xlu0 %3725
      %3727 = vrot.lane.b32.xlu0 %v3555, 126
      %v3728 = vpop.permute.xlu0 %3727
      %3729 = vrot.lane.b32.xlu0 %v3556, 126
      %v3730 = vpop.permute.xlu0 %3729
      %3731 = vrot.lane.b32.xlu0 %v3557, 126
      %v3732 = vpop.permute.xlu0 %3731
      %3733 = vrot.lane.b32.xlu0 %v3558, 126
      %v3734 = vpop.permute.xlu0 %3733
      %v3751 = vsel %vm3016, %v3576, %v3640
      %v3752 = vsel %vm3016, %v3578, %v3642
      %v3753 = vsel %vm3016, %v3580, %v3644
      %v3754 = vsel %vm3016, %v3582, %v3646
      %v3755 = vsel %vm3016, %v3584, %v3648
      %v3756 = vsel %vm3016, %v3586, %v3650
      %v3757 = vsel %vm3016, %v3588, %v3652
      %v3758 = vsel %vm3016, %v3590, %v3654
      %v3759 = vsel %vm3016, %v3592, %v3656
      %v3760 = vsel %vm3016, %v3594, %v3658
      %v3761 = vsel %vm3016, %v3596, %v3660
      %v3762 = vsel %vm3016, %v3598, %v3662
      %v3763 = vsel %vm3016, %v3600, %v3664
      %v3764 = vsel %vm3016, %v3602, %v3666
      %v3765 = vsel %vm3016, %v3604, %v3668
      %v3766 = vsel %vm3016, %v3606, %v3670
      %v3767 = vsel %vm3033, %v3751, %v3704
      %v3768 = vsel %vm3033, %v3752, %v3706
      %v3769 = vsel %vm3033, %v3753, %v3708
      %v3770 = vsel %vm3033, %v3754, %v3710
      %v3771 = vsel %vm3033, %v3755, %v3712
      %v3772 = vsel %vm3033, %v3756, %v3714
      %v3773 = vsel %vm3033, %v3757, %v3716
      %v3774 = vsel %vm3033, %v3758, %v3718
      %v3775 = vsel %vm3033, %v3759, %v3720
      %v3776 = vsel %vm3033, %v3760, %v3722
      %v3777 = vsel %vm3033, %v3761, %v3724
      %v3778 = vsel %vm3033, %v3762, %v3726
      %v3779 = vsel %vm3033, %v3763, %v3728
      %v3780 = vsel %vm3033, %v3764, %v3730
      %v3781 = vsel %vm3033, %v3765, %v3732
      %v3782 = vsel %vm3033, %v3766, %v3734
      %3799 = vrot.lane.b32.xlu0 %v3767, 27
      %v3800 = vpop.permute.xlu0 %3799
      %3801 = vrot.lane.b32.xlu0 %v3768, 27
      %v3802 = vpop.permute.xlu0 %3801
      %3803 = vrot.lane.b32.xlu0 %v3769, 27
      %v3804 = vpop.permute.xlu0 %3803
      %3805 = vrot.lane.b32.xlu0 %v3770, 27
      %v3806 = vpop.permute.xlu0 %3805
      %3807 = vrot.lane.b32.xlu0 %v3771, 27
      %v3808 = vpop.permute.xlu0 %3807
      %3809 = vrot.lane.b32.xlu0 %v3772, 27
      %v3810 = vpop.permute.xlu0 %3809
      %3811 = vrot.lane.b32.xlu0 %v3773, 27
      %v3812 = vpop.permute.xlu0 %3811
      %3813 = vrot.lane.b32.xlu0 %v3774, 27
      %v3814 = vpop.permute.xlu0 %3813
      %3815 = vrot.lane.b32.xlu0 %v3775, 27
      %v3816 = vpop.permute.xlu0 %3815
      %3817 = vrot.lane.b32.xlu0 %v3776, 27
      %v3818 = vpop.permute.xlu0 %3817
      %3819 = vrot.lane.b32.xlu0 %v3777, 27
      %v3820 = vpop.permute.xlu0 %3819
      %3821 = vrot.lane.b32.xlu0 %v3778, 27
      %v3822 = vpop.permute.xlu0 %3821
      %3823 = vrot.lane.b32.xlu0 %v3779, 27
      %v3824 = vpop.permute.xlu0 %3823
      %3825 = vrot.lane.b32.xlu0 %v3780, 27
      %v3826 = vpop.permute.xlu0 %3825
      %3827 = vrot.lane.b32.xlu0 %v3781, 27
      %v3828 = vpop.permute.xlu0 %3827
      %3829 = vrot.lane.b32.xlu0 %v3782, 27
      %v3830 = vpop.permute.xlu0 %3829
      %vm3847 = vcmask 220160
      %v3848 = vsel %vm3847, %v2488, %v3800
      %v3849 = vsel %vm3847, %v2489, %v3802
      %v3850 = vsel %vm3847, %v2490, %v3804
      %v3851 = vsel %vm3847, %v2491, %v3806
      %v3852 = vsel %vm3847, %v2492, %v3808
      %v3853 = vsel %vm3847, %v2493, %v3810
      %v3854 = vsel %vm3847, %v2494, %v3812
      %v3855 = vsel %vm3847, %v2495, %v3814
      %v3856 = vsel %vm3847, %v2496, %v3816
      %v3857 = vsel %vm3847, %v2497, %v3818
      %v3858 = vsel %vm3847, %v2498, %v3820
      %v3859 = vsel %vm3847, %v2499, %v3822
      %v3860 = vsel %vm3847, %v2500, %v3824
      %v3861 = vsel %vm3847, %v2501, %v3826
      %v3862 = vsel %vm3847, %v2502, %v3828
      %v3863 = vsel %vm3847, %v2503, %v3830
      %vm3864 = vcmask 269312
      %v3865 = vsel %vm3864, %v3848, 0.0
      %v3866 = vsel %vm3864, %v3849, 0.0
      %v3867 = vsel %vm3864, %v3850, 0.0
      %v3868 = vsel %vm3864, %v3851, 0.0
      %v3869 = vsel %vm3864, %v3852, 0.0
      %v3870 = vsel %vm3864, %v3853, 0.0
      %v3871 = vsel %vm3864, %v3854, 0.0
      %v3872 = vsel %vm3864, %v3855, 0.0
      %v3873 = vsel %vm3864, %v3856, 0.0
      %v3874 = vsel %vm3864, %v3857, 0.0
      %v3875 = vsel %vm3864, %v3858, 0.0
      %v3876 = vsel %vm3864, %v3859, 0.0
      %v3877 = vsel %vm3864, %v3860, 0.0
      %v3878 = vsel %vm3864, %v3861, 0.0
      %v3879 = vsel %vm3864, %v3862, 0.0
      %v3880 = vsel %vm3864, %v3863, 0.0
      %3881 = vst [vmem:[%s308] sm:$0xff] %v3865
      %3882 = vst [vmem:[%s308 + $0x8] sm:$0xff] %v3866
      %3883 = vst [vmem:[%s308 + $0x10] sm:$0xff] %v3867
      %3884 = vst [vmem:[%s308 + $0x18] sm:$0xff] %v3868
      %3885 = vst [vmem:[%s308 + $0x20] sm:$0xff] %v3869
      %3886 = vst [vmem:[%s308 + $0x28] sm:$0xff] %v3870
      %3887 = vst [vmem:[%s308 + $0x30] sm:$0xff] %v3871
      %3888 = vst [vmem:[%s308 + $0x38] sm:$0xff] %v3872
      %3889 = vst [vmem:[%s308 + $0x40] sm:$0xff] %v3873
      %3890 = vst [vmem:[%s308 + $0x48] sm:$0xff] %v3874
      %3891 = vst [vmem:[%s308 + $0x50] sm:$0xff] %v3875
      %3892 = vst [vmem:[%s308 + $0x58] sm:$0xff] %v3876
      %3893 = vst [vmem:[%s308 + $0x60] sm:$0xff] %v3877
      %3894 = vst [vmem:[%s308 + $0x68] sm:$0xff] %v3878
      %3895 = vst [vmem:[%s308 + $0x70] sm:$0xff] %v3879
      %3896 = vst [vmem:[%s308 + $0x78] sm:$0xff] %v3880
      %s3897 = smul.u32 4, %s17
      %p3898 = scmp.lt.s32.totalorder %s3897, 7
      %s3899 = scalar_select %p3898, %s3897, 7
      %s3900 = smul.addr %s3899, 4
      %s3901 = smul.addr %s3900, 8
      %s3902 = scalar_lea.vmem %s6, %s3901
      // Predicated region
      $region45: #{se3_transformer_wrapper.1} parent=43 // pred_check
        %p3903 = pneg %p176
      $region46: #{se3_transformer_wrapper.1} parent=43 // pred_check_branch
        %3905 = sbr.rel (%p3903) target = $region48
      $region47: #{se3_transformer_wrapper.1} parent=43 // pred_region
        %s3906 = smul.u32 4, %s17
      $region48: #{se3_transformer_wrapper.1} parent=43 // pred_fallthru
        _
    $region44: #{se3_transformer_wrapper.1} parent=5 // pred_fallthru
      _
    %p3907 = scmp.le.s32.totalorder 2, %s12
    // Predicated region
    $region49: #{se3_transformer_wrapper.1} parent=5 // pred_check
      %p3908 = pneg %p3907
    $region50: #{se3_transformer_wrapper.1} parent=5 // pred_check_branch
      %3910 = sbr.rel (%p3908) target = $region52
    $region51: #{se3_transformer_wrapper.1} parent=5 // pred_region
      %s3911 = ssub.s32 %s12, 2
      // Predicated region
      $region53: #{se3_transformer_wrapper.1} parent=51 // pred_check
        %p3912 = pneg %p182
      $region54: #{se3_transformer_wrapper.1} parent=51 // pred_check_branch
        %3914 = sbr.rel (%p3912) target = $region56
      $region55: #{se3_transformer_wrapper.1} parent=51 // pred_region
        %s3915 = smul.u32 4, %s18
        %p3916 = scmp.lt.s32.totalorder %s3915, 7
        %s3917 = scalar_select %p3916, %s3915, 7
        %s3918 = smul.addr %s3917, 4
        %s3919 = smul.addr %s3918, 8
        %s3920 = scalar_lea.vmem %s6, %s3919
      $region56: #{se3_transformer_wrapper.1} parent=51 // pred_fallthru
        _
    $region52: #{se3_transformer_wrapper.1} parent=5 // pred_fallthru
      _
  $region6: #{se3_transformer_wrapper.1} parent=0 // loop_footer
    %s16 = sadd.s32 1, %s12
  $region7: #{se3_transformer_wrapper.1} parent=0 // loop_footer_branch
    %11 = sbr.rel target = $region3
  $region8: #{se3_transformer_wrapper.1} parent=0 // loop_exit
    _

</llo_original>
